<compile_context>
chip_gen: v5e
topology: v5e:2x2
jax: 0.10.0
libtpu: 0.0.40
codegen_flags: <defaults>
</compile_context>

<pallas_src>
import functools

import jax
import jax.numpy as jnp
from jax.experimental import pallas as pl
from jax.experimental.pallas import tpu as pltpu


def _spatial_attention_kernel(w_ref, x_ref, o_ref, *, ksize):
    """One batch tile of SpatialAttention.

    w_ref : SMEM (2*ksize*ksize,) f32  -- conv weight flattened in (in, kh, kw) order
    x_ref : VMEM (BT, C, H, W)         -- input batch tile
    o_ref : VMEM (BT, 1, H, W)         -- sigmoid(conv([mean; max]))
    """
    x = x_ref[...].astype(jnp.float32)                     # (BT, C, H, W)
    bt, c_in, h, w = x.shape
    pad = (ksize - 1) // 2

    # ---- channel pooling: mean + max over channel axis (unrolled on VPU) ----
    s = x[:, 0]
    m = x[:, 0]
    for ci in range(1, c_in):
        xc = x[:, ci]
        s = s + xc
        m = jnp.maximum(m, xc)
    avg = s * (1.0 / c_in)                                 # (BT, H, W)

    # ---- zero-pad H/W so the KxK conv becomes static shifted slices ----
    def pad_hw(a):
        zc = jnp.zeros((bt, h, pad), jnp.float32)
        a = jnp.concatenate([zc, a, zc], axis=2)           # (BT, H, W+2P)
        zr = jnp.zeros((bt, pad, w + 2 * pad), jnp.float32)
        return jnp.concatenate([zr, a, zr], axis=1)        # (BT, H+2P, W+2P)

    planes = (pad_hw(avg), pad_hw(m))                      # chan 0 = mean, 1 = max

    # ---- 2 -> 1 channel KxK conv: scalar-weighted shift-accumulate ----
    acc = jnp.zeros((bt, h, w), jnp.float32)
    for ci in range(2):
        pc = planes[ci]
        for dy in range(ksize):
            for dx in range(ksize):
                wgt = w_ref[ci * ksize * ksize + dy * ksize + dx]   # SMEM scalar
                acc = acc + wgt * pc[:, dy:dy + h, dx:dx + w]

    # ---- sigmoid: exp goes to the EUP; exact divide keeps 1e-4 tolerance ----
    sig = 1.0 / (1.0 + jnp.exp(-acc))                      # (BT, H, W)
    o_ref[...] = sig[:, None, :, :].astype(o_ref.dtype)


def spatial_attention(x, conv_weight, *, kernel_size=7, batch_tile=None):
    """x: (B, C, H, W); conv_weight: (1, 2, k, k) in PyTorch OIHW layout (no bias)."""
    assert kernel_size in (3, 7), "kernel size must be 3 or 7"
    b, c, h, w = x.shape
    assert conv_weight.shape == (1, 2, kernel_size, kernel_size)

    if batch_tile is None:
        batch_tile = b                       # whole batch per grid step
    assert b % batch_tile == 0

    w_flat = conv_weight.reshape(-1).astype(jnp.float32)   # (2*k*k,)

    kernel = functools.partial(_spatial_attention_kernel, ksize=kernel_size)

    out = pl.pallas_call(
        kernel,
        out_shape=jax.ShapeDtypeStruct((b, 1, h, w), x.dtype),
        grid_spec=pltpu.PrefetchScalarGridSpec(
            num_scalar_prefetch=0,
            grid=(b // batch_tile,),
            in_specs=[
                # tiny conv-weight table -> SMEM, read as scalars in the kernel
                pl.BlockSpec(memory_space=pltpu.MemorySpace.SMEM),
                # one batch tile of the input per grid step (full C/H/W)
                pl.BlockSpec((batch_tile, c, h, w), lambda i: (i, 0, 0, 0)),
            ],
            out_specs=pl.BlockSpec((batch_tile, 1, h, w), lambda i: (i, 0, 0, 0)),
        ),
        compiler_params=pltpu.CompilerParams(
            dimension_semantics=("parallel",)),
    )(w_flat, x)
    return out


def _reference(x, conv_weight, kernel_size=7):
    """Pure-JAX reference mirroring the PyTorch SpatialAttention forward."""
    pad = (kernel_size - 1) // 2
    avg = jnp.mean(x, axis=1, keepdims=True)
    mx = jnp.max(x, axis=1, keepdims=True)
    y = jnp.concatenate([avg, mx], axis=1)                 # (B, 2, H, W)
    out = jax.lax.conv_general_dilated(
        y, conv_weight,
        window_strides=(1, 1),
        padding=[(pad, pad), (pad, pad)],
        dimension_numbers=("NCHW", "OIHW", "NCHW"))
    return jax.nn.sigmoid(out)


if __name__ == "__main__":
    B, C, H, W = 2, 4, 16, 16
    ksize = 7

    key = jax.random.PRNGKey(0)
    kx, kw = jax.random.split(key)
    x = jax.random.normal(kx, (B, C, H, W), dtype=jnp.float32)
    conv_w = (0.1 * jax.random.normal(kw, (1, 2, ksize, ksize))).astype(jnp.float32)

    out = spatial_attention(x, conv_w, kernel_size=ksize)
    out = jax.block_until_ready(out)

    ref = _reference(x, conv_w, kernel_size=ksize)
    assert out.shape == (B, 1, H, W)
    assert jnp.allclose(out, ref, atol=1e-4, rtol=1e-4), "mismatch vs reference"

    print("KERNEL_OK")
</pallas_src>

<mosaic_0001>
module attributes {stable_mosaic.version = 11 : i64} {
  func.func @_spatial_attention_kernel(%arg0: i32, %arg1: memref<98xf32, #tpu.memory_space<smem>>, %arg2: memref<2x4x16x16xf32, #tpu.memory_space<vmem>>, %arg3: memref<2x1x16x16xf32, #tpu.memory_space<vmem>>) attributes {dimension_semantics = [#tpu.dimension_semantics<parallel>], iteration_bounds = array<i64: 1>, scalar_prefetch = 0 : i64, scratch_operands = 0 : i64, tpu.core_type = #tpu.core_type<tc>, window_params = [{transform_indices = @transform_0, window_bounds = array<i64: 98>}, {transform_indices = @transform_1, window_bounds = array<i64: 2, 4, 16, 16>}, {transform_indices = @transform_2, window_bounds = array<i64: 2, 1, 16, 16>}]} {
    %c0 = arith.constant 0 : index
    %c0_0 = arith.constant 0 : index
    %c0_1 = arith.constant 0 : index
    %c0_2 = arith.constant 0 : index
    %0 = vector.load %arg2[%c0, %c0_0, %c0_1, %c0_2] : memref<2x4x16x16xf32, #tpu.memory_space<vmem>>, vector<2x4x16x16xf32>
    %1 = vector.extract_strided_slice %0 {offsets = [0, 0, 0, 0], sizes = [2, 1, 16, 16], strides = [1, 1, 1, 1]} : vector<2x4x16x16xf32> to vector<2x1x16x16xf32>
    %2 = vector.shape_cast %1 : vector<2x1x16x16xf32> to vector<2x16x16xf32>
    %3 = vector.extract_strided_slice %0 {offsets = [0, 0, 0, 0], sizes = [2, 1, 16, 16], strides = [1, 1, 1, 1]} : vector<2x4x16x16xf32> to vector<2x1x16x16xf32>
    %4 = vector.shape_cast %3 : vector<2x1x16x16xf32> to vector<2x16x16xf32>
    %5 = vector.extract_strided_slice %0 {offsets = [0, 1, 0, 0], sizes = [2, 1, 16, 16], strides = [1, 1, 1, 1]} : vector<2x4x16x16xf32> to vector<2x1x16x16xf32>
    %6 = vector.shape_cast %5 : vector<2x1x16x16xf32> to vector<2x16x16xf32>
    %7 = arith.addf %2, %6 : vector<2x16x16xf32>
    %8 = arith.maximumf %4, %6 : vector<2x16x16xf32>
    %9 = vector.extract_strided_slice %0 {offsets = [0, 2, 0, 0], sizes = [2, 1, 16, 16], strides = [1, 1, 1, 1]} : vector<2x4x16x16xf32> to vector<2x1x16x16xf32>
    %10 = vector.shape_cast %9 : vector<2x1x16x16xf32> to vector<2x16x16xf32>
    %11 = arith.addf %7, %10 : vector<2x16x16xf32>
    %12 = arith.maximumf %8, %10 : vector<2x16x16xf32>
    %13 = vector.extract_strided_slice %0 {offsets = [0, 3, 0, 0], sizes = [2, 1, 16, 16], strides = [1, 1, 1, 1]} : vector<2x4x16x16xf32> to vector<2x1x16x16xf32>
    %14 = vector.shape_cast %13 : vector<2x1x16x16xf32> to vector<2x16x16xf32>
    %15 = arith.addf %11, %14 : vector<2x16x16xf32>
    %16 = arith.maximumf %12, %14 : vector<2x16x16xf32>
    %cst = arith.constant 2.500000e-01 : f32
    %17 = vector.broadcast %cst : f32 to vector<2x16x16xf32>
    %18 = arith.mulf %15, %17 : vector<2x16x16xf32>
    %cst_3 = arith.constant 0.000000e+00 : f32
    %19 = vector.broadcast %cst_3 : f32 to vector<2x16x3xf32>
    %20 = tpu.concatenate %19, %18, %19 in 2 : vector<2x16x3xf32>, vector<2x16x16xf32>, vector<2x16x3xf32> -> vector<2x16x22xf32>
    %cst_4 = arith.constant 0.000000e+00 : f32
    %21 = vector.broadcast %cst_4 : f32 to vector<2x3x22xf32>
    %22 = tpu.concatenate %21, %20, %21 in 1 : vector<2x3x22xf32>, vector<2x16x22xf32>, vector<2x3x22xf32> -> vector<2x22x22xf32>
    %cst_5 = arith.constant 0.000000e+00 : f32
    %23 = vector.broadcast %cst_5 : f32 to vector<2x16x3xf32>
    %24 = tpu.concatenate %23, %16, %23 in 2 : vector<2x16x3xf32>, vector<2x16x16xf32>, vector<2x16x3xf32> -> vector<2x16x22xf32>
    %cst_6 = arith.constant 0.000000e+00 : f32
    %25 = vector.broadcast %cst_6 : f32 to vector<2x3x22xf32>
    %26 = tpu.concatenate %25, %24, %25 in 1 : vector<2x3x22xf32>, vector<2x16x22xf32>, vector<2x3x22xf32> -> vector<2x22x22xf32>
    %cst_7 = arith.constant 0.000000e+00 : f32
    %27 = vector.broadcast %cst_7 : f32 to vector<2x16x16xf32>
    %c0_8 = arith.constant 0 : index
    %28 = memref.load %arg1[%c0_8] : memref<98xf32, #tpu.memory_space<smem>>
    %29 = vector.extract_strided_slice %22 {offsets = [0, 0, 0], sizes = [2, 16, 16], strides = [1, 1, 1]} : vector<2x22x22xf32> to vector<2x16x16xf32>
    %30 = vector.broadcast %28 : f32 to vector<2x16x16xf32>
    %31 = arith.mulf %30, %29 : vector<2x16x16xf32>
    %32 = arith.addf %27, %31 : vector<2x16x16xf32>
    %c1 = arith.constant 1 : index
    %33 = memref.load %arg1[%c1] : memref<98xf32, #tpu.memory_space<smem>>
    %34 = vector.extract_strided_slice %22 {offsets = [0, 0, 1], sizes = [2, 16, 16], strides = [1, 1, 1]} : vector<2x22x22xf32> to vector<2x16x16xf32>
    %35 = vector.broadcast %33 : f32 to vector<2x16x16xf32>
    %36 = arith.mulf %35, %34 : vector<2x16x16xf32>
    %37 = arith.addf %32, %36 : vector<2x16x16xf32>
    %c2 = arith.constant 2 : index
    %38 = memref.load %arg1[%c2] : memref<98xf32, #tpu.memory_space<smem>>
    %39 = vector.extract_strided_slice %22 {offsets = [0, 0, 2], sizes = [2, 16, 16], strides = [1, 1, 1]} : vector<2x22x22xf32> to vector<2x16x16xf32>
    %40 = vector.broadcast %38 : f32 to vector<2x16x16xf32>
    %41 = arith.mulf %40, %39 : vector<2x16x16xf32>
    %42 = arith.addf %37, %41 : vector<2x16x16xf32>
    %c3 = arith.constant 3 : index
    %43 = memref.load %arg1[%c3] : memref<98xf32, #tpu.memory_space<smem>>
    %44 = vector.extract_strided_slice %22 {offsets = [0, 0, 3], sizes = [2, 16, 16], strides = [1, 1, 1]} : vector<2x22x22xf32> to vector<2x16x16xf32>
    %45 = vector.broadcast %43 : f32 to vector<2x16x16xf32>
    %46 = arith.mulf %45, %44 : vector<2x16x16xf32>
    %47 = arith.addf %42, %46 : vector<2x16x16xf32>
    %c4 = arith.constant 4 : index
    %48 = memref.load %arg1[%c4] : memref<98xf32, #tpu.memory_space<smem>>
    %49 = vector.extract_strided_slice %22 {offsets = [0, 0, 4], sizes = [2, 16, 16], strides = [1, 1, 1]} : vector<2x22x22xf32> to vector<2x16x16xf32>
    %50 = vector.broadcast %48 : f32 to vector<2x16x16xf32>
    %51 = arith.mulf %50, %49 : vector<2x16x16xf32>
    %52 = arith.addf %47, %51 : vector<2x16x16xf32>
    %c5 = arith.constant 5 : index
    %53 = memref.load %arg1[%c5] : memref<98xf32, #tpu.memory_space<smem>>
    %54 = vector.extract_strided_slice %22 {offsets = [0, 0, 5], sizes = [2, 16, 16], strides = [1, 1, 1]} : vector<2x22x22xf32> to vector<2x16x16xf32>
    %55 = vector.broadcast %53 : f32 to vector<2x16x16xf32>
    %56 = arith.mulf %55, %54 : vector<2x16x16xf32>
    %57 = arith.addf %52, %56 : vector<2x16x16xf32>
    %c6 = arith.constant 6 : index
    %58 = memref.load %arg1[%c6] : memref<98xf32, #tpu.memory_space<smem>>
    %59 = vector.extract_strided_slice %22 {offsets = [0, 0, 6], sizes = [2, 16, 16], strides = [1, 1, 1]} : vector<2x22x22xf32> to vector<2x16x16xf32>
    %60 = vector.broadcast %58 : f32 to vector<2x16x16xf32>
    %61 = arith.mulf %60, %59 : vector<2x16x16xf32>
    %62 = arith.addf %57, %61 : vector<2x16x16xf32>
    %c7 = arith.constant 7 : index
    %63 = memref.load %arg1[%c7] : memref<98xf32, #tpu.memory_space<smem>>
    %64 = vector.extract_strided_slice %22 {offsets = [0, 1, 0], sizes = [2, 16, 16], strides = [1, 1, 1]} : vector<2x22x22xf32> to vector<2x16x16xf32>
    %65 = vector.broadcast %63 : f32 to vector<2x16x16xf32>
    %66 = arith.mulf %65, %64 : vector<2x16x16xf32>
    %67 = arith.addf %62, %66 : vector<2x16x16xf32>
    %c8 = arith.constant 8 : index
    %68 = memref.load %arg1[%c8] : memref<98xf32, #tpu.memory_space<smem>>
    %69 = vector.extract_strided_slice %22 {offsets = [0, 1, 1], sizes = [2, 16, 16], strides = [1, 1, 1]} : vector<2x22x22xf32> to vector<2x16x16xf32>
    %70 = vector.broadcast %68 : f32 to vector<2x16x16xf32>
    %71 = arith.mulf %70, %69 : vector<2x16x16xf32>
    %72 = arith.addf %67, %71 : vector<2x16x16xf32>
    %c9 = arith.constant 9 : index
    %73 = memref.load %arg1[%c9] : memref<98xf32, #tpu.memory_space<smem>>
    %74 = vector.extract_strided_slice %22 {offsets = [0, 1, 2], sizes = [2, 16, 16], strides = [1, 1, 1]} : vector<2x22x22xf32> to vector<2x16x16xf32>
    %75 = vector.broadcast %73 : f32 to vector<2x16x16xf32>
    %76 = arith.mulf %75, %74 : vector<2x16x16xf32>
    %77 = arith.addf %72, %76 : vector<2x16x16xf32>
    %c10 = arith.constant 10 : index
    %78 = memref.load %arg1[%c10] : memref<98xf32, #tpu.memory_space<smem>>
    %79 = vector.extract_strided_slice %22 {offsets = [0, 1, 3], sizes = [2, 16, 16], strides = [1, 1, 1]} : vector<2x22x22xf32> to vector<2x16x16xf32>
    %80 = vector.broadcast %78 : f32 to vector<2x16x16xf32>
    %81 = arith.mulf %80, %79 : vector<2x16x16xf32>
    %82 = arith.addf %77, %81 : vector<2x16x16xf32>
    %c11 = arith.constant 11 : index
    %83 = memref.load %arg1[%c11] : memref<98xf32, #tpu.memory_space<smem>>
    %84 = vector.extract_strided_slice %22 {offsets = [0, 1, 4], sizes = [2, 16, 16], strides = [1, 1, 1]} : vector<2x22x22xf32> to vector<2x16x16xf32>
    %85 = vector.broadcast %83 : f32 to vector<2x16x16xf32>
    %86 = arith.mulf %85, %84 : vector<2x16x16xf32>
    %87 = arith.addf %82, %86 : vector<2x16x16xf32>
    %c12 = arith.constant 12 : index
    %88 = memref.load %arg1[%c12] : memref<98xf32, #tpu.memory_space<smem>>
    %89 = vector.extract_strided_slice %22 {offsets = [0, 1, 5], sizes = [2, 16, 16], strides = [1, 1, 1]} : vector<2x22x22xf32> to vector<2x16x16xf32>
    %90 = vector.broadcast %88 : f32 to vector<2x16x16xf32>
    %91 = arith.mulf %90, %89 : vector<2x16x16xf32>
    %92 = arith.addf %87, %91 : vector<2x16x16xf32>
    %c13 = arith.constant 13 : index
    %93 = memref.load %arg1[%c13] : memref<98xf32, #tpu.memory_space<smem>>
    %94 = vector.extract_strided_slice %22 {offsets = [0, 1, 6], sizes = [2, 16, 16], strides = [1, 1, 1]} : vector<2x22x22xf32> to vector<2x16x16xf32>
    %95 = vector.broadcast %93 : f32 to vector<2x16x16xf32>
    %96 = arith.mulf %95, %94 : vector<2x16x16xf32>
    %97 = arith.addf %92, %96 : vector<2x16x16xf32>
    %c14 = arith.constant 14 : index
    %98 = memref.load %arg1[%c14] : memref<98xf32, #tpu.memory_space<smem>>
    %99 = vector.extract_strided_slice %22 {offsets = [0, 2, 0], sizes = [2, 16, 16], strides = [1, 1, 1]} : vector<2x22x22xf32> to vector<2x16x16xf32>
    %100 = vector.broadcast %98 : f32 to vector<2x16x16xf32>
    %101 = arith.mulf %100, %99 : vector<2x16x16xf32>
    %102 = arith.addf %97, %101 : vector<2x16x16xf32>
    %c15 = arith.constant 15 : index
    %103 = memref.load %arg1[%c15] : memref<98xf32, #tpu.memory_space<smem>>
    %104 = vector.extract_strided_slice %22 {offsets = [0, 2, 1], sizes = [2, 16, 16], strides = [1, 1, 1]} : vector<2x22x22xf32> to vector<2x16x16xf32>
    %105 = vector.broadcast %103 : f32 to vector<2x16x16xf32>
    %106 = arith.mulf %105, %104 : vector<2x16x16xf32>
    %107 = arith.addf %102, %106 : vector<2x16x16xf32>
    %c16 = arith.constant 16 : index
    %108 = memref.load %arg1[%c16] : memref<98xf32, #tpu.memory_space<smem>>
    %109 = vector.extract_strided_slice %22 {offsets = [0, 2, 2], sizes = [2, 16, 16], strides = [1, 1, 1]} : vector<2x22x22xf32> to vector<2x16x16xf32>
    %110 = vector.broadcast %108 : f32 to vector<2x16x16xf32>
    %111 = arith.mulf %110, %109 : vector<2x16x16xf32>
    %112 = arith.addf %107, %111 : vector<2x16x16xf32>
    %c17 = arith.constant 17 : index
    %113 = memref.load %arg1[%c17] : memref<98xf32, #tpu.memory_space<smem>>
    %114 = vector.extract_strided_slice %22 {offsets = [0, 2, 3], sizes = [2, 16, 16], strides = [1, 1, 1]} : vector<2x22x22xf32> to vector<2x16x16xf32>
    %115 = vector.broadcast %113 : f32 to vector<2x16x16xf32>
    %116 = arith.mulf %115, %114 : vector<2x16x16xf32>
    %117 = arith.addf %112, %116 : vector<2x16x16xf32>
    %c18 = arith.constant 18 : index
    %118 = memref.load %arg1[%c18] : memref<98xf32, #tpu.memory_space<smem>>
    %119 = vector.extract_strided_slice %22 {offsets = [0, 2, 4], sizes = [2, 16, 16], strides = [1, 1, 1]} : vector<2x22x22xf32> to vector<2x16x16xf32>
    %120 = vector.broadcast %118 : f32 to vector<2x16x16xf32>
    %121 = arith.mulf %120, %119 : vector<2x16x16xf32>
    %122 = arith.addf %117, %121 : vector<2x16x16xf32>
    %c19 = arith.constant 19 : index
    %123 = memref.load %arg1[%c19] : memref<98xf32, #tpu.memory_space<smem>>
    %124 = vector.extract_strided_slice %22 {offsets = [0, 2, 5], sizes = [2, 16, 16], strides = [1, 1, 1]} : vector<2x22x22xf32> to vector<2x16x16xf32>
    %125 = vector.broadcast %123 : f32 to vector<2x16x16xf32>
    %126 = arith.mulf %125, %124 : vector<2x16x16xf32>
    %127 = arith.addf %122, %126 : vector<2x16x16xf32>
    %c20 = arith.constant 20 : index
    %128 = memref.load %arg1[%c20] : memref<98xf32, #tpu.memory_space<smem>>
    %129 = vector.extract_strided_slice %22 {offsets = [0, 2, 6], sizes = [2, 16, 16], strides = [1, 1, 1]} : vector<2x22x22xf32> to vector<2x16x16xf32>
    %130 = vector.broadcast %128 : f32 to vector<2x16x16xf32>
    %131 = arith.mulf %130, %129 : vector<2x16x16xf32>
    %132 = arith.addf %127, %131 : vector<2x16x16xf32>
    %c21 = arith.constant 21 : index
    %133 = memref.load %arg1[%c21] : memref<98xf32, #tpu.memory_space<smem>>
    %134 = vector.extract_strided_slice %22 {offsets = [0, 3, 0], sizes = [2, 16, 16], strides = [1, 1, 1]} : vector<2x22x22xf32> to vector<2x16x16xf32>
    %135 = vector.broadcast %133 : f32 to vector<2x16x16xf32>
    %136 = arith.mulf %135, %134 : vector<2x16x16xf32>
    %137 = arith.addf %132, %136 : vector<2x16x16xf32>
    %c22 = arith.constant 22 : index
    %138 = memref.load %arg1[%c22] : memref<98xf32, #tpu.memory_space<smem>>
    %139 = vector.extract_strided_slice %22 {offsets = [0, 3, 1], sizes = [2, 16, 16], strides = [1, 1, 1]} : vector<2x22x22xf32> to vector<2x16x16xf32>
    %140 = vector.broadcast %138 : f32 to vector<2x16x16xf32>
    %141 = arith.mulf %140, %139 : vector<2x16x16xf32>
    %142 = arith.addf %137, %141 : vector<2x16x16xf32>
    %c23 = arith.constant 23 : index
    %143 = memref.load %arg1[%c23] : memref<98xf32, #tpu.memory_space<smem>>
    %144 = vector.extract_strided_slice %22 {offsets = [0, 3, 2], sizes = [2, 16, 16], strides = [1, 1, 1]} : vector<2x22x22xf32> to vector<2x16x16xf32>
    %145 = vector.broadcast %143 : f32 to vector<2x16x16xf32>
    %146 = arith.mulf %145, %144 : vector<2x16x16xf32>
    %147 = arith.addf %142, %146 : vector<2x16x16xf32>
    %c24 = arith.constant 24 : index
    %148 = memref.load %arg1[%c24] : memref<98xf32, #tpu.memory_space<smem>>
    %149 = vector.extract_strided_slice %22 {offsets = [0, 3, 3], sizes = [2, 16, 16], strides = [1, 1, 1]} : vector<2x22x22xf32> to vector<2x16x16xf32>
    %150 = vector.broadcast %148 : f32 to vector<2x16x16xf32>
    %151 = arith.mulf %150, %149 : vector<2x16x16xf32>
    %152 = arith.addf %147, %151 : vector<2x16x16xf32>
    %c25 = arith.constant 25 : index
    %153 = memref.load %arg1[%c25] : memref<98xf32, #tpu.memory_space<smem>>
    %154 = vector.extract_strided_slice %22 {offsets = [0, 3, 4], sizes = [2, 16, 16], strides = [1, 1, 1]} : vector<2x22x22xf32> to vector<2x16x16xf32>
    %155 = vector.broadcast %153 : f32 to vector<2x16x16xf32>
    %156 = arith.mulf %155, %154 : vector<2x16x16xf32>
    %157 = arith.addf %152, %156 : vector<2x16x16xf32>
    %c26 = arith.constant 26 : index
    %158 = memref.load %arg1[%c26] : memref<98xf32, #tpu.memory_space<smem>>
    %159 = vector.extract_strided_slice %22 {offsets = [0, 3, 5], sizes = [2, 16, 16], strides = [1, 1, 1]} : vector<2x22x22xf32> to vector<2x16x16xf32>
    %160 = vector.broadcast %158 : f32 to vector<2x16x16xf32>
    %161 = arith.mulf %160, %159 : vector<2x16x16xf32>
    %162 = arith.addf %157, %161 : vector<2x16x16xf32>
    %c27 = arith.constant 27 : index
    %163 = memref.load %arg1[%c27] : memref<98xf32, #tpu.memory_space<smem>>
    %164 = vector.extract_strided_slice %22 {offsets = [0, 3, 6], sizes = [2, 16, 16], strides = [1, 1, 1]} : vector<2x22x22xf32> to vector<2x16x16xf32>
    %165 = vector.broadcast %163 : f32 to vector<2x16x16xf32>
    %166 = arith.mulf %165, %164 : vector<2x16x16xf32>
    %167 = arith.addf %162, %166 : vector<2x16x16xf32>
    %c28 = arith.constant 28 : index
    %168 = memref.load %arg1[%c28] : memref<98xf32, #tpu.memory_space<smem>>
    %169 = vector.extract_strided_slice %22 {offsets = [0, 4, 0], sizes = [2, 16, 16], strides = [1, 1, 1]} : vector<2x22x22xf32> to vector<2x16x16xf32>
    %170 = vector.broadcast %168 : f32 to vector<2x16x16xf32>
    %171 = arith.mulf %170, %169 : vector<2x16x16xf32>
    %172 = arith.addf %167, %171 : vector<2x16x16xf32>
    %c29 = arith.constant 29 : index
    %173 = memref.load %arg1[%c29] : memref<98xf32, #tpu.memory_space<smem>>
    %174 = vector.extract_strided_slice %22 {offsets = [0, 4, 1], sizes = [2, 16, 16], strides = [1, 1, 1]} : vector<2x22x22xf32> to vector<2x16x16xf32>
    %175 = vector.broadcast %173 : f32 to vector<2x16x16xf32>
    %176 = arith.mulf %175, %174 : vector<2x16x16xf32>
    %177 = arith.addf %172, %176 : vector<2x16x16xf32>
    %c30 = arith.constant 30 : index
    %178 = memref.load %arg1[%c30] : memref<98xf32, #tpu.memory_space<smem>>
    %179 = vector.extract_strided_slice %22 {offsets = [0, 4, 2], sizes = [2, 16, 16], strides = [1, 1, 1]} : vector<2x22x22xf32> to vector<2x16x16xf32>
    %180 = vector.broadcast %178 : f32 to vector<2x16x16xf32>
    %181 = arith.mulf %180, %179 : vector<2x16x16xf32>
    %182 = arith.addf %177, %181 : vector<2x16x16xf32>
    %c31 = arith.constant 31 : index
    %183 = memref.load %arg1[%c31] : memref<98xf32, #tpu.memory_space<smem>>
    %184 = vector.extract_strided_slice %22 {offsets = [0, 4, 3], sizes = [2, 16, 16], strides = [1, 1, 1]} : vector<2x22x22xf32> to vector<2x16x16xf32>
    %185 = vector.broadcast %183 : f32 to vector<2x16x16xf32>
    %186 = arith.mulf %185, %184 : vector<2x16x16xf32>
    %187 = arith.addf %182, %186 : vector<2x16x16xf32>
    %c32 = arith.constant 32 : index
    %188 = memref.load %arg1[%c32] : memref<98xf32, #tpu.memory_space<smem>>
    %189 = vector.extract_strided_slice %22 {offsets = [0, 4, 4], sizes = [2, 16, 16], strides = [1, 1, 1]} : vector<2x22x22xf32> to vector<2x16x16xf32>
    %190 = vector.broadcast %188 : f32 to vector<2x16x16xf32>
    %191 = arith.mulf %190, %189 : vector<2x16x16xf32>
    %192 = arith.addf %187, %191 : vector<2x16x16xf32>
    %c33 = arith.constant 33 : index
    %193 = memref.load %arg1[%c33] : memref<98xf32, #tpu.memory_space<smem>>
    %194 = vector.extract_strided_slice %22 {offsets = [0, 4, 5], sizes = [2, 16, 16], strides = [1, 1, 1]} : vector<2x22x22xf32> to vector<2x16x16xf32>
    %195 = vector.broadcast %193 : f32 to vector<2x16x16xf32>
    %196 = arith.mulf %195, %194 : vector<2x16x16xf32>
    %197 = arith.addf %192, %196 : vector<2x16x16xf32>
    %c34 = arith.constant 34 : index
    %198 = memref.load %arg1[%c34] : memref<98xf32, #tpu.memory_space<smem>>
    %199 = vector.extract_strided_slice %22 {offsets = [0, 4, 6], sizes = [2, 16, 16], strides = [1, 1, 1]} : vector<2x22x22xf32> to vector<2x16x16xf32>
    %200 = vector.broadcast %198 : f32 to vector<2x16x16xf32>
    %201 = arith.mulf %200, %199 : vector<2x16x16xf32>
    %202 = arith.addf %197, %201 : vector<2x16x16xf32>
    %c35 = arith.constant 35 : index
    %203 = memref.load %arg1[%c35] : memref<98xf32, #tpu.memory_space<smem>>
    %204 = vector.extract_strided_slice %22 {offsets = [0, 5, 0], sizes = [2, 16, 16], strides = [1, 1, 1]} : vector<2x22x22xf32> to vector<2x16x16xf32>
    %205 = vector.broadcast %203 : f32 to vector<2x16x16xf32>
    %206 = arith.mulf %205, %204 : vector<2x16x16xf32>
    %207 = arith.addf %202, %206 : vector<2x16x16xf32>
    %c36 = arith.constant 36 : index
    %208 = memref.load %arg1[%c36] : memref<98xf32, #tpu.memory_space<smem>>
    %209 = vector.extract_strided_slice %22 {offsets = [0, 5, 1], sizes = [2, 16, 16], strides = [1, 1, 1]} : vector<2x22x22xf32> to vector<2x16x16xf32>
    %210 = vector.broadcast %208 : f32 to vector<2x16x16xf32>
    %211 = arith.mulf %210, %209 : vector<2x16x16xf32>
    %212 = arith.addf %207, %211 : vector<2x16x16xf32>
    %c37 = arith.constant 37 : index
    %213 = memref.load %arg1[%c37] : memref<98xf32, #tpu.memory_space<smem>>
    %214 = vector.extract_strided_slice %22 {offsets = [0, 5, 2], sizes = [2, 16, 16], strides = [1, 1, 1]} : vector<2x22x22xf32> to vector<2x16x16xf32>
    %215 = vector.broadcast %213 : f32 to vector<2x16x16xf32>
    %216 = arith.mulf %215, %214 : vector<2x16x16xf32>
    %217 = arith.addf %212, %216 : vector<2x16x16xf32>
    %c38 = arith.constant 38 : index
    %218 = memref.load %arg1[%c38] : memref<98xf32, #tpu.memory_space<smem>>
    %219 = vector.extract_strided_slice %22 {offsets = [0, 5, 3], sizes = [2, 16, 16], strides = [1, 1, 1]} : vector<2x22x22xf32> to vector<2x16x16xf32>
    %220 = vector.broadcast %218 : f32 to vector<2x16x16xf32>
    %221 = arith.mulf %220, %219 : vector<2x16x16xf32>
    %222 = arith.addf %217, %221 : vector<2x16x16xf32>
    %c39 = arith.constant 39 : index
    %223 = memref.load %arg1[%c39] : memref<98xf32, #tpu.memory_space<smem>>
    %224 = vector.extract_strided_slice %22 {offsets = [0, 5, 4], sizes = [2, 16, 16], strides = [1, 1, 1]} : vector<2x22x22xf32> to vector<2x16x16xf32>
    %225 = vector.broadcast %223 : f32 to vector<2x16x16xf32>
    %226 = arith.mulf %225, %224 : vector<2x16x16xf32>
    %227 = arith.addf %222, %226 : vector<2x16x16xf32>
    %c40 = arith.constant 40 : index
    %228 = memref.load %arg1[%c40] : memref<98xf32, #tpu.memory_space<smem>>
    %229 = vector.extract_strided_slice %22 {offsets = [0, 5, 5], sizes = [2, 16, 16], strides = [1, 1, 1]} : vector<2x22x22xf32> to vector<2x16x16xf32>
    %230 = vector.broadcast %228 : f32 to vector<2x16x16xf32>
    %231 = arith.mulf %230, %229 : vector<2x16x16xf32>
    %232 = arith.addf %227, %231 : vector<2x16x16xf32>
    %c41 = arith.constant 41 : index
    %233 = memref.load %arg1[%c41] : memref<98xf32, #tpu.memory_space<smem>>
    %234 = vector.extract_strided_slice %22 {offsets = [0, 5, 6], sizes = [2, 16, 16], strides = [1, 1, 1]} : vector<2x22x22xf32> to vector<2x16x16xf32>
    %235 = vector.broadcast %233 : f32 to vector<2x16x16xf32>
    %236 = arith.mulf %235, %234 : vector<2x16x16xf32>
    %237 = arith.addf %232, %236 : vector<2x16x16xf32>
    %c42 = arith.constant 42 : index
    %238 = memref.load %arg1[%c42] : memref<98xf32, #tpu.memory_space<smem>>
    %239 = vector.extract_strided_slice %22 {offsets = [0, 6, 0], sizes = [2, 16, 16], strides = [1, 1, 1]} : vector<2x22x22xf32> to vector<2x16x16xf32>
    %240 = vector.broadcast %238 : f32 to vector<2x16x16xf32>
    %241 = arith.mulf %240, %239 : vector<2x16x16xf32>
    %242 = arith.addf %237, %241 : vector<2x16x16xf32>
    %c43 = arith.constant 43 : index
    %243 = memref.load %arg1[%c43] : memref<98xf32, #tpu.memory_space<smem>>
    %244 = vector.extract_strided_slice %22 {offsets = [0, 6, 1], sizes = [2, 16, 16], strides = [1, 1, 1]} : vector<2x22x22xf32> to vector<2x16x16xf32>
    %245 = vector.broadcast %243 : f32 to vector<2x16x16xf32>
    %246 = arith.mulf %245, %244 : vector<2x16x16xf32>
    %247 = arith.addf %242, %246 : vector<2x16x16xf32>
    %c44 = arith.constant 44 : index
    %248 = memref.load %arg1[%c44] : memref<98xf32, #tpu.memory_space<smem>>
    %249 = vector.extract_strided_slice %22 {offsets = [0, 6, 2], sizes = [2, 16, 16], strides = [1, 1, 1]} : vector<2x22x22xf32> to vector<2x16x16xf32>
    %250 = vector.broadcast %248 : f32 to vector<2x16x16xf32>
    %251 = arith.mulf %250, %249 : vector<2x16x16xf32>
    %252 = arith.addf %247, %251 : vector<2x16x16xf32>
    %c45 = arith.constant 45 : index
    %253 = memref.load %arg1[%c45] : memref<98xf32, #tpu.memory_space<smem>>
    %254 = vector.extract_strided_slice %22 {offsets = [0, 6, 3], sizes = [2, 16, 16], strides = [1, 1, 1]} : vector<2x22x22xf32> to vector<2x16x16xf32>
    %255 = vector.broadcast %253 : f32 to vector<2x16x16xf32>
    %256 = arith.mulf %255, %254 : vector<2x16x16xf32>
    %257 = arith.addf %252, %256 : vector<2x16x16xf32>
    %c46 = arith.constant 46 : index
    %258 = memref.load %arg1[%c46] : memref<98xf32, #tpu.memory_space<smem>>
    %259 = vector.extract_strided_slice %22 {offsets = [0, 6, 4], sizes = [2, 16, 16], strides = [1, 1, 1]} : vector<2x22x22xf32> to vector<2x16x16xf32>
    %260 = vector.broadcast %258 : f32 to vector<2x16x16xf32>
    %261 = arith.mulf %260, %259 : vector<2x16x16xf32>
    %262 = arith.addf %257, %261 : vector<2x16x16xf32>
    %c47 = arith.constant 47 : index
    %263 = memref.load %arg1[%c47] : memref<98xf32, #tpu.memory_space<smem>>
    %264 = vector.extract_strided_slice %22 {offsets = [0, 6, 5], sizes = [2, 16, 16], strides = [1, 1, 1]} : vector<2x22x22xf32> to vector<2x16x16xf32>
    %265 = vector.broadcast %263 : f32 to vector<2x16x16xf32>
    %266 = arith.mulf %265, %264 : vector<2x16x16xf32>
    %267 = arith.addf %262, %266 : vector<2x16x16xf32>
    %c48 = arith.constant 48 : index
    %268 = memref.load %arg1[%c48] : memref<98xf32, #tpu.memory_space<smem>>
    %269 = vector.extract_strided_slice %22 {offsets = [0, 6, 6], sizes = [2, 16, 16], strides = [1, 1, 1]} : vector<2x22x22xf32> to vector<2x16x16xf32>
    %270 = vector.broadcast %268 : f32 to vector<2x16x16xf32>
    %271 = arith.mulf %270, %269 : vector<2x16x16xf32>
    %272 = arith.addf %267, %271 : vector<2x16x16xf32>
    %c49 = arith.constant 49 : index
    %273 = memref.load %arg1[%c49] : memref<98xf32, #tpu.memory_space<smem>>
    %274 = vector.extract_strided_slice %26 {offsets = [0, 0, 0], sizes = [2, 16, 16], strides = [1, 1, 1]} : vector<2x22x22xf32> to vector<2x16x16xf32>
    %275 = vector.broadcast %273 : f32 to vector<2x16x16xf32>
    %276 = arith.mulf %275, %274 : vector<2x16x16xf32>
    %277 = arith.addf %272, %276 : vector<2x16x16xf32>
    %c50 = arith.constant 50 : index
    %278 = memref.load %arg1[%c50] : memref<98xf32, #tpu.memory_space<smem>>
    %279 = vector.extract_strided_slice %26 {offsets = [0, 0, 1], sizes = [2, 16, 16], strides = [1, 1, 1]} : vector<2x22x22xf32> to vector<2x16x16xf32>
    %280 = vector.broadcast %278 : f32 to vector<2x16x16xf32>
    %281 = arith.mulf %280, %279 : vector<2x16x16xf32>
    %282 = arith.addf %277, %281 : vector<2x16x16xf32>
    %c51 = arith.constant 51 : index
    %283 = memref.load %arg1[%c51] : memref<98xf32, #tpu.memory_space<smem>>
    %284 = vector.extract_strided_slice %26 {offsets = [0, 0, 2], sizes = [2, 16, 16], strides = [1, 1, 1]} : vector<2x22x22xf32> to vector<2x16x16xf32>
    %285 = vector.broadcast %283 : f32 to vector<2x16x16xf32>
    %286 = arith.mulf %285, %284 : vector<2x16x16xf32>
    %287 = arith.addf %282, %286 : vector<2x16x16xf32>
    %c52 = arith.constant 52 : index
    %288 = memref.load %arg1[%c52] : memref<98xf32, #tpu.memory_space<smem>>
    %289 = vector.extract_strided_slice %26 {offsets = [0, 0, 3], sizes = [2, 16, 16], strides = [1, 1, 1]} : vector<2x22x22xf32> to vector<2x16x16xf32>
    %290 = vector.broadcast %288 : f32 to vector<2x16x16xf32>
    %291 = arith.mulf %290, %289 : vector<2x16x16xf32>
    %292 = arith.addf %287, %291 : vector<2x16x16xf32>
    %c53 = arith.constant 53 : index
    %293 = memref.load %arg1[%c53] : memref<98xf32, #tpu.memory_space<smem>>
    %294 = vector.extract_strided_slice %26 {offsets = [0, 0, 4], sizes = [2, 16, 16], strides = [1, 1, 1]} : vector<2x22x22xf32> to vector<2x16x16xf32>
    %295 = vector.broadcast %293 : f32 to vector<2x16x16xf32>
    %296 = arith.mulf %295, %294 : vector<2x16x16xf32>
    %297 = arith.addf %292, %296 : vector<2x16x16xf32>
    %c54 = arith.constant 54 : index
    %298 = memref.load %arg1[%c54] : memref<98xf32, #tpu.memory_space<smem>>
    %299 = vector.extract_strided_slice %26 {offsets = [0, 0, 5], sizes = [2, 16, 16], strides = [1, 1, 1]} : vector<2x22x22xf32> to vector<2x16x16xf32>
    %300 = vector.broadcast %298 : f32 to vector<2x16x16xf32>
    %301 = arith.mulf %300, %299 : vector<2x16x16xf32>
    %302 = arith.addf %297, %301 : vector<2x16x16xf32>
    %c55 = arith.constant 55 : index
    %303 = memref.load %arg1[%c55] : memref<98xf32, #tpu.memory_space<smem>>
    %304 = vector.extract_strided_slice %26 {offsets = [0, 0, 6], sizes = [2, 16, 16], strides = [1, 1, 1]} : vector<2x22x22xf32> to vector<2x16x16xf32>
    %305 = vector.broadcast %303 : f32 to vector<2x16x16xf32>
    %306 = arith.mulf %305, %304 : vector<2x16x16xf32>
    %307 = arith.addf %302, %306 : vector<2x16x16xf32>
    %c56 = arith.constant 56 : index
    %308 = memref.load %arg1[%c56] : memref<98xf32, #tpu.memory_space<smem>>
    %309 = vector.extract_strided_slice %26 {offsets = [0, 1, 0], sizes = [2, 16, 16], strides = [1, 1, 1]} : vector<2x22x22xf32> to vector<2x16x16xf32>
    %310 = vector.broadcast %308 : f32 to vector<2x16x16xf32>
    %311 = arith.mulf %310, %309 : vector<2x16x16xf32>
    %312 = arith.addf %307, %311 : vector<2x16x16xf32>
    %c57 = arith.constant 57 : index
    %313 = memref.load %arg1[%c57] : memref<98xf32, #tpu.memory_space<smem>>
    %314 = vector.extract_strided_slice %26 {offsets = [0, 1, 1], sizes = [2, 16, 16], strides = [1, 1, 1]} : vector<2x22x22xf32> to vector<2x16x16xf32>
    %315 = vector.broadcast %313 : f32 to vector<2x16x16xf32>
    %316 = arith.mulf %315, %314 : vector<2x16x16xf32>
    %317 = arith.addf %312, %316 : vector<2x16x16xf32>
    %c58 = arith.constant 58 : index
    %318 = memref.load %arg1[%c58] : memref<98xf32, #tpu.memory_space<smem>>
    %319 = vector.extract_strided_slice %26 {offsets = [0, 1, 2], sizes = [2, 16, 16], strides = [1, 1, 1]} : vector<2x22x22xf32> to vector<2x16x16xf32>
    %320 = vector.broadcast %318 : f32 to vector<2x16x16xf32>
    %321 = arith.mulf %320, %319 : vector<2x16x16xf32>
    %322 = arith.addf %317, %321 : vector<2x16x16xf32>
    %c59 = arith.constant 59 : index
    %323 = memref.load %arg1[%c59] : memref<98xf32, #tpu.memory_space<smem>>
    %324 = vector.extract_strided_slice %26 {offsets = [0, 1, 3], sizes = [2, 16, 16], strides = [1, 1, 1]} : vector<2x22x22xf32> to vector<2x16x16xf32>
    %325 = vector.broadcast %323 : f32 to vector<2x16x16xf32>
    %326 = arith.mulf %325, %324 : vector<2x16x16xf32>
    %327 = arith.addf %322, %326 : vector<2x16x16xf32>
    %c60 = arith.constant 60 : index
    %328 = memref.load %arg1[%c60] : memref<98xf32, #tpu.memory_space<smem>>
    %329 = vector.extract_strided_slice %26 {offsets = [0, 1, 4], sizes = [2, 16, 16], strides = [1, 1, 1]} : vector<2x22x22xf32> to vector<2x16x16xf32>
    %330 = vector.broadcast %328 : f32 to vector<2x16x16xf32>
    %331 = arith.mulf %330, %329 : vector<2x16x16xf32>
    %332 = arith.addf %327, %331 : vector<2x16x16xf32>
    %c61 = arith.constant 61 : index
    %333 = memref.load %arg1[%c61] : memref<98xf32, #tpu.memory_space<smem>>
    %334 = vector.extract_strided_slice %26 {offsets = [0, 1, 5], sizes = [2, 16, 16], strides = [1, 1, 1]} : vector<2x22x22xf32> to vector<2x16x16xf32>
    %335 = vector.broadcast %333 : f32 to vector<2x16x16xf32>
    %336 = arith.mulf %335, %334 : vector<2x16x16xf32>
    %337 = arith.addf %332, %336 : vector<2x16x16xf32>
    %c62 = arith.constant 62 : index
    %338 = memref.load %arg1[%c62] : memref<98xf32, #tpu.memory_space<smem>>
    %339 = vector.extract_strided_slice %26 {offsets = [0, 1, 6], sizes = [2, 16, 16], strides = [1, 1, 1]} : vector<2x22x22xf32> to vector<2x16x16xf32>
    %340 = vector.broadcast %338 : f32 to vector<2x16x16xf32>
    %341 = arith.mulf %340, %339 : vector<2x16x16xf32>
    %342 = arith.addf %337, %341 : vector<2x16x16xf32>
    %c63 = arith.constant 63 : index
    %343 = memref.load %arg1[%c63] : memref<98xf32, #tpu.memory_space<smem>>
    %344 = vector.extract_strided_slice %26 {offsets = [0, 2, 0], sizes = [2, 16, 16], strides = [1, 1, 1]} : vector<2x22x22xf32> to vector<2x16x16xf32>
    %345 = vector.broadcast %343 : f32 to vector<2x16x16xf32>
    %346 = arith.mulf %345, %344 : vector<2x16x16xf32>
    %347 = arith.addf %342, %346 : vector<2x16x16xf32>
    %c64 = arith.constant 64 : index
    %348 = memref.load %arg1[%c64] : memref<98xf32, #tpu.memory_space<smem>>
    %349 = vector.extract_strided_slice %26 {offsets = [0, 2, 1], sizes = [2, 16, 16], strides = [1, 1, 1]} : vector<2x22x22xf32> to vector<2x16x16xf32>
    %350 = vector.broadcast %348 : f32 to vector<2x16x16xf32>
    %351 = arith.mulf %350, %349 : vector<2x16x16xf32>
    %352 = arith.addf %347, %351 : vector<2x16x16xf32>
    %c65 = arith.constant 65 : index
    %353 = memref.load %arg1[%c65] : memref<98xf32, #tpu.memory_space<smem>>
    %354 = vector.extract_strided_slice %26 {offsets = [0, 2, 2], sizes = [2, 16, 16], strides = [1, 1, 1]} : vector<2x22x22xf32> to vector<2x16x16xf32>
    %355 = vector.broadcast %353 : f32 to vector<2x16x16xf32>
    %356 = arith.mulf %355, %354 : vector<2x16x16xf32>
    %357 = arith.addf %352, %356 : vector<2x16x16xf32>
    %c66 = arith.constant 66 : index
    %358 = memref.load %arg1[%c66] : memref<98xf32, #tpu.memory_space<smem>>
    %359 = vector.extract_strided_slice %26 {offsets = [0, 2, 3], sizes = [2, 16, 16], strides = [1, 1, 1]} : vector<2x22x22xf32> to vector<2x16x16xf32>
    %360 = vector.broadcast %358 : f32 to vector<2x16x16xf32>
    %361 = arith.mulf %360, %359 : vector<2x16x16xf32>
    %362 = arith.addf %357, %361 : vector<2x16x16xf32>
    %c67 = arith.constant 67 : index
    %363 = memref.load %arg1[%c67] : memref<98xf32, #tpu.memory_space<smem>>
    %364 = vector.extract_strided_slice %26 {offsets = [0, 2, 4], sizes = [2, 16, 16], strides = [1, 1, 1]} : vector<2x22x22xf32> to vector<2x16x16xf32>
    %365 = vector.broadcast %363 : f32 to vector<2x16x16xf32>
    %366 = arith.mulf %365, %364 : vector<2x16x16xf32>
    %367 = arith.addf %362, %366 : vector<2x16x16xf32>
    %c68 = arith.constant 68 : index
    %368 = memref.load %arg1[%c68] : memref<98xf32, #tpu.memory_space<smem>>
    %369 = vector.extract_strided_slice %26 {offsets = [0, 2, 5], sizes = [2, 16, 16], strides = [1, 1, 1]} : vector<2x22x22xf32> to vector<2x16x16xf32>
    %370 = vector.broadcast %368 : f32 to vector<2x16x16xf32>
    %371 = arith.mulf %370, %369 : vector<2x16x16xf32>
    %372 = arith.addf %367, %371 : vector<2x16x16xf32>
    %c69 = arith.constant 69 : index
    %373 = memref.load %arg1[%c69] : memref<98xf32, #tpu.memory_space<smem>>
    %374 = vector.extract_strided_slice %26 {offsets = [0, 2, 6], sizes = [2, 16, 16], strides = [1, 1, 1]} : vector<2x22x22xf32> to vector<2x16x16xf32>
    %375 = vector.broadcast %373 : f32 to vector<2x16x16xf32>
    %376 = arith.mulf %375, %374 : vector<2x16x16xf32>
    %377 = arith.addf %372, %376 : vector<2x16x16xf32>
    %c70 = arith.constant 70 : index
    %378 = memref.load %arg1[%c70] : memref<98xf32, #tpu.memory_space<smem>>
    %379 = vector.extract_strided_slice %26 {offsets = [0, 3, 0], sizes = [2, 16, 16], strides = [1, 1, 1]} : vector<2x22x22xf32> to vector<2x16x16xf32>
    %380 = vector.broadcast %378 : f32 to vector<2x16x16xf32>
    %381 = arith.mulf %380, %379 : vector<2x16x16xf32>
    %382 = arith.addf %377, %381 : vector<2x16x16xf32>
    %c71 = arith.constant 71 : index
    %383 = memref.load %arg1[%c71] : memref<98xf32, #tpu.memory_space<smem>>
    %384 = vector.extract_strided_slice %26 {offsets = [0, 3, 1], sizes = [2, 16, 16], strides = [1, 1, 1]} : vector<2x22x22xf32> to vector<2x16x16xf32>
    %385 = vector.broadcast %383 : f32 to vector<2x16x16xf32>
    %386 = arith.mulf %385, %384 : vector<2x16x16xf32>
    %387 = arith.addf %382, %386 : vector<2x16x16xf32>
    %c72 = arith.constant 72 : index
    %388 = memref.load %arg1[%c72] : memref<98xf32, #tpu.memory_space<smem>>
    %389 = vector.extract_strided_slice %26 {offsets = [0, 3, 2], sizes = [2, 16, 16], strides = [1, 1, 1]} : vector<2x22x22xf32> to vector<2x16x16xf32>
    %390 = vector.broadcast %388 : f32 to vector<2x16x16xf32>
    %391 = arith.mulf %390, %389 : vector<2x16x16xf32>
    %392 = arith.addf %387, %391 : vector<2x16x16xf32>
    %c73 = arith.constant 73 : index
    %393 = memref.load %arg1[%c73] : memref<98xf32, #tpu.memory_space<smem>>
    %394 = vector.extract_strided_slice %26 {offsets = [0, 3, 3], sizes = [2, 16, 16], strides = [1, 1, 1]} : vector<2x22x22xf32> to vector<2x16x16xf32>
    %395 = vector.broadcast %393 : f32 to vector<2x16x16xf32>
    %396 = arith.mulf %395, %394 : vector<2x16x16xf32>
    %397 = arith.addf %392, %396 : vector<2x16x16xf32>
    %c74 = arith.constant 74 : index
    %398 = memref.load %arg1[%c74] : memref<98xf32, #tpu.memory_space<smem>>
    %399 = vector.extract_strided_slice %26 {offsets = [0, 3, 4], sizes = [2, 16, 16], strides = [1, 1, 1]} : vector<2x22x22xf32> to vector<2x16x16xf32>
    %400 = vector.broadcast %398 : f32 to vector<2x16x16xf32>
    %401 = arith.mulf %400, %399 : vector<2x16x16xf32>
    %402 = arith.addf %397, %401 : vector<2x16x16xf32>
    %c75 = arith.constant 75 : index
    %403 = memref.load %arg1[%c75] : memref<98xf32, #tpu.memory_space<smem>>
    %404 = vector.extract_strided_slice %26 {offsets = [0, 3, 5], sizes = [2, 16, 16], strides = [1, 1, 1]} : vector<2x22x22xf32> to vector<2x16x16xf32>
    %405 = vector.broadcast %403 : f32 to vector<2x16x16xf32>
    %406 = arith.mulf %405, %404 : vector<2x16x16xf32>
    %407 = arith.addf %402, %406 : vector<2x16x16xf32>
    %c76 = arith.constant 76 : index
    %408 = memref.load %arg1[%c76] : memref<98xf32, #tpu.memory_space<smem>>
    %409 = vector.extract_strided_slice %26 {offsets = [0, 3, 6], sizes = [2, 16, 16], strides = [1, 1, 1]} : vector<2x22x22xf32> to vector<2x16x16xf32>
    %410 = vector.broadcast %408 : f32 to vector<2x16x16xf32>
    %411 = arith.mulf %410, %409 : vector<2x16x16xf32>
    %412 = arith.addf %407, %411 : vector<2x16x16xf32>
    %c77 = arith.constant 77 : index
    %413 = memref.load %arg1[%c77] : memref<98xf32, #tpu.memory_space<smem>>
    %414 = vector.extract_strided_slice %26 {offsets = [0, 4, 0], sizes = [2, 16, 16], strides = [1, 1, 1]} : vector<2x22x22xf32> to vector<2x16x16xf32>
    %415 = vector.broadcast %413 : f32 to vector<2x16x16xf32>
    %416 = arith.mulf %415, %414 : vector<2x16x16xf32>
    %417 = arith.addf %412, %416 : vector<2x16x16xf32>
    %c78 = arith.constant 78 : index
    %418 = memref.load %arg1[%c78] : memref<98xf32, #tpu.memory_space<smem>>
    %419 = vector.extract_strided_slice %26 {offsets = [0, 4, 1], sizes = [2, 16, 16], strides = [1, 1, 1]} : vector<2x22x22xf32> to vector<2x16x16xf32>
    %420 = vector.broadcast %418 : f32 to vector<2x16x16xf32>
    %421 = arith.mulf %420, %419 : vector<2x16x16xf32>
    %422 = arith.addf %417, %421 : vector<2x16x16xf32>
    %c79 = arith.constant 79 : index
    %423 = memref.load %arg1[%c79] : memref<98xf32, #tpu.memory_space<smem>>
    %424 = vector.extract_strided_slice %26 {offsets = [0, 4, 2], sizes = [2, 16, 16], strides = [1, 1, 1]} : vector<2x22x22xf32> to vector<2x16x16xf32>
    %425 = vector.broadcast %423 : f32 to vector<2x16x16xf32>
    %426 = arith.mulf %425, %424 : vector<2x16x16xf32>
    %427 = arith.addf %422, %426 : vector<2x16x16xf32>
    %c80 = arith.constant 80 : index
    %428 = memref.load %arg1[%c80] : memref<98xf32, #tpu.memory_space<smem>>
    %429 = vector.extract_strided_slice %26 {offsets = [0, 4, 3], sizes = [2, 16, 16], strides = [1, 1, 1]} : vector<2x22x22xf32> to vector<2x16x16xf32>
    %430 = vector.broadcast %428 : f32 to vector<2x16x16xf32>
    %431 = arith.mulf %430, %429 : vector<2x16x16xf32>
    %432 = arith.addf %427, %431 : vector<2x16x16xf32>
    %c81 = arith.constant 81 : index
    %433 = memref.load %arg1[%c81] : memref<98xf32, #tpu.memory_space<smem>>
    %434 = vector.extract_strided_slice %26 {offsets = [0, 4, 4], sizes = [2, 16, 16], strides = [1, 1, 1]} : vector<2x22x22xf32> to vector<2x16x16xf32>
    %435 = vector.broadcast %433 : f32 to vector<2x16x16xf32>
    %436 = arith.mulf %435, %434 : vector<2x16x16xf32>
    %437 = arith.addf %432, %436 : vector<2x16x16xf32>
    %c82 = arith.constant 82 : index
    %438 = memref.load %arg1[%c82] : memref<98xf32, #tpu.memory_space<smem>>
    %439 = vector.extract_strided_slice %26 {offsets = [0, 4, 5], sizes = [2, 16, 16], strides = [1, 1, 1]} : vector<2x22x22xf32> to vector<2x16x16xf32>
    %440 = vector.broadcast %438 : f32 to vector<2x16x16xf32>
    %441 = arith.mulf %440, %439 : vector<2x16x16xf32>
    %442 = arith.addf %437, %441 : vector<2x16x16xf32>
    %c83 = arith.constant 83 : index
    %443 = memref.load %arg1[%c83] : memref<98xf32, #tpu.memory_space<smem>>
    %444 = vector.extract_strided_slice %26 {offsets = [0, 4, 6], sizes = [2, 16, 16], strides = [1, 1, 1]} : vector<2x22x22xf32> to vector<2x16x16xf32>
    %445 = vector.broadcast %443 : f32 to vector<2x16x16xf32>
    %446 = arith.mulf %445, %444 : vector<2x16x16xf32>
    %447 = arith.addf %442, %446 : vector<2x16x16xf32>
    %c84 = arith.constant 84 : index
    %448 = memref.load %arg1[%c84] : memref<98xf32, #tpu.memory_space<smem>>
    %449 = vector.extract_strided_slice %26 {offsets = [0, 5, 0], sizes = [2, 16, 16], strides = [1, 1, 1]} : vector<2x22x22xf32> to vector<2x16x16xf32>
    %450 = vector.broadcast %448 : f32 to vector<2x16x16xf32>
    %451 = arith.mulf %450, %449 : vector<2x16x16xf32>
    %452 = arith.addf %447, %451 : vector<2x16x16xf32>
    %c85 = arith.constant 85 : index
    %453 = memref.load %arg1[%c85] : memref<98xf32, #tpu.memory_space<smem>>
    %454 = vector.extract_strided_slice %26 {offsets = [0, 5, 1], sizes = [2, 16, 16], strides = [1, 1, 1]} : vector<2x22x22xf32> to vector<2x16x16xf32>
    %455 = vector.broadcast %453 : f32 to vector<2x16x16xf32>
    %456 = arith.mulf %455, %454 : vector<2x16x16xf32>
    %457 = arith.addf %452, %456 : vector<2x16x16xf32>
    %c86 = arith.constant 86 : index
    %458 = memref.load %arg1[%c86] : memref<98xf32, #tpu.memory_space<smem>>
    %459 = vector.extract_strided_slice %26 {offsets = [0, 5, 2], sizes = [2, 16, 16], strides = [1, 1, 1]} : vector<2x22x22xf32> to vector<2x16x16xf32>
    %460 = vector.broadcast %458 : f32 to vector<2x16x16xf32>
    %461 = arith.mulf %460, %459 : vector<2x16x16xf32>
    %462 = arith.addf %457, %461 : vector<2x16x16xf32>
    %c87 = arith.constant 87 : index
    %463 = memref.load %arg1[%c87] : memref<98xf32, #tpu.memory_space<smem>>
    %464 = vector.extract_strided_slice %26 {offsets = [0, 5, 3], sizes = [2, 16, 16], strides = [1, 1, 1]} : vector<2x22x22xf32> to vector<2x16x16xf32>
    %465 = vector.broadcast %463 : f32 to vector<2x16x16xf32>
    %466 = arith.mulf %465, %464 : vector<2x16x16xf32>
    %467 = arith.addf %462, %466 : vector<2x16x16xf32>
    %c88 = arith.constant 88 : index
    %468 = memref.load %arg1[%c88] : memref<98xf32, #tpu.memory_space<smem>>
    %469 = vector.extract_strided_slice %26 {offsets = [0, 5, 4], sizes = [2, 16, 16], strides = [1, 1, 1]} : vector<2x22x22xf32> to vector<2x16x16xf32>
    %470 = vector.broadcast %468 : f32 to vector<2x16x16xf32>
    %471 = arith.mulf %470, %469 : vector<2x16x16xf32>
    %472 = arith.addf %467, %471 : vector<2x16x16xf32>
    %c89 = arith.constant 89 : index
    %473 = memref.load %arg1[%c89] : memref<98xf32, #tpu.memory_space<smem>>
    %474 = vector.extract_strided_slice %26 {offsets = [0, 5, 5], sizes = [2, 16, 16], strides = [1, 1, 1]} : vector<2x22x22xf32> to vector<2x16x16xf32>
    %475 = vector.broadcast %473 : f32 to vector<2x16x16xf32>
    %476 = arith.mulf %475, %474 : vector<2x16x16xf32>
    %477 = arith.addf %472, %476 : vector<2x16x16xf32>
    %c90 = arith.constant 90 : index
    %478 = memref.load %arg1[%c90] : memref<98xf32, #tpu.memory_space<smem>>
    %479 = vector.extract_strided_slice %26 {offsets = [0, 5, 6], sizes = [2, 16, 16], strides = [1, 1, 1]} : vector<2x22x22xf32> to vector<2x16x16xf32>
    %480 = vector.broadcast %478 : f32 to vector<2x16x16xf32>
    %481 = arith.mulf %480, %479 : vector<2x16x16xf32>
    %482 = arith.addf %477, %481 : vector<2x16x16xf32>
    %c91 = arith.constant 91 : index
    %483 = memref.load %arg1[%c91] : memref<98xf32, #tpu.memory_space<smem>>
    %484 = vector.extract_strided_slice %26 {offsets = [0, 6, 0], sizes = [2, 16, 16], strides = [1, 1, 1]} : vector<2x22x22xf32> to vector<2x16x16xf32>
    %485 = vector.broadcast %483 : f32 to vector<2x16x16xf32>
    %486 = arith.mulf %485, %484 : vector<2x16x16xf32>
    %487 = arith.addf %482, %486 : vector<2x16x16xf32>
    %c92 = arith.constant 92 : index
    %488 = memref.load %arg1[%c92] : memref<98xf32, #tpu.memory_space<smem>>
    %489 = vector.extract_strided_slice %26 {offsets = [0, 6, 1], sizes = [2, 16, 16], strides = [1, 1, 1]} : vector<2x22x22xf32> to vector<2x16x16xf32>
    %490 = vector.broadcast %488 : f32 to vector<2x16x16xf32>
    %491 = arith.mulf %490, %489 : vector<2x16x16xf32>
    %492 = arith.addf %487, %491 : vector<2x16x16xf32>
    %c93 = arith.constant 93 : index
    %493 = memref.load %arg1[%c93] : memref<98xf32, #tpu.memory_space<smem>>
    %494 = vector.extract_strided_slice %26 {offsets = [0, 6, 2], sizes = [2, 16, 16], strides = [1, 1, 1]} : vector<2x22x22xf32> to vector<2x16x16xf32>
    %495 = vector.broadcast %493 : f32 to vector<2x16x16xf32>
    %496 = arith.mulf %495, %494 : vector<2x16x16xf32>
    %497 = arith.addf %492, %496 : vector<2x16x16xf32>
    %c94 = arith.constant 94 : index
    %498 = memref.load %arg1[%c94] : memref<98xf32, #tpu.memory_space<smem>>
    %499 = vector.extract_strided_slice %26 {offsets = [0, 6, 3], sizes = [2, 16, 16], strides = [1, 1, 1]} : vector<2x22x22xf32> to vector<2x16x16xf32>
    %500 = vector.broadcast %498 : f32 to vector<2x16x16xf32>
    %501 = arith.mulf %500, %499 : vector<2x16x16xf32>
    %502 = arith.addf %497, %501 : vector<2x16x16xf32>
    %c95 = arith.constant 95 : index
    %503 = memref.load %arg1[%c95] : memref<98xf32, #tpu.memory_space<smem>>
    %504 = vector.extract_strided_slice %26 {offsets = [0, 6, 4], sizes = [2, 16, 16], strides = [1, 1, 1]} : vector<2x22x22xf32> to vector<2x16x16xf32>
    %505 = vector.broadcast %503 : f32 to vector<2x16x16xf32>
    %506 = arith.mulf %505, %504 : vector<2x16x16xf32>
    %507 = arith.addf %502, %506 : vector<2x16x16xf32>
    %c96 = arith.constant 96 : index
    %508 = memref.load %arg1[%c96] : memref<98xf32, #tpu.memory_space<smem>>
    %509 = vector.extract_strided_slice %26 {offsets = [0, 6, 5], sizes = [2, 16, 16], strides = [1, 1, 1]} : vector<2x22x22xf32> to vector<2x16x16xf32>
    %510 = vector.broadcast %508 : f32 to vector<2x16x16xf32>
    %511 = arith.mulf %510, %509 : vector<2x16x16xf32>
    %512 = arith.addf %507, %511 : vector<2x16x16xf32>
    %c97 = arith.constant 97 : index
    %513 = memref.load %arg1[%c97] : memref<98xf32, #tpu.memory_space<smem>>
    %514 = vector.extract_strided_slice %26 {offsets = [0, 6, 6], sizes = [2, 16, 16], strides = [1, 1, 1]} : vector<2x22x22xf32> to vector<2x16x16xf32>
    %515 = vector.broadcast %513 : f32 to vector<2x16x16xf32>
    %516 = arith.mulf %515, %514 : vector<2x16x16xf32>
    %517 = arith.addf %512, %516 : vector<2x16x16xf32>
    %cst_9 = arith.constant 0.000000e+00 : f32
    %518 = vector.broadcast %cst_9 : f32 to vector<2x16x16xf32>
    %519 = arith.subf %518, %517 : vector<2x16x16xf32>
    %520 = math.exp %519 : vector<2x16x16xf32>
    %cst_10 = arith.constant 1.000000e+00 : f32
    %521 = vector.broadcast %cst_10 : f32 to vector<2x16x16xf32>
    %522 = arith.addf %521, %520 : vector<2x16x16xf32>
    %cst_11 = arith.constant 1.000000e+00 : f32
    %523 = vector.broadcast %cst_11 : f32 to vector<2x16x16xf32>
    %524 = arith.divf %523, %522 : vector<2x16x16xf32>
    %525 = vector.shape_cast %524 : vector<2x16x16xf32> to vector<2x1x16x16xf32>
    %c0_12 = arith.constant 0 : index
    %c0_13 = arith.constant 0 : index
    %c0_14 = arith.constant 0 : index
    %c0_15 = arith.constant 0 : index
    %526 = vector.load %arg3[%c0_12, %c0_13, %c0_14, %c0_15] : memref<2x1x16x16xf32, #tpu.memory_space<vmem>>, vector<2x1x16x16xf32>
    tpu.vector_store %arg3[%c0_12, %c0_13, %c0_14, %c0_15], %525 {strides = array<i32>} : memref<2x1x16x16xf32, #tpu.memory_space<vmem>>, vector<2x1x16x16xf32>,
    return
  }
  func.func @transform_0(%arg0: i32) -> i32 {
    %c0_i32 = arith.constant 0 : i32
    %c0_i32_0 = arith.constant 0 : i32
    return %c0_i32 : i32
  }
  func.func @transform_1(%arg0: i32) -> (i32, i32, i32, i32) {
    %c0_i32 = arith.constant 0 : i32
    %c0_i32_0 = arith.constant 0 : i32
    %c0_i32_1 = arith.constant 0 : i32
    %c0_i32_2 = arith.constant 0 : i32
    return %arg0, %c0_i32, %c0_i32_0, %c0_i32_1 : i32, i32, i32, i32
  }
  func.func @transform_2(%arg0: i32) -> (i32, i32, i32, i32) {
    %c0_i32 = arith.constant 0 : i32
    %c0_i32_0 = arith.constant 0 : i32
    %c0_i32_1 = arith.constant 0 : i32
    %c0_i32_2 = arith.constant 0 : i32
    return %arg0, %c0_i32, %c0_i32_0, %c0_i32_1 : i32, i32, i32, i32
  }
}

</mosaic_0001>

<llo_original>
// kernel: tpu_custom_call.1
$region0: #{tpu_custom_call.1}
  #allocation0 [shape = 'u32[]', space=smem, size = 0x4, offset = 0x4, fixed_abs, tag = 'smem constant byte address 0x4 - core index']
  #allocation1 [shape = 'u32[72,128]{1,0:T(1,128)}', space=vmem, size = 0x9000, scoped, tag = 'internal scratch']
  %s0 = inlined_call_operand.hbm [shape: f32[98], index: 0, kind: input, shape index: {}]
  %s1 = inlined_call_operand.hbm [shape: f32[2,4,16,16], index: 1, kind: input, shape index: {}]
  %s2 = inlined_call_operand.hbm [shape: f32[2,1,16,16], index: 2, kind: output, shape index: {}]
  %s3 = sld [smem:[#allocation0]]
  $region26: #{tpu_custom_call.1} parent=0
    _
  %s5 = ssub.s32 1, %s3
  %s6 = scalar_select 0, %s5, %s3
  $region1: #{tpu_custom_call.1} parent=0
    #allocation2 [shape = 'u8[512]{0}', space=smem, size = 0x200, scoped, tag = 'input window, operand 0, single buffered']
    #allocation3 [shape = 's32[1]{0}', space=sflag, size = 0x4, scoped, tag = 'scoped memory for tpu_custom_call.1']
    #allocation4 [shape = 's32[1]{0}', space=sflag, size = 0x4, scoped, tag = 'scoped memory for tpu_custom_call.1']
    #allocation5 [shape = 's32[1]{0}', space=sflag, size = 0x4, scoped, tag = 'scoped memory for tpu_custom_call.1']
    #allocation6 [shape = 'u8[65536]{0}', space=vmem, size = 0x10000, scoped, tag = 'input window, operand 1, single buffered']
    #allocation7 [shape = 'u8[16384]{0}', space=vmem, size = 0x4000, scoped, tag = 'output window, operand 0, single buffered']
    %7 = vsyncpa [#allocation5], 0
    %8 = vsyncpa [#allocation3], 0
    %9 = vsyncpa [#allocation4], 0
    // Predicated region
    $region2: #{tpu_custom_call.1} parent=1 // pred_check
      _
    $region3: #{tpu_custom_call.1} parent=1 // pred_check_branch
      %11 = sbr.rel (0) target = $region5
    $region4: #{tpu_custom_call.1} parent=1 // pred_region
      %13 = vsyncadd [#allocation5], 0
      %s15 = sshll.u32 %s0, 4
      %s16 = int_to_ptr.hbm [resolvable:$true] %s15
      %18 = dma.hbm_to_smem %s16, 16, [#allocation2], [#allocation5]
    $region5: #{tpu_custom_call.1} parent=1 // pred_fallthru
      _
    // Predicated region
    $region6: #{tpu_custom_call.1} parent=1 // pred_check
      _
    $region7: #{tpu_custom_call.1} parent=1 // pred_check_branch
      %20 = sbr.rel (0) target = $region9
    $region8: #{tpu_custom_call.1} parent=1 // pred_region
      %22 = vsyncadd [#allocation3], 0
      %s23 = sshll.u32 %s1, 4
      %s24 = int_to_ptr.hbm [resolvable:$true] %s23
      %s25 = sshll.u32 [#allocation6], 4
      %s26 = int_to_ptr.vmem [resolvable:$true] %s25
      %31 = dma.hbm_to_vmem [thread:$0]  %s24, 2048, %s26, [#allocation3], 128, 128, 8
    $region9: #{tpu_custom_call.1} parent=1 // pred_fallthru
      _
    // Predicated region
    $region10: #{tpu_custom_call.1} parent=1 // pred_check
      _
    $region11: #{tpu_custom_call.1} parent=1 // pred_check_branch
      %33 = sbr.rel (0) target = $region13
    $region12: #{tpu_custom_call.1} parent=1 // pred_region
      %35 = dma.done [#allocation5], 16
    $region13: #{tpu_custom_call.1} parent=1 // pred_fallthru
      _
    // Predicated region
    $region14: #{tpu_custom_call.1} parent=1 // pred_check
      _
    $region15: #{tpu_custom_call.1} parent=1 // pred_check_branch
      %37 = sbr.rel (0) target = $region17
    $region16: #{tpu_custom_call.1} parent=1 // pred_region
      %39 = dma.done [#allocation3], 2048
    $region17: #{tpu_custom_call.1} parent=1 // pred_fallthru
      _
    %40 = sfence
    %v41 = vld [vmem:[#allocation6] sm:$0xff]
    %v42 = vld [vmem:[#allocation6 + $0x8] sm:$0xff]
    %v43 = vld [vmem:[#allocation6 + $0x10] sm:$0xff]
    %v44 = vld [vmem:[#allocation6 + $0x18] sm:$0xff]
    %v45 = vld [vmem:[#allocation6 + $0x20] sm:$0xff]
    %v46 = vld [vmem:[#allocation6 + $0x28] sm:$0xff]
    %v47 = vld [vmem:[#allocation6 + $0x30] sm:$0xff]
    %v48 = vld [vmem:[#allocation6 + $0x38] sm:$0xff]
    %v49 = vld [vmem:[#allocation6 + $0x40] sm:$0xff]
    %v50 = vld [vmem:[#allocation6 + $0x48] sm:$0xff]
    %v51 = vld [vmem:[#allocation6 + $0x50] sm:$0xff]
    %v52 = vld [vmem:[#allocation6 + $0x58] sm:$0xff]
    %v53 = vld [vmem:[#allocation6 + $0x60] sm:$0xff]
    %v54 = vld [vmem:[#allocation6 + $0x68] sm:$0xff]
    %v55 = vld [vmem:[#allocation6 + $0x70] sm:$0xff]
    %v56 = vld [vmem:[#allocation6 + $0x78] sm:$0xff]
    %v57 = vadd.f32 %v41, %v43
    %v58 = vadd.f32 %v42, %v44
    %v59 = vadd.f32 %v49, %v51
    %v60 = vadd.f32 %v50, %v52
    %v61 = vmax.f32 %v41, %v43
    %v62 = vmax.f32 %v42, %v44
    %v63 = vmax.f32 %v49, %v51
    %v64 = vmax.f32 %v50, %v52
    %v65 = vadd.f32 %v57, %v45
    %v66 = vadd.f32 %v58, %v46
    %v67 = vadd.f32 %v59, %v53
    %v68 = vadd.f32 %v60, %v54
    %v69 = vmax.f32 %v61, %v45
    %v70 = vmax.f32 %v62, %v46
    %v71 = vmax.f32 %v63, %v53
    %v72 = vmax.f32 %v64, %v54
    %v73 = vadd.f32 %v65, %v47
    %v74 = vadd.f32 %v66, %v48
    %v75 = vadd.f32 %v67, %v55
    %v76 = vadd.f32 %v68, %v56
    %v77 = vmax.f32 %v69, %v47
    %v78 = vmax.f32 %v70, %v48
    %v79 = vmax.f32 %v71, %v55
    %v80 = vmax.f32 %v72, %v56
    %v81 = vmul.f32 %v73, 0.25
    %v82 = vmul.f32 %v74, 0.25
    %v83 = vmul.f32 %v75, 0.25
    %v84 = vmul.f32 %v76, 0.25
    %89 = vrot.lane.b32.xlu0 %v81, 3
    %v90 = vpop.permute.xlu0 %89
    %91 = vrot.lane.b32.xlu0 %v82, 3
    %v92 = vpop.permute.xlu0 %91
    %93 = vrot.lane.b32.xlu0 %v83, 3
    %v94 = vpop.permute.xlu0 %93
    %95 = vrot.lane.b32.xlu0 %v84, 3
    %v96 = vpop.permute.xlu0 %95
    %vm101 = vcmask 23552
    %v102 = vsel %vm101, 0.0, %v90
    %v103 = vsel %vm101, 0.0, %v92
    %v104 = vsel %vm101, 0.0, %v94
    %v105 = vsel %vm101, 0.0, %v96
    %vm106 = vcmask 154624
    %v107 = vsel %vm106, %v102, 0.0
    %v108 = vsel %vm106, %v103, 0.0
    %v109 = vsel %vm106, %v104, 0.0
    %v110 = vsel %vm106, %v105, 0.0
    %vm115 = vcmask 1042432
    %v116 = vrot.slane %v107, 5
    %v117 = vrot.slane %v108, 5
    %v118 = vsel %vm115, %v116, %v117
    %v119 = vrot.slane %v109, 5
    %v120 = vrot.slane %v110, 5
    %v121 = vsel %vm115, %v119, %v120
    %v128 = vsel %vm115, 0.0, %v116
    %v129 = vsel %vm115, 0.0, %v119
    %v130 = vsel %vm115, %v117, 0.0
    %v131 = vsel %vm115, %v120, 0.0
    %136 = vrot.lane.b32.xlu0 %v77, 3
    %v137 = vpop.permute.xlu0 %136
    %138 = vrot.lane.b32.xlu0 %v78, 3
    %v139 = vpop.permute.xlu0 %138
    %140 = vrot.lane.b32.xlu0 %v79, 3
    %v141 = vpop.permute.xlu0 %140
    %142 = vrot.lane.b32.xlu0 %v80, 3
    %v143 = vpop.permute.xlu0 %142
    %v148 = vsel %vm101, 0.0, %v137
    %v149 = vsel %vm101, 0.0, %v139
    %v150 = vsel %vm101, 0.0, %v141
    %v151 = vsel %vm101, 0.0, %v143
    %v152 = vsel %vm106, %v148, 0.0
    %v153 = vsel %vm106, %v149, 0.0
    %v154 = vsel %vm106, %v150, 0.0
    %v155 = vsel %vm106, %v151, 0.0
    %v160 = vrot.slane %v152, 5
    %v161 = vrot.slane %v153, 5
    %v162 = vsel %vm115, %v160, %v161
    %v163 = vrot.slane %v154, 5
    %v164 = vrot.slane %v155, 5
    %v165 = vsel %vm115, %v163, %v164
    %v172 = vsel %vm115, 0.0, %v160
    %v173 = vsel %vm115, 0.0, %v163
    %v174 = vsel %vm115, %v161, 0.0
    %v175 = vsel %vm115, %v164, 0.0
    %s176 = sld [smem:[#allocation2]]
    %v177 = vstv %s176
    %v178 = vmul.f32 %v177, %v128
    %v179 = vmul.f32 %v177, %v118
    %v180 = vmul.f32 %v177, %v129
    %v181 = vmul.f32 %v177, %v121
    %v182 = vadd.f32 %v178, 0.0
    %v183 = vadd.f32 %v179, 0.0
    %v184 = vadd.f32 %v180, 0.0
    %v185 = vadd.f32 %v181, 0.0
    %s186 = sld [smem:[#allocation2 + $0x1]]
    %v187 = vstv %s186
    %v188 = vmul.f32 %v187, %v128
    %v189 = vmul.f32 %v187, %v118
    %v190 = vmul.f32 %v187, %v129
    %v191 = vmul.f32 %v187, %v121
    %196 = vrot.lane.b32.xlu0 %v188, 127
    %v197 = vpop.permute.xlu0 %196
    %198 = vrot.lane.b32.xlu0 %v189, 127
    %v199 = vpop.permute.xlu0 %198
    %200 = vrot.lane.b32.xlu0 %v190, 127
    %v201 = vpop.permute.xlu0 %200
    %202 = vrot.lane.b32.xlu0 %v191, 127
    %v203 = vpop.permute.xlu0 %202
    %v208 = vadd.f32 %v182, %v197
    %v209 = vadd.f32 %v183, %v199
    %v210 = vadd.f32 %v184, %v201
    %v211 = vadd.f32 %v185, %v203
    %s212 = sld [smem:[#allocation2 + $0x2]]
    %v213 = vstv %s212
    %v214 = vmul.f32 %v213, %v128
    %v215 = vmul.f32 %v213, %v118
    %v216 = vmul.f32 %v213, %v129
    %v217 = vmul.f32 %v213, %v121
    %222 = vrot.lane.b32.xlu0 %v214, 126
    %v223 = vpop.permute.xlu0 %222
    %224 = vrot.lane.b32.xlu0 %v215, 126
    %v225 = vpop.permute.xlu0 %224
    %226 = vrot.lane.b32.xlu0 %v216, 126
    %v227 = vpop.permute.xlu0 %226
    %228 = vrot.lane.b32.xlu0 %v217, 126
    %v229 = vpop.permute.xlu0 %228
    %v234 = vadd.f32 %v208, %v223
    %v235 = vadd.f32 %v209, %v225
    %v236 = vadd.f32 %v210, %v227
    %v237 = vadd.f32 %v211, %v229
    %s238 = sld [smem:[#allocation2 + $0x3]]
    %v239 = vstv %s238
    %v240 = vmul.f32 %v239, %v128
    %v241 = vmul.f32 %v239, %v118
    %v242 = vmul.f32 %v239, %v129
    %v243 = vmul.f32 %v239, %v121
    %248 = vrot.lane.b32.xlu0 %v240, 125
    %v249 = vpop.permute.xlu0 %248
    %250 = vrot.lane.b32.xlu0 %v241, 125
    %v251 = vpop.permute.xlu0 %250
    %252 = vrot.lane.b32.xlu0 %v242, 125
    %v253 = vpop.permute.xlu0 %252
    %254 = vrot.lane.b32.xlu0 %v243, 125
    %v255 = vpop.permute.xlu0 %254
    %v260 = vadd.f32 %v234, %v249
    %v261 = vadd.f32 %v235, %v251
    %v262 = vadd.f32 %v236, %v253
    %v263 = vadd.f32 %v237, %v255
    %s264 = sld [smem:[#allocation2 + $0x4]]
    %v265 = vstv %s264
    %v266 = vmul.f32 %v265, %v128
    %v267 = vmul.f32 %v265, %v118
    %v268 = vmul.f32 %v265, %v129
    %v269 = vmul.f32 %v265, %v121
    %274 = vrot.lane.b32.xlu0 %v266, 124
    %v275 = vpop.permute.xlu0 %274
    %276 = vrot.lane.b32.xlu0 %v267, 124
    %v277 = vpop.permute.xlu0 %276
    %278 = vrot.lane.b32.xlu0 %v268, 124
    %v279 = vpop.permute.xlu0 %278
    %280 = vrot.lane.b32.xlu0 %v269, 124
    %v281 = vpop.permute.xlu0 %280
    %v286 = vadd.f32 %v260, %v275
    %v287 = vadd.f32 %v261, %v277
    %v288 = vadd.f32 %v262, %v279
    %v289 = vadd.f32 %v263, %v281
    %s290 = sld [smem:[#allocation2 + $0x5]]
    %v291 = vstv %s290
    %v292 = vmul.f32 %v291, %v128
    %v293 = vmul.f32 %v291, %v118
    %v294 = vmul.f32 %v291, %v129
    %v295 = vmul.f32 %v291, %v121
    %300 = vrot.lane.b32.xlu0 %v292, 123
    %v301 = vpop.permute.xlu0 %300
    %302 = vrot.lane.b32.xlu0 %v293, 123
    %v303 = vpop.permute.xlu0 %302
    %304 = vrot.lane.b32.xlu0 %v294, 123
    %v305 = vpop.permute.xlu0 %304
    %306 = vrot.lane.b32.xlu0 %v295, 123
    %v307 = vpop.permute.xlu0 %306
    %v312 = vadd.f32 %v286, %v301
    %v313 = vadd.f32 %v287, %v303
    %v314 = vadd.f32 %v288, %v305
    %v315 = vadd.f32 %v289, %v307
    %s316 = sld [smem:[#allocation2 + $0x6]]
    %v317 = vstv %s316
    %v318 = vmul.f32 %v317, %v128
    %v319 = vmul.f32 %v317, %v118
    %v320 = vmul.f32 %v317, %v129
    %v321 = vmul.f32 %v317, %v121
    %326 = vrot.lane.b32.xlu0 %v318, 122
    %v327 = vpop.permute.xlu0 %326
    %328 = vrot.lane.b32.xlu0 %v319, 122
    %v329 = vpop.permute.xlu0 %328
    %330 = vrot.lane.b32.xlu0 %v320, 122
    %v331 = vpop.permute.xlu0 %330
    %332 = vrot.lane.b32.xlu0 %v321, 122
    %v333 = vpop.permute.xlu0 %332
    %v338 = vadd.f32 %v312, %v327
    %v339 = vadd.f32 %v313, %v329
    %v340 = vadd.f32 %v314, %v331
    %v341 = vadd.f32 %v315, %v333
    %s342 = sld [smem:[#allocation2 + $0x7]]
    %v343 = vstv %s342
    %v344 = vmul.f32 %v343, %v128
    %v345 = vmul.f32 %v343, %v118
    %v346 = vmul.f32 %v343, %v130
    %v347 = vmul.f32 %v343, %v129
    %v348 = vmul.f32 %v343, %v121
    %v349 = vmul.f32 %v343, %v131
    %vm356 = vcmask 1046528
    %v357 = vrot.slane %v344, 1
    %v358 = vrot.slane %v345, 1
    %v359 = vsel %vm356, %v357, %v358
    %v360 = vrot.slane %v346, 1
    %v361 = vsel %vm356, %v358, %v360
    %v362 = vrot.slane %v347, 1
    %v363 = vrot.slane %v348, 1
    %v364 = vsel %vm356, %v362, %v363
    %v365 = vrot.slane %v349, 1
    %v366 = vsel %vm356, %v363, %v365
    %v371 = vadd.f32 %v338, %v359
    %v372 = vadd.f32 %v339, %v361
    %v373 = vadd.f32 %v340, %v364
    %v374 = vadd.f32 %v341, %v366
    %s375 = sld [smem:[#allocation2 + $0x8]]
    %v376 = vstv %s375
    %v377 = vmul.f32 %v376, %v128
    %v378 = vmul.f32 %v376, %v118
    %v379 = vmul.f32 %v376, %v130
    %v380 = vmul.f32 %v376, %v129
    %v381 = vmul.f32 %v376, %v121
    %v382 = vmul.f32 %v376, %v131
    %v389 = vrot.slane %v377, 1
    %v390 = vrot.slane %v378, 1
    %v391 = vsel %vm356, %v389, %v390
    %v392 = vrot.slane %v379, 1
    %v393 = vsel %vm356, %v390, %v392
    %v394 = vrot.slane %v380, 1
    %v395 = vrot.slane %v381, 1
    %v396 = vsel %vm356, %v394, %v395
    %v397 = vrot.slane %v382, 1
    %v398 = vsel %vm356, %v395, %v397
    %399 = vrot.lane.b32.xlu0 %v391, 127
    %v400 = vpop.permute.xlu0 %399
    %401 = vrot.lane.b32.xlu0 %v393, 127
    %v402 = vpop.permute.xlu0 %401
    %403 = vrot.lane.b32.xlu0 %v396, 127
    %v404 = vpop.permute.xlu0 %403
    %405 = vrot.lane.b32.xlu0 %v398, 127
    %v406 = vpop.permute.xlu0 %405
    %v411 = vadd.f32 %v371, %v400
    %v412 = vadd.f32 %v372, %v402
    %v413 = vadd.f32 %v373, %v404
    %v414 = vadd.f32 %v374, %v406
    %s415 = sld [smem:[#allocation2 + $0x9]]
    %v416 = vstv %s415
    %v417 = vmul.f32 %v416, %v128
    %v418 = vmul.f32 %v416, %v118
    %v419 = vmul.f32 %v416, %v130
    %v420 = vmul.f32 %v416, %v129
    %v421 = vmul.f32 %v416, %v121
    %v422 = vmul.f32 %v416, %v131
    %v429 = vrot.slane %v417, 1
    %v430 = vrot.slane %v418, 1
    %v431 = vsel %vm356, %v429, %v430
    %v432 = vrot.slane %v419, 1
    %v433 = vsel %vm356, %v430, %v432
    %v434 = vrot.slane %v420, 1
    %v435 = vrot.slane %v421, 1
    %v436 = vsel %vm356, %v434, %v435
    %v437 = vrot.slane %v422, 1
    %v438 = vsel %vm356, %v435, %v437
    %439 = vrot.lane.b32.xlu0 %v431, 126
    %v440 = vpop.permute.xlu0 %439
    %441 = vrot.lane.b32.xlu0 %v433, 126
    %v442 = vpop.permute.xlu0 %441
    %443 = vrot.lane.b32.xlu0 %v436, 126
    %v444 = vpop.permute.xlu0 %443
    %445 = vrot.lane.b32.xlu0 %v438, 126
    %v446 = vpop.permute.xlu0 %445
    %v451 = vadd.f32 %v411, %v440
    %v452 = vadd.f32 %v412, %v442
    %v453 = vadd.f32 %v413, %v444
    %v454 = vadd.f32 %v414, %v446
    %s455 = sld [smem:[#allocation2 + $0xa]]
    %v456 = vstv %s455
    %v457 = vmul.f32 %v456, %v128
    %v458 = vmul.f32 %v456, %v118
    %v459 = vmul.f32 %v456, %v130
    %v460 = vmul.f32 %v456, %v129
    %v461 = vmul.f32 %v456, %v121
    %v462 = vmul.f32 %v456, %v131
    %v469 = vrot.slane %v457, 1
    %v470 = vrot.slane %v458, 1
    %v471 = vsel %vm356, %v469, %v470
    %v472 = vrot.slane %v459, 1
    %v473 = vsel %vm356, %v470, %v472
    %v474 = vrot.slane %v460, 1
    %v475 = vrot.slane %v461, 1
    %v476 = vsel %vm356, %v474, %v475
    %v477 = vrot.slane %v462, 1
    %v478 = vsel %vm356, %v475, %v477
    %479 = vrot.lane.b32.xlu0 %v471, 125
    %v480 = vpop.permute.xlu0 %479
    %481 = vrot.lane.b32.xlu0 %v473, 125
    %v482 = vpop.permute.xlu0 %481
    %483 = vrot.lane.b32.xlu0 %v476, 125
    %v484 = vpop.permute.xlu0 %483
    %485 = vrot.lane.b32.xlu0 %v478, 125
    %v486 = vpop.permute.xlu0 %485
    %v491 = vadd.f32 %v451, %v480
    %v492 = vadd.f32 %v452, %v482
    %v493 = vadd.f32 %v453, %v484
    %v494 = vadd.f32 %v454, %v486
    %s495 = sld [smem:[#allocation2 + $0xb]]
    %v496 = vstv %s495
    %v497 = vmul.f32 %v496, %v128
    %v498 = vmul.f32 %v496, %v118
    %v499 = vmul.f32 %v496, %v130
    %v500 = vmul.f32 %v496, %v129
    %v501 = vmul.f32 %v496, %v121
    %v502 = vmul.f32 %v496, %v131
    %v509 = vrot.slane %v497, 1
    %v510 = vrot.slane %v498, 1
    %v511 = vsel %vm356, %v509, %v510
    %v512 = vrot.slane %v499, 1
    %v513 = vsel %vm356, %v510, %v512
    %v514 = vrot.slane %v500, 1
    %v515 = vrot.slane %v501, 1
    %v516 = vsel %vm356, %v514, %v515
    %v517 = vrot.slane %v502, 1
    %v518 = vsel %vm356, %v515, %v517
    %519 = vrot.lane.b32.xlu0 %v511, 124
    %v520 = vpop.permute.xlu0 %519
    %521 = vrot.lane.b32.xlu0 %v513, 124
    %v522 = vpop.permute.xlu0 %521
    %523 = vrot.lane.b32.xlu0 %v516, 124
    %v524 = vpop.permute.xlu0 %523
    %525 = vrot.lane.b32.xlu0 %v518, 124
    %v526 = vpop.permute.xlu0 %525
    %v531 = vadd.f32 %v491, %v520
    %v532 = vadd.f32 %v492, %v522
    %v533 = vadd.f32 %v493, %v524
    %v534 = vadd.f32 %v494, %v526
    %s535 = sld [smem:[#allocation2 + $0xc]]
    %v536 = vstv %s535
    %v537 = vmul.f32 %v536, %v128
    %v538 = vmul.f32 %v536, %v118
    %v539 = vmul.f32 %v536, %v130
    %v540 = vmul.f32 %v536, %v129
    %v541 = vmul.f32 %v536, %v121
    %v542 = vmul.f32 %v536, %v131
    %v549 = vrot.slane %v537, 1
    %v550 = vrot.slane %v538, 1
    %v551 = vsel %vm356, %v549, %v550
    %v552 = vrot.slane %v539, 1
    %v553 = vsel %vm356, %v550, %v552
    %v554 = vrot.slane %v540, 1
    %v555 = vrot.slane %v541, 1
    %v556 = vsel %vm356, %v554, %v555
    %v557 = vrot.slane %v542, 1
    %v558 = vsel %vm356, %v555, %v557
    %559 = vrot.lane.b32.xlu0 %v551, 123
    %v560 = vpop.permute.xlu0 %559
    %561 = vrot.lane.b32.xlu0 %v553, 123
    %v562 = vpop.permute.xlu0 %561
    %563 = vrot.lane.b32.xlu0 %v556, 123
    %v564 = vpop.permute.xlu0 %563
    %565 = vrot.lane.b32.xlu0 %v558, 123
    %v566 = vpop.permute.xlu0 %565
    %v571 = vadd.f32 %v531, %v560
    %v572 = vadd.f32 %v532, %v562
    %v573 = vadd.f32 %v533, %v564
    %v574 = vadd.f32 %v534, %v566
    %s575 = sld [smem:[#allocation2 + $0xd]]
    %v576 = vstv %s575
    %v577 = vmul.f32 %v576, %v128
    %v578 = vmul.f32 %v576, %v118
    %v579 = vmul.f32 %v576, %v130
    %v580 = vmul.f32 %v576, %v129
    %v581 = vmul.f32 %v576, %v121
    %v582 = vmul.f32 %v576, %v131
    %v589 = vrot.slane %v577, 1
    %v590 = vrot.slane %v578, 1
    %v591 = vsel %vm356, %v589, %v590
    %v592 = vrot.slane %v579, 1
    %v593 = vsel %vm356, %v590, %v592
    %v594 = vrot.slane %v580, 1
    %v595 = vrot.slane %v581, 1
    %v596 = vsel %vm356, %v594, %v595
    %v597 = vrot.slane %v582, 1
    %v598 = vsel %vm356, %v595, %v597
    %599 = vrot.lane.b32.xlu0 %v591, 122
    %v600 = vpop.permute.xlu0 %599
    %601 = vrot.lane.b32.xlu0 %v593, 122
    %v602 = vpop.permute.xlu0 %601
    %603 = vrot.lane.b32.xlu0 %v596, 122
    %v604 = vpop.permute.xlu0 %603
    %605 = vrot.lane.b32.xlu0 %v598, 122
    %v606 = vpop.permute.xlu0 %605
    %v611 = vadd.f32 %v571, %v600
    %v612 = vadd.f32 %v572, %v602
    %v613 = vadd.f32 %v573, %v604
    %v614 = vadd.f32 %v574, %v606
    %s615 = sld [smem:[#allocation2 + $0xe]]
    %v616 = vstv %s615
    %v617 = vmul.f32 %v616, %v128
    %v618 = vmul.f32 %v616, %v118
    %v619 = vmul.f32 %v616, %v130
    %v620 = vmul.f32 %v616, %v129
    %v621 = vmul.f32 %v616, %v121
    %v622 = vmul.f32 %v616, %v131
    %vm629 = vcmask 1045504
    %v630 = vrot.slane %v617, 2
    %v631 = vrot.slane %v618, 2
    %v632 = vsel %vm629, %v630, %v631
    %v633 = vrot.slane %v619, 2
    %v634 = vsel %vm629, %v631, %v633
    %v635 = vrot.slane %v620, 2
    %v636 = vrot.slane %v621, 2
    %v637 = vsel %vm629, %v635, %v636
    %v638 = vrot.slane %v622, 2
    %v639 = vsel %vm629, %v636, %v638
    %v644 = vadd.f32 %v611, %v632
    %v645 = vadd.f32 %v612, %v634
    %v646 = vadd.f32 %v613, %v637
    %v647 = vadd.f32 %v614, %v639
    %s648 = sld [smem:[#allocation2 + $0xf]]
    %v649 = vstv %s648
    %v650 = vmul.f32 %v649, %v128
    %v651 = vmul.f32 %v649, %v118
    %v652 = vmul.f32 %v649, %v130
    %v653 = vmul.f32 %v649, %v129
    %v654 = vmul.f32 %v649, %v121
    %v655 = vmul.f32 %v649, %v131
    %v662 = vrot.slane %v650, 2
    %v663 = vrot.slane %v651, 2
    %v664 = vsel %vm629, %v662, %v663
    %v665 = vrot.slane %v652, 2
    %v666 = vsel %vm629, %v663, %v665
    %v667 = vrot.slane %v653, 2
    %v668 = vrot.slane %v654, 2
    %v669 = vsel %vm629, %v667, %v668
    %v670 = vrot.slane %v655, 2
    %v671 = vsel %vm629, %v668, %v670
    %672 = vrot.lane.b32.xlu0 %v664, 127
    %v673 = vpop.permute.xlu0 %672
    %674 = vrot.lane.b32.xlu0 %v666, 127
    %v675 = vpop.permute.xlu0 %674
    %676 = vrot.lane.b32.xlu0 %v669, 127
    %v677 = vpop.permute.xlu0 %676
    %678 = vrot.lane.b32.xlu0 %v671, 127
    %v679 = vpop.permute.xlu0 %678
    %v684 = vadd.f32 %v644, %v673
    %v685 = vadd.f32 %v645, %v675
    %v686 = vadd.f32 %v646, %v677
    %v687 = vadd.f32 %v647, %v679
    %s688 = sld [smem:[#allocation2 + $0x10]]
    %v689 = vstv %s688
    %v690 = vmul.f32 %v689, %v128
    %v691 = vmul.f32 %v689, %v118
    %v692 = vmul.f32 %v689, %v130
    %v693 = vmul.f32 %v689, %v129
    %v694 = vmul.f32 %v689, %v121
    %v695 = vmul.f32 %v689, %v131
    %v702 = vrot.slane %v690, 2
    %v703 = vrot.slane %v691, 2
    %v704 = vsel %vm629, %v702, %v703
    %v705 = vrot.slane %v692, 2
    %v706 = vsel %vm629, %v703, %v705
    %v707 = vrot.slane %v693, 2
    %v708 = vrot.slane %v694, 2
    %v709 = vsel %vm629, %v707, %v708
    %v710 = vrot.slane %v695, 2
    %v711 = vsel %vm629, %v708, %v710
    %712 = vrot.lane.b32.xlu0 %v704, 126
    %v713 = vpop.permute.xlu0 %712
    %714 = vrot.lane.b32.xlu0 %v706, 126
    %v715 = vpop.permute.xlu0 %714
    %716 = vrot.lane.b32.xlu0 %v709, 126
    %v717 = vpop.permute.xlu0 %716
    %718 = vrot.lane.b32.xlu0 %v711, 126
    %v719 = vpop.permute.xlu0 %718
    %v724 = vadd.f32 %v684, %v713
    %v725 = vadd.f32 %v685, %v715
    %v726 = vadd.f32 %v686, %v717
    %v727 = vadd.f32 %v687, %v719
    %s728 = sld [smem:[#allocation2 + $0x11]]
    %v729 = vstv %s728
    %v730 = vmul.f32 %v729, %v128
    %v731 = vmul.f32 %v729, %v118
    %v732 = vmul.f32 %v729, %v130
    %v733 = vmul.f32 %v729, %v129
    %v734 = vmul.f32 %v729, %v121
    %v735 = vmul.f32 %v729, %v131
    %v742 = vrot.slane %v730, 2
    %v743 = vrot.slane %v731, 2
    %v744 = vsel %vm629, %v742, %v743
    %v745 = vrot.slane %v732, 2
    %v746 = vsel %vm629, %v743, %v745
    %v747 = vrot.slane %v733, 2
    %v748 = vrot.slane %v734, 2
    %v749 = vsel %vm629, %v747, %v748
    %v750 = vrot.slane %v735, 2
    %v751 = vsel %vm629, %v748, %v750
    %752 = vrot.lane.b32.xlu0 %v744, 125
    %v753 = vpop.permute.xlu0 %752
    %754 = vrot.lane.b32.xlu0 %v746, 125
    %v755 = vpop.permute.xlu0 %754
    %756 = vrot.lane.b32.xlu0 %v749, 125
    %v757 = vpop.permute.xlu0 %756
    %758 = vrot.lane.b32.xlu0 %v751, 125
    %v759 = vpop.permute.xlu0 %758
    %v764 = vadd.f32 %v724, %v753
    %v765 = vadd.f32 %v725, %v755
    %v766 = vadd.f32 %v726, %v757
    %v767 = vadd.f32 %v727, %v759
    %s768 = sld [smem:[#allocation2 + $0x12]]
    %v769 = vstv %s768
    %v770 = vmul.f32 %v769, %v128
    %v771 = vmul.f32 %v769, %v118
    %v772 = vmul.f32 %v769, %v130
    %v773 = vmul.f32 %v769, %v129
    %v774 = vmul.f32 %v769, %v121
    %v775 = vmul.f32 %v769, %v131
    %v782 = vrot.slane %v770, 2
    %v783 = vrot.slane %v771, 2
    %v784 = vsel %vm629, %v782, %v783
    %v785 = vrot.slane %v772, 2
    %v786 = vsel %vm629, %v783, %v785
    %v787 = vrot.slane %v773, 2
    %v788 = vrot.slane %v774, 2
    %v789 = vsel %vm629, %v787, %v788
    %v790 = vrot.slane %v775, 2
    %v791 = vsel %vm629, %v788, %v790
    %792 = vrot.lane.b32.xlu0 %v784, 124
    %v793 = vpop.permute.xlu0 %792
    %794 = vrot.lane.b32.xlu0 %v786, 124
    %v795 = vpop.permute.xlu0 %794
    %796 = vrot.lane.b32.xlu0 %v789, 124
    %v797 = vpop.permute.xlu0 %796
    %798 = vrot.lane.b32.xlu0 %v791, 124
    %v799 = vpop.permute.xlu0 %798
    %v804 = vadd.f32 %v764, %v793
    %v805 = vadd.f32 %v765, %v795
    %v806 = vadd.f32 %v766, %v797
    %v807 = vadd.f32 %v767, %v799
    %s808 = sld [smem:[#allocation2 + $0x13]]
    %v809 = vstv %s808
    %v810 = vmul.f32 %v809, %v128
    %v811 = vmul.f32 %v809, %v118
    %v812 = vmul.f32 %v809, %v130
    %v813 = vmul.f32 %v809, %v129
    %v814 = vmul.f32 %v809, %v121
    %v815 = vmul.f32 %v809, %v131
    %v822 = vrot.slane %v810, 2
    %v823 = vrot.slane %v811, 2
    %v824 = vsel %vm629, %v822, %v823
    %v825 = vrot.slane %v812, 2
    %v826 = vsel %vm629, %v823, %v825
    %v827 = vrot.slane %v813, 2
    %v828 = vrot.slane %v814, 2
    %v829 = vsel %vm629, %v827, %v828
    %v830 = vrot.slane %v815, 2
    %v831 = vsel %vm629, %v828, %v830
    %832 = vrot.lane.b32.xlu0 %v824, 123
    %v833 = vpop.permute.xlu0 %832
    %834 = vrot.lane.b32.xlu0 %v826, 123
    %v835 = vpop.permute.xlu0 %834
    %836 = vrot.lane.b32.xlu0 %v829, 123
    %v837 = vpop.permute.xlu0 %836
    %838 = vrot.lane.b32.xlu0 %v831, 123
    %v839 = vpop.permute.xlu0 %838
    %v844 = vadd.f32 %v804, %v833
    %v845 = vadd.f32 %v805, %v835
    %v846 = vadd.f32 %v806, %v837
    %v847 = vadd.f32 %v807, %v839
    %s848 = sld [smem:[#allocation2 + $0x14]]
    %v849 = vstv %s848
    %v850 = vmul.f32 %v849, %v128
    %v851 = vmul.f32 %v849, %v118
    %v852 = vmul.f32 %v849, %v130
    %v853 = vmul.f32 %v849, %v129
    %v854 = vmul.f32 %v849, %v121
    %v855 = vmul.f32 %v849, %v131
    %v862 = vrot.slane %v850, 2
    %v863 = vrot.slane %v851, 2
    %v864 = vsel %vm629, %v862, %v863
    %v865 = vrot.slane %v852, 2
    %v866 = vsel %vm629, %v863, %v865
    %v867 = vrot.slane %v853, 2
    %v868 = vrot.slane %v854, 2
    %v869 = vsel %vm629, %v867, %v868
    %v870 = vrot.slane %v855, 2
    %v871 = vsel %vm629, %v868, %v870
    %872 = vrot.lane.b32.xlu0 %v864, 122
    %v873 = vpop.permute.xlu0 %872
    %874 = vrot.lane.b32.xlu0 %v866, 122
    %v875 = vpop.permute.xlu0 %874
    %876 = vrot.lane.b32.xlu0 %v869, 122
    %v877 = vpop.permute.xlu0 %876
    %878 = vrot.lane.b32.xlu0 %v871, 122
    %v879 = vpop.permute.xlu0 %878
    %v884 = vadd.f32 %v844, %v873
    %v885 = vadd.f32 %v845, %v875
    %v886 = vadd.f32 %v846, %v877
    %v887 = vadd.f32 %v847, %v879
    %s888 = sld [smem:[#allocation2 + $0x15]]
    %v889 = vstv %s888
    %v890 = vmul.f32 %v889, %v128
    %v891 = vmul.f32 %v889, %v118
    %v892 = vmul.f32 %v889, %v130
    %v893 = vmul.f32 %v889, %v129
    %v894 = vmul.f32 %v889, %v121
    %v895 = vmul.f32 %v889, %v131
    %vm902 = vcmask 1044480
    %v903 = vrot.slane %v890, 3
    %v904 = vrot.slane %v891, 3
    %v905 = vsel %vm902, %v903, %v904
    %v906 = vrot.slane %v892, 3
    %v907 = vsel %vm902, %v904, %v906
    %v908 = vrot.slane %v893, 3
    %v909 = vrot.slane %v894, 3
    %v910 = vsel %vm902, %v908, %v909
    %v911 = vrot.slane %v895, 3
    %v912 = vsel %vm902, %v909, %v911
    %v917 = vadd.f32 %v884, %v905
    %v918 = vadd.f32 %v885, %v907
    %v919 = vadd.f32 %v886, %v910
    %v920 = vadd.f32 %v887, %v912
    %s921 = sld [smem:[#allocation2 + $0x16]]
    %v922 = vstv %s921
    %v923 = vmul.f32 %v922, %v128
    %v924 = vmul.f32 %v922, %v118
    %v925 = vmul.f32 %v922, %v130
    %v926 = vmul.f32 %v922, %v129
    %v927 = vmul.f32 %v922, %v121
    %v928 = vmul.f32 %v922, %v131
    %v935 = vrot.slane %v923, 3
    %v936 = vrot.slane %v924, 3
    %v937 = vsel %vm902, %v935, %v936
    %v938 = vrot.slane %v925, 3
    %v939 = vsel %vm902, %v936, %v938
    %v940 = vrot.slane %v926, 3
    %v941 = vrot.slane %v927, 3
    %v942 = vsel %vm902, %v940, %v941
    %v943 = vrot.slane %v928, 3
    %v944 = vsel %vm902, %v941, %v943
    %945 = vrot.lane.b32.xlu0 %v937, 127
    %v946 = vpop.permute.xlu0 %945
    %947 = vrot.lane.b32.xlu0 %v939, 127
    %v948 = vpop.permute.xlu0 %947
    %949 = vrot.lane.b32.xlu0 %v942, 127
    %v950 = vpop.permute.xlu0 %949
    %951 = vrot.lane.b32.xlu0 %v944, 127
    %v952 = vpop.permute.xlu0 %951
    %v957 = vadd.f32 %v917, %v946
    %v958 = vadd.f32 %v918, %v948
    %v959 = vadd.f32 %v919, %v950
    %v960 = vadd.f32 %v920, %v952
    %s961 = sld [smem:[#allocation2 + $0x17]]
    %v962 = vstv %s961
    %v963 = vmul.f32 %v962, %v128
    %v964 = vmul.f32 %v962, %v118
    %v965 = vmul.f32 %v962, %v130
    %v966 = vmul.f32 %v962, %v129
    %v967 = vmul.f32 %v962, %v121
    %v968 = vmul.f32 %v962, %v131
    %v975 = vrot.slane %v963, 3
    %v976 = vrot.slane %v964, 3
    %v977 = vsel %vm902, %v975, %v976
    %v978 = vrot.slane %v965, 3
    %v979 = vsel %vm902, %v976, %v978
    %v980 = vrot.slane %v966, 3
    %v981 = vrot.slane %v967, 3
    %v982 = vsel %vm902, %v980, %v981
    %v983 = vrot.slane %v968, 3
    %v984 = vsel %vm902, %v981, %v983
    %985 = vrot.lane.b32.xlu0 %v977, 126
    %v986 = vpop.permute.xlu0 %985
    %987 = vrot.lane.b32.xlu0 %v979, 126
    %v988 = vpop.permute.xlu0 %987
    %989 = vrot.lane.b32.xlu0 %v982, 126
    %v990 = vpop.permute.xlu0 %989
    %991 = vrot.lane.b32.xlu0 %v984, 126
    %v992 = vpop.permute.xlu0 %991
    %v997 = vadd.f32 %v957, %v986
    %v998 = vadd.f32 %v958, %v988
    %v999 = vadd.f32 %v959, %v990
    %v1000 = vadd.f32 %v960, %v992
    %s1001 = sld [smem:[#allocation2 + $0x18]]
    %v1002 = vstv %s1001
    %v1003 = vmul.f32 %v1002, %v128
    %v1004 = vmul.f32 %v1002, %v118
    %v1005 = vmul.f32 %v1002, %v130
    %v1006 = vmul.f32 %v1002, %v129
    %v1007 = vmul.f32 %v1002, %v121
    %v1008 = vmul.f32 %v1002, %v131
    %v1015 = vrot.slane %v1003, 3
    %v1016 = vrot.slane %v1004, 3
    %v1017 = vsel %vm902, %v1015, %v1016
    %v1018 = vrot.slane %v1005, 3
    %v1019 = vsel %vm902, %v1016, %v1018
    %v1020 = vrot.slane %v1006, 3
    %v1021 = vrot.slane %v1007, 3
    %v1022 = vsel %vm902, %v1020, %v1021
    %v1023 = vrot.slane %v1008, 3
    %v1024 = vsel %vm902, %v1021, %v1023
    %1025 = vrot.lane.b32.xlu0 %v1017, 125
    %v1026 = vpop.permute.xlu0 %1025
    %1027 = vrot.lane.b32.xlu0 %v1019, 125
    %v1028 = vpop.permute.xlu0 %1027
    %1029 = vrot.lane.b32.xlu0 %v1022, 125
    %v1030 = vpop.permute.xlu0 %1029
    %1031 = vrot.lane.b32.xlu0 %v1024, 125
    %v1032 = vpop.permute.xlu0 %1031
    %v1037 = vadd.f32 %v997, %v1026
    %v1038 = vadd.f32 %v998, %v1028
    %v1039 = vadd.f32 %v999, %v1030
    %v1040 = vadd.f32 %v1000, %v1032
    %s1041 = sld [smem:[#allocation2 + $0x19]]
    %v1042 = vstv %s1041
    %v1043 = vmul.f32 %v1042, %v128
    %v1044 = vmul.f32 %v1042, %v118
    %v1045 = vmul.f32 %v1042, %v130
    %v1046 = vmul.f32 %v1042, %v129
    %v1047 = vmul.f32 %v1042, %v121
    %v1048 = vmul.f32 %v1042, %v131
    %v1055 = vrot.slane %v1043, 3
    %v1056 = vrot.slane %v1044, 3
    %v1057 = vsel %vm902, %v1055, %v1056
    %v1058 = vrot.slane %v1045, 3
    %v1059 = vsel %vm902, %v1056, %v1058
    %v1060 = vrot.slane %v1046, 3
    %v1061 = vrot.slane %v1047, 3
    %v1062 = vsel %vm902, %v1060, %v1061
    %v1063 = vrot.slane %v1048, 3
    %v1064 = vsel %vm902, %v1061, %v1063
    %1065 = vrot.lane.b32.xlu0 %v1057, 124
    %v1066 = vpop.permute.xlu0 %1065
    %1067 = vrot.lane.b32.xlu0 %v1059, 124
    %v1068 = vpop.permute.xlu0 %1067
    %1069 = vrot.lane.b32.xlu0 %v1062, 124
    %v1070 = vpop.permute.xlu0 %1069
    %1071 = vrot.lane.b32.xlu0 %v1064, 124
    %v1072 = vpop.permute.xlu0 %1071
    %v1077 = vadd.f32 %v1037, %v1066
    %v1078 = vadd.f32 %v1038, %v1068
    %v1079 = vadd.f32 %v1039, %v1070
    %v1080 = vadd.f32 %v1040, %v1072
    %s1081 = sld [smem:[#allocation2 + $0x1a]]
    %v1082 = vstv %s1081
    %v1083 = vmul.f32 %v1082, %v128
    %v1084 = vmul.f32 %v1082, %v118
    %v1085 = vmul.f32 %v1082, %v130
    %v1086 = vmul.f32 %v1082, %v129
    %v1087 = vmul.f32 %v1082, %v121
    %v1088 = vmul.f32 %v1082, %v131
    %v1095 = vrot.slane %v1083, 3
    %v1096 = vrot.slane %v1084, 3
    %v1097 = vsel %vm902, %v1095, %v1096
    %v1098 = vrot.slane %v1085, 3
    %v1099 = vsel %vm902, %v1096, %v1098
    %v1100 = vrot.slane %v1086, 3
    %v1101 = vrot.slane %v1087, 3
    %v1102 = vsel %vm902, %v1100, %v1101
    %v1103 = vrot.slane %v1088, 3
    %v1104 = vsel %vm902, %v1101, %v1103
    %1105 = vrot.lane.b32.xlu0 %v1097, 123
    %v1106 = vpop.permute.xlu0 %1105
    %1107 = vrot.lane.b32.xlu0 %v1099, 123
    %v1108 = vpop.permute.xlu0 %1107
    %1109 = vrot.lane.b32.xlu0 %v1102, 123
    %v1110 = vpop.permute.xlu0 %1109
    %1111 = vrot.lane.b32.xlu0 %v1104, 123
    %v1112 = vpop.permute.xlu0 %1111
    %v1117 = vadd.f32 %v1077, %v1106
    %v1118 = vadd.f32 %v1078, %v1108
    %v1119 = vadd.f32 %v1079, %v1110
    %v1120 = vadd.f32 %v1080, %v1112
    %s1121 = sld [smem:[#allocation2 + $0x1b]]
    %v1122 = vstv %s1121
    %v1123 = vmul.f32 %v1122, %v128
    %v1124 = vmul.f32 %v1122, %v118
    %v1125 = vmul.f32 %v1122, %v130
    %v1126 = vmul.f32 %v1122, %v129
    %v1127 = vmul.f32 %v1122, %v121
    %v1128 = vmul.f32 %v1122, %v131
    %v1135 = vrot.slane %v1123, 3
    %v1136 = vrot.slane %v1124, 3
    %v1137 = vsel %vm902, %v1135, %v1136
    %v1138 = vrot.slane %v1125, 3
    %v1139 = vsel %vm902, %v1136, %v1138
    %v1140 = vrot.slane %v1126, 3
    %v1141 = vrot.slane %v1127, 3
    %v1142 = vsel %vm902, %v1140, %v1141
    %v1143 = vrot.slane %v1128, 3
    %v1144 = vsel %vm902, %v1141, %v1143
    %1145 = vrot.lane.b32.xlu0 %v1137, 122
    %v1146 = vpop.permute.xlu0 %1145
    %1147 = vrot.lane.b32.xlu0 %v1139, 122
    %v1148 = vpop.permute.xlu0 %1147
    %1149 = vrot.lane.b32.xlu0 %v1142, 122
    %v1150 = vpop.permute.xlu0 %1149
    %1151 = vrot.lane.b32.xlu0 %v1144, 122
    %v1152 = vpop.permute.xlu0 %1151
    %v1157 = vadd.f32 %v1117, %v1146
    %v1158 = vadd.f32 %v1118, %v1148
    %v1159 = vadd.f32 %v1119, %v1150
    %v1160 = vadd.f32 %v1120, %v1152
    %s1161 = sld [smem:[#allocation2 + $0x1c]]
    %v1162 = vstv %s1161
    %v1163 = vmul.f32 %v1162, %v128
    %v1164 = vmul.f32 %v1162, %v118
    %v1165 = vmul.f32 %v1162, %v130
    %v1166 = vmul.f32 %v1162, %v129
    %v1167 = vmul.f32 %v1162, %v121
    %v1168 = vmul.f32 %v1162, %v131
    %vm1175 = vcmask 1043456
    %v1176 = vrot.slane %v1163, 4
    %v1177 = vrot.slane %v1164, 4
    %v1178 = vsel %vm1175, %v1176, %v1177
    %v1179 = vrot.slane %v1165, 4
    %v1180 = vsel %vm1175, %v1177, %v1179
    %v1181 = vrot.slane %v1166, 4
    %v1182 = vrot.slane %v1167, 4
    %v1183 = vsel %vm1175, %v1181, %v1182
    %v1184 = vrot.slane %v1168, 4
    %v1185 = vsel %vm1175, %v1182, %v1184
    %v1190 = vadd.f32 %v1157, %v1178
    %v1191 = vadd.f32 %v1158, %v1180
    %v1192 = vadd.f32 %v1159, %v1183
    %v1193 = vadd.f32 %v1160, %v1185
    %s1194 = sld [smem:[#allocation2 + $0x1d]]
    %v1195 = vstv %s1194
    %v1196 = vmul.f32 %v1195, %v128
    %v1197 = vmul.f32 %v1195, %v118
    %v1198 = vmul.f32 %v1195, %v130
    %v1199 = vmul.f32 %v1195, %v129
    %v1200 = vmul.f32 %v1195, %v121
    %v1201 = vmul.f32 %v1195, %v131
    %v1208 = vrot.slane %v1196, 4
    %v1209 = vrot.slane %v1197, 4
    %v1210 = vsel %vm1175, %v1208, %v1209
    %v1211 = vrot.slane %v1198, 4
    %v1212 = vsel %vm1175, %v1209, %v1211
    %v1213 = vrot.slane %v1199, 4
    %v1214 = vrot.slane %v1200, 4
    %v1215 = vsel %vm1175, %v1213, %v1214
    %v1216 = vrot.slane %v1201, 4
    %v1217 = vsel %vm1175, %v1214, %v1216
    %1218 = vrot.lane.b32.xlu0 %v1210, 127
    %v1219 = vpop.permute.xlu0 %1218
    %1220 = vrot.lane.b32.xlu0 %v1212, 127
    %v1221 = vpop.permute.xlu0 %1220
    %1222 = vrot.lane.b32.xlu0 %v1215, 127
    %v1223 = vpop.permute.xlu0 %1222
    %1224 = vrot.lane.b32.xlu0 %v1217, 127
    %v1225 = vpop.permute.xlu0 %1224
    %v1230 = vadd.f32 %v1190, %v1219
    %v1231 = vadd.f32 %v1191, %v1221
    %v1232 = vadd.f32 %v1192, %v1223
    %v1233 = vadd.f32 %v1193, %v1225
    %s1234 = sld [smem:[#allocation2 + $0x1e]]
    %v1235 = vstv %s1234
    %v1236 = vmul.f32 %v1235, %v128
    %v1237 = vmul.f32 %v1235, %v118
    %v1238 = vmul.f32 %v1235, %v130
    %v1239 = vmul.f32 %v1235, %v129
    %v1240 = vmul.f32 %v1235, %v121
    %v1241 = vmul.f32 %v1235, %v131
    %v1248 = vrot.slane %v1236, 4
    %v1249 = vrot.slane %v1237, 4
    %v1250 = vsel %vm1175, %v1248, %v1249
    %v1251 = vrot.slane %v1238, 4
    %v1252 = vsel %vm1175, %v1249, %v1251
    %v1253 = vrot.slane %v1239, 4
    %v1254 = vrot.slane %v1240, 4
    %v1255 = vsel %vm1175, %v1253, %v1254
    %v1256 = vrot.slane %v1241, 4
    %v1257 = vsel %vm1175, %v1254, %v1256
    %1258 = vrot.lane.b32.xlu0 %v1250, 126
    %v1259 = vpop.permute.xlu0 %1258
    %1260 = vrot.lane.b32.xlu0 %v1252, 126
    %v1261 = vpop.permute.xlu0 %1260
    %1262 = vrot.lane.b32.xlu0 %v1255, 126
    %v1263 = vpop.permute.xlu0 %1262
    %1264 = vrot.lane.b32.xlu0 %v1257, 126
    %v1265 = vpop.permute.xlu0 %1264
    %v1270 = vadd.f32 %v1230, %v1259
    %v1271 = vadd.f32 %v1231, %v1261
    %v1272 = vadd.f32 %v1232, %v1263
    %v1273 = vadd.f32 %v1233, %v1265
    %s1274 = sld [smem:[#allocation2 + $0x1f]]
    %v1275 = vstv %s1274
    %v1276 = vmul.f32 %v1275, %v128
    %v1277 = vmul.f32 %v1275, %v118
    %v1278 = vmul.f32 %v1275, %v130
    %v1279 = vmul.f32 %v1275, %v129
    %v1280 = vmul.f32 %v1275, %v121
    %v1281 = vmul.f32 %v1275, %v131
    %v1288 = vrot.slane %v1276, 4
    %v1289 = vrot.slane %v1277, 4
    %v1290 = vsel %vm1175, %v1288, %v1289
    %v1291 = vrot.slane %v1278, 4
    %v1292 = vsel %vm1175, %v1289, %v1291
    %v1293 = vrot.slane %v1279, 4
    %v1294 = vrot.slane %v1280, 4
    %v1295 = vsel %vm1175, %v1293, %v1294
    %v1296 = vrot.slane %v1281, 4
    %v1297 = vsel %vm1175, %v1294, %v1296
    %1298 = vrot.lane.b32.xlu0 %v1290, 125
    %v1299 = vpop.permute.xlu0 %1298
    %1300 = vrot.lane.b32.xlu0 %v1292, 125
    %v1301 = vpop.permute.xlu0 %1300
    %1302 = vrot.lane.b32.xlu0 %v1295, 125
    %v1303 = vpop.permute.xlu0 %1302
    %1304 = vrot.lane.b32.xlu0 %v1297, 125
    %v1305 = vpop.permute.xlu0 %1304
    %v1310 = vadd.f32 %v1270, %v1299
    %v1311 = vadd.f32 %v1271, %v1301
    %v1312 = vadd.f32 %v1272, %v1303
    %v1313 = vadd.f32 %v1273, %v1305
    %s1314 = sld [smem:[#allocation2 + $0x20]]
    %v1315 = vstv %s1314
    %v1316 = vmul.f32 %v1315, %v128
    %v1317 = vmul.f32 %v1315, %v118
    %v1318 = vmul.f32 %v1315, %v130
    %v1319 = vmul.f32 %v1315, %v129
    %v1320 = vmul.f32 %v1315, %v121
    %v1321 = vmul.f32 %v1315, %v131
    %v1328 = vrot.slane %v1316, 4
    %v1329 = vrot.slane %v1317, 4
    %v1330 = vsel %vm1175, %v1328, %v1329
    %v1331 = vrot.slane %v1318, 4
    %v1332 = vsel %vm1175, %v1329, %v1331
    %v1333 = vrot.slane %v1319, 4
    %v1334 = vrot.slane %v1320, 4
    %v1335 = vsel %vm1175, %v1333, %v1334
    %v1336 = vrot.slane %v1321, 4
    %v1337 = vsel %vm1175, %v1334, %v1336
    %1338 = vrot.lane.b32.xlu0 %v1330, 124
    %v1339 = vpop.permute.xlu0 %1338
    %1340 = vrot.lane.b32.xlu0 %v1332, 124
    %v1341 = vpop.permute.xlu0 %1340
    %1342 = vrot.lane.b32.xlu0 %v1335, 124
    %v1343 = vpop.permute.xlu0 %1342
    %1344 = vrot.lane.b32.xlu0 %v1337, 124
    %v1345 = vpop.permute.xlu0 %1344
    %v1350 = vadd.f32 %v1310, %v1339
    %v1351 = vadd.f32 %v1311, %v1341
    %v1352 = vadd.f32 %v1312, %v1343
    %v1353 = vadd.f32 %v1313, %v1345
    %s1354 = sld [smem:[#allocation2 + $0x21]]
    %v1355 = vstv %s1354
    %v1356 = vmul.f32 %v1355, %v128
    %v1357 = vmul.f32 %v1355, %v118
    %v1358 = vmul.f32 %v1355, %v130
    %v1359 = vmul.f32 %v1355, %v129
    %v1360 = vmul.f32 %v1355, %v121
    %v1361 = vmul.f32 %v1355, %v131
    %v1368 = vrot.slane %v1356, 4
    %v1369 = vrot.slane %v1357, 4
    %v1370 = vsel %vm1175, %v1368, %v1369
    %v1371 = vrot.slane %v1358, 4
    %v1372 = vsel %vm1175, %v1369, %v1371
    %v1373 = vrot.slane %v1359, 4
    %v1374 = vrot.slane %v1360, 4
    %v1375 = vsel %vm1175, %v1373, %v1374
    %v1376 = vrot.slane %v1361, 4
    %v1377 = vsel %vm1175, %v1374, %v1376
    %1378 = vrot.lane.b32.xlu0 %v1370, 123
    %v1379 = vpop.permute.xlu0 %1378
    %1380 = vrot.lane.b32.xlu0 %v1372, 123
    %v1381 = vpop.permute.xlu0 %1380
    %1382 = vrot.lane.b32.xlu0 %v1375, 123
    %v1383 = vpop.permute.xlu0 %1382
    %1384 = vrot.lane.b32.xlu0 %v1377, 123
    %v1385 = vpop.permute.xlu0 %1384
    %v1390 = vadd.f32 %v1350, %v1379
    %v1391 = vadd.f32 %v1351, %v1381
    %v1392 = vadd.f32 %v1352, %v1383
    %v1393 = vadd.f32 %v1353, %v1385
    %s1394 = sld [smem:[#allocation2 + $0x22]]
    %v1395 = vstv %s1394
    %v1396 = vmul.f32 %v1395, %v128
    %v1397 = vmul.f32 %v1395, %v118
    %v1398 = vmul.f32 %v1395, %v130
    %v1399 = vmul.f32 %v1395, %v129
    %v1400 = vmul.f32 %v1395, %v121
    %v1401 = vmul.f32 %v1395, %v131
    %v1408 = vrot.slane %v1396, 4
    %v1409 = vrot.slane %v1397, 4
    %v1410 = vsel %vm1175, %v1408, %v1409
    %v1411 = vrot.slane %v1398, 4
    %v1412 = vsel %vm1175, %v1409, %v1411
    %v1413 = vrot.slane %v1399, 4
    %v1414 = vrot.slane %v1400, 4
    %v1415 = vsel %vm1175, %v1413, %v1414
    %v1416 = vrot.slane %v1401, 4
    %v1417 = vsel %vm1175, %v1414, %v1416
    %1418 = vrot.lane.b32.xlu0 %v1410, 122
    %v1419 = vpop.permute.xlu0 %1418
    %1420 = vrot.lane.b32.xlu0 %v1412, 122
    %v1421 = vpop.permute.xlu0 %1420
    %1422 = vrot.lane.b32.xlu0 %v1415, 122
    %v1423 = vpop.permute.xlu0 %1422
    %1424 = vrot.lane.b32.xlu0 %v1417, 122
    %v1425 = vpop.permute.xlu0 %1424
    %v1430 = vadd.f32 %v1390, %v1419
    %v1431 = vadd.f32 %v1391, %v1421
    %v1432 = vadd.f32 %v1392, %v1423
    %v1433 = vadd.f32 %v1393, %v1425
    %s1434 = sld [smem:[#allocation2 + $0x23]]
    %v1435 = vstv %s1434
    %v1436 = vmul.f32 %v1435, %v128
    %v1437 = vmul.f32 %v1435, %v118
    %v1438 = vmul.f32 %v1435, %v130
    %v1439 = vmul.f32 %v1435, %v129
    %v1440 = vmul.f32 %v1435, %v121
    %v1441 = vmul.f32 %v1435, %v131
    %v1448 = vrot.slane %v1436, 5
    %v1449 = vrot.slane %v1437, 5
    %v1450 = vsel %vm115, %v1448, %v1449
    %v1451 = vrot.slane %v1438, 5
    %v1452 = vsel %vm115, %v1449, %v1451
    %v1453 = vrot.slane %v1439, 5
    %v1454 = vrot.slane %v1440, 5
    %v1455 = vsel %vm115, %v1453, %v1454
    %v1456 = vrot.slane %v1441, 5
    %v1457 = vsel %vm115, %v1454, %v1456
    %v1462 = vadd.f32 %v1430, %v1450
    %v1463 = vadd.f32 %v1431, %v1452
    %v1464 = vadd.f32 %v1432, %v1455
    %v1465 = vadd.f32 %v1433, %v1457
    %s1466 = sld [smem:[#allocation2 + $0x24]]
    %v1467 = vstv %s1466
    %v1468 = vmul.f32 %v1467, %v128
    %v1469 = vmul.f32 %v1467, %v118
    %v1470 = vmul.f32 %v1467, %v130
    %v1471 = vmul.f32 %v1467, %v129
    %v1472 = vmul.f32 %v1467, %v121
    %v1473 = vmul.f32 %v1467, %v131
    %v1480 = vrot.slane %v1468, 5
    %v1481 = vrot.slane %v1469, 5
    %v1482 = vsel %vm115, %v1480, %v1481
    %v1483 = vrot.slane %v1470, 5
    %v1484 = vsel %vm115, %v1481, %v1483
    %v1485 = vrot.slane %v1471, 5
    %v1486 = vrot.slane %v1472, 5
    %v1487 = vsel %vm115, %v1485, %v1486
    %v1488 = vrot.slane %v1473, 5
    %v1489 = vsel %vm115, %v1486, %v1488
    %1490 = vrot.lane.b32.xlu0 %v1482, 127
    %v1491 = vpop.permute.xlu0 %1490
    %1492 = vrot.lane.b32.xlu0 %v1484, 127
    %v1493 = vpop.permute.xlu0 %1492
    %1494 = vrot.lane.b32.xlu0 %v1487, 127
    %v1495 = vpop.permute.xlu0 %1494
    %1496 = vrot.lane.b32.xlu0 %v1489, 127
    %v1497 = vpop.permute.xlu0 %1496
    %v1502 = vadd.f32 %v1462, %v1491
    %v1503 = vadd.f32 %v1463, %v1493
    %v1504 = vadd.f32 %v1464, %v1495
    %v1505 = vadd.f32 %v1465, %v1497
    %s1506 = sld [smem:[#allocation2 + $0x25]]
    %v1507 = vstv %s1506
    %v1508 = vmul.f32 %v1507, %v128
    %v1509 = vmul.f32 %v1507, %v118
    %v1510 = vmul.f32 %v1507, %v130
    %v1511 = vmul.f32 %v1507, %v129
    %v1512 = vmul.f32 %v1507, %v121
    %v1513 = vmul.f32 %v1507, %v131
    %v1520 = vrot.slane %v1508, 5
    %v1521 = vrot.slane %v1509, 5
    %v1522 = vsel %vm115, %v1520, %v1521
    %v1523 = vrot.slane %v1510, 5
    %v1524 = vsel %vm115, %v1521, %v1523
    %v1525 = vrot.slane %v1511, 5
    %v1526 = vrot.slane %v1512, 5
    %v1527 = vsel %vm115, %v1525, %v1526
    %v1528 = vrot.slane %v1513, 5
    %v1529 = vsel %vm115, %v1526, %v1528
    %1530 = vrot.lane.b32.xlu0 %v1522, 126
    %v1531 = vpop.permute.xlu0 %1530
    %1532 = vrot.lane.b32.xlu0 %v1524, 126
    %v1533 = vpop.permute.xlu0 %1532
    %1534 = vrot.lane.b32.xlu0 %v1527, 126
    %v1535 = vpop.permute.xlu0 %1534
    %1536 = vrot.lane.b32.xlu0 %v1529, 126
    %v1537 = vpop.permute.xlu0 %1536
    %v1542 = vadd.f32 %v1502, %v1531
    %v1543 = vadd.f32 %v1503, %v1533
    %v1544 = vadd.f32 %v1504, %v1535
    %v1545 = vadd.f32 %v1505, %v1537
    %s1546 = sld [smem:[#allocation2 + $0x26]]
    %v1547 = vstv %s1546
    %v1548 = vmul.f32 %v1547, %v128
    %v1549 = vmul.f32 %v1547, %v118
    %v1550 = vmul.f32 %v1547, %v130
    %v1551 = vmul.f32 %v1547, %v129
    %v1552 = vmul.f32 %v1547, %v121
    %v1553 = vmul.f32 %v1547, %v131
    %v1560 = vrot.slane %v1548, 5
    %v1561 = vrot.slane %v1549, 5
    %v1562 = vsel %vm115, %v1560, %v1561
    %v1563 = vrot.slane %v1550, 5
    %v1564 = vsel %vm115, %v1561, %v1563
    %v1565 = vrot.slane %v1551, 5
    %v1566 = vrot.slane %v1552, 5
    %v1567 = vsel %vm115, %v1565, %v1566
    %v1568 = vrot.slane %v1553, 5
    %v1569 = vsel %vm115, %v1566, %v1568
    %1570 = vrot.lane.b32.xlu0 %v1562, 125
    %v1571 = vpop.permute.xlu0 %1570
    %1572 = vrot.lane.b32.xlu0 %v1564, 125
    %v1573 = vpop.permute.xlu0 %1572
    %1574 = vrot.lane.b32.xlu0 %v1567, 125
    %v1575 = vpop.permute.xlu0 %1574
    %1576 = vrot.lane.b32.xlu0 %v1569, 125
    %v1577 = vpop.permute.xlu0 %1576
    %v1582 = vadd.f32 %v1542, %v1571
    %v1583 = vadd.f32 %v1543, %v1573
    %v1584 = vadd.f32 %v1544, %v1575
    %v1585 = vadd.f32 %v1545, %v1577
    %s1586 = sld [smem:[#allocation2 + $0x27]]
    %v1587 = vstv %s1586
    %v1588 = vmul.f32 %v1587, %v128
    %v1589 = vmul.f32 %v1587, %v118
    %v1590 = vmul.f32 %v1587, %v130
    %v1591 = vmul.f32 %v1587, %v129
    %v1592 = vmul.f32 %v1587, %v121
    %v1593 = vmul.f32 %v1587, %v131
    %v1600 = vrot.slane %v1588, 5
    %v1601 = vrot.slane %v1589, 5
    %v1602 = vsel %vm115, %v1600, %v1601
    %v1603 = vrot.slane %v1590, 5
    %v1604 = vsel %vm115, %v1601, %v1603
    %v1605 = vrot.slane %v1591, 5
    %v1606 = vrot.slane %v1592, 5
    %v1607 = vsel %vm115, %v1605, %v1606
    %v1608 = vrot.slane %v1593, 5
    %v1609 = vsel %vm115, %v1606, %v1608
    %1610 = vrot.lane.b32.xlu0 %v1602, 124
    %v1611 = vpop.permute.xlu0 %1610
    %1612 = vrot.lane.b32.xlu0 %v1604, 124
    %v1613 = vpop.permute.xlu0 %1612
    %1614 = vrot.lane.b32.xlu0 %v1607, 124
    %v1615 = vpop.permute.xlu0 %1614
    %1616 = vrot.lane.b32.xlu0 %v1609, 124
    %v1617 = vpop.permute.xlu0 %1616
    %v1622 = vadd.f32 %v1582, %v1611
    %v1623 = vadd.f32 %v1583, %v1613
    %v1624 = vadd.f32 %v1584, %v1615
    %v1625 = vadd.f32 %v1585, %v1617
    %s1626 = sld [smem:[#allocation2 + $0x28]]
    %v1627 = vstv %s1626
    %v1628 = vmul.f32 %v1627, %v128
    %v1629 = vmul.f32 %v1627, %v118
    %v1630 = vmul.f32 %v1627, %v130
    %v1631 = vmul.f32 %v1627, %v129
    %v1632 = vmul.f32 %v1627, %v121
    %v1633 = vmul.f32 %v1627, %v131
    %v1640 = vrot.slane %v1628, 5
    %v1641 = vrot.slane %v1629, 5
    %v1642 = vsel %vm115, %v1640, %v1641
    %v1643 = vrot.slane %v1630, 5
    %v1644 = vsel %vm115, %v1641, %v1643
    %v1645 = vrot.slane %v1631, 5
    %v1646 = vrot.slane %v1632, 5
    %v1647 = vsel %vm115, %v1645, %v1646
    %v1648 = vrot.slane %v1633, 5
    %v1649 = vsel %vm115, %v1646, %v1648
    %1650 = vrot.lane.b32.xlu0 %v1642, 123
    %v1651 = vpop.permute.xlu0 %1650
    %1652 = vrot.lane.b32.xlu0 %v1644, 123
    %v1653 = vpop.permute.xlu0 %1652
    %1654 = vrot.lane.b32.xlu0 %v1647, 123
    %v1655 = vpop.permute.xlu0 %1654
    %1656 = vrot.lane.b32.xlu0 %v1649, 123
    %v1657 = vpop.permute.xlu0 %1656
    %v1662 = vadd.f32 %v1622, %v1651
    %v1663 = vadd.f32 %v1623, %v1653
    %v1664 = vadd.f32 %v1624, %v1655
    %v1665 = vadd.f32 %v1625, %v1657
    %s1666 = sld [smem:[#allocation2 + $0x29]]
    %v1667 = vstv %s1666
    %v1668 = vmul.f32 %v1667, %v128
    %v1669 = vmul.f32 %v1667, %v118
    %v1670 = vmul.f32 %v1667, %v130
    %v1671 = vmul.f32 %v1667, %v129
    %v1672 = vmul.f32 %v1667, %v121
    %v1673 = vmul.f32 %v1667, %v131
    %v1680 = vrot.slane %v1668, 5
    %v1681 = vrot.slane %v1669, 5
    %v1682 = vsel %vm115, %v1680, %v1681
    %v1683 = vrot.slane %v1670, 5
    %v1684 = vsel %vm115, %v1681, %v1683
    %v1685 = vrot.slane %v1671, 5
    %v1686 = vrot.slane %v1672, 5
    %v1687 = vsel %vm115, %v1685, %v1686
    %v1688 = vrot.slane %v1673, 5
    %v1689 = vsel %vm115, %v1686, %v1688
    %1690 = vrot.lane.b32.xlu0 %v1682, 122
    %v1691 = vpop.permute.xlu0 %1690
    %1692 = vrot.lane.b32.xlu0 %v1684, 122
    %v1693 = vpop.permute.xlu0 %1692
    %1694 = vrot.lane.b32.xlu0 %v1687, 122
    %v1695 = vpop.permute.xlu0 %1694
    %1696 = vrot.lane.b32.xlu0 %v1689, 122
    %v1697 = vpop.permute.xlu0 %1696
    %v1702 = vadd.f32 %v1662, %v1691
    %v1703 = vadd.f32 %v1663, %v1693
    %v1704 = vadd.f32 %v1664, %v1695
    %v1705 = vadd.f32 %v1665, %v1697
    %s1706 = sld [smem:[#allocation2 + $0x2a]]
    %v1707 = vstv %s1706
    %v1708 = vmul.f32 %v1707, %v128
    %v1709 = vmul.f32 %v1707, %v118
    %v1710 = vmul.f32 %v1707, %v130
    %v1711 = vmul.f32 %v1707, %v129
    %v1712 = vmul.f32 %v1707, %v121
    %v1713 = vmul.f32 %v1707, %v131
    %vm1720 = vcmask 1041408
    %v1721 = vrot.slane %v1708, 6
    %v1722 = vrot.slane %v1709, 6
    %v1723 = vsel %vm1720, %v1721, %v1722
    %v1724 = vrot.slane %v1710, 6
    %v1725 = vsel %vm1720, %v1722, %v1724
    %v1726 = vrot.slane %v1711, 6
    %v1727 = vrot.slane %v1712, 6
    %v1728 = vsel %vm1720, %v1726, %v1727
    %v1729 = vrot.slane %v1713, 6
    %v1730 = vsel %vm1720, %v1727, %v1729
    %v1735 = vadd.f32 %v1702, %v1723
    %v1736 = vadd.f32 %v1703, %v1725
    %v1737 = vadd.f32 %v1704, %v1728
    %v1738 = vadd.f32 %v1705, %v1730
    %s1739 = sld [smem:[#allocation2 + $0x2b]]
    %v1740 = vstv %s1739
    %v1741 = vmul.f32 %v1740, %v128
    %v1742 = vmul.f32 %v1740, %v118
    %v1743 = vmul.f32 %v1740, %v130
    %v1744 = vmul.f32 %v1740, %v129
    %v1745 = vmul.f32 %v1740, %v121
    %v1746 = vmul.f32 %v1740, %v131
    %v1753 = vrot.slane %v1741, 6
    %v1754 = vrot.slane %v1742, 6
    %v1755 = vsel %vm1720, %v1753, %v1754
    %v1756 = vrot.slane %v1743, 6
    %v1757 = vsel %vm1720, %v1754, %v1756
    %v1758 = vrot.slane %v1744, 6
    %v1759 = vrot.slane %v1745, 6
    %v1760 = vsel %vm1720, %v1758, %v1759
    %v1761 = vrot.slane %v1746, 6
    %v1762 = vsel %vm1720, %v1759, %v1761
    %1763 = vrot.lane.b32.xlu0 %v1755, 127
    %v1764 = vpop.permute.xlu0 %1763
    %1765 = vrot.lane.b32.xlu0 %v1757, 127
    %v1766 = vpop.permute.xlu0 %1765
    %1767 = vrot.lane.b32.xlu0 %v1760, 127
    %v1768 = vpop.permute.xlu0 %1767
    %1769 = vrot.lane.b32.xlu0 %v1762, 127
    %v1770 = vpop.permute.xlu0 %1769
    %v1775 = vadd.f32 %v1735, %v1764
    %v1776 = vadd.f32 %v1736, %v1766
    %v1777 = vadd.f32 %v1737, %v1768
    %v1778 = vadd.f32 %v1738, %v1770
    %s1779 = sld [smem:[#allocation2 + $0x2c]]
    %v1780 = vstv %s1779
    %v1781 = vmul.f32 %v1780, %v128
    %v1782 = vmul.f32 %v1780, %v118
    %v1783 = vmul.f32 %v1780, %v130
    %v1784 = vmul.f32 %v1780, %v129
    %v1785 = vmul.f32 %v1780, %v121
    %v1786 = vmul.f32 %v1780, %v131
    %v1793 = vrot.slane %v1781, 6
    %v1794 = vrot.slane %v1782, 6
    %v1795 = vsel %vm1720, %v1793, %v1794
    %v1796 = vrot.slane %v1783, 6
    %v1797 = vsel %vm1720, %v1794, %v1796
    %v1798 = vrot.slane %v1784, 6
    %v1799 = vrot.slane %v1785, 6
    %v1800 = vsel %vm1720, %v1798, %v1799
    %v1801 = vrot.slane %v1786, 6
    %v1802 = vsel %vm1720, %v1799, %v1801
    %1803 = vrot.lane.b32.xlu0 %v1795, 126
    %v1804 = vpop.permute.xlu0 %1803
    %1805 = vrot.lane.b32.xlu0 %v1797, 126
    %v1806 = vpop.permute.xlu0 %1805
    %1807 = vrot.lane.b32.xlu0 %v1800, 126
    %v1808 = vpop.permute.xlu0 %1807
    %1809 = vrot.lane.b32.xlu0 %v1802, 126
    %v1810 = vpop.permute.xlu0 %1809
    %v1815 = vadd.f32 %v1775, %v1804
    %v1816 = vadd.f32 %v1776, %v1806
    %v1817 = vadd.f32 %v1777, %v1808
    %v1818 = vadd.f32 %v1778, %v1810
    %s1819 = sld [smem:[#allocation2 + $0x2d]]
    %v1820 = vstv %s1819
    %v1821 = vmul.f32 %v1820, %v128
    %v1822 = vmul.f32 %v1820, %v118
    %v1823 = vmul.f32 %v1820, %v130
    %v1824 = vmul.f32 %v1820, %v129
    %v1825 = vmul.f32 %v1820, %v121
    %v1826 = vmul.f32 %v1820, %v131
    %v1833 = vrot.slane %v1821, 6
    %v1834 = vrot.slane %v1822, 6
    %v1835 = vsel %vm1720, %v1833, %v1834
    %v1836 = vrot.slane %v1823, 6
    %v1837 = vsel %vm1720, %v1834, %v1836
    %v1838 = vrot.slane %v1824, 6
    %v1839 = vrot.slane %v1825, 6
    %v1840 = vsel %vm1720, %v1838, %v1839
    %v1841 = vrot.slane %v1826, 6
    %v1842 = vsel %vm1720, %v1839, %v1841
    %1843 = vrot.lane.b32.xlu0 %v1835, 125
    %v1844 = vpop.permute.xlu0 %1843
    %1845 = vrot.lane.b32.xlu0 %v1837, 125
    %v1846 = vpop.permute.xlu0 %1845
    %1847 = vrot.lane.b32.xlu0 %v1840, 125
    %v1848 = vpop.permute.xlu0 %1847
    %1849 = vrot.lane.b32.xlu0 %v1842, 125
    %v1850 = vpop.permute.xlu0 %1849
    %v1855 = vadd.f32 %v1815, %v1844
    %v1856 = vadd.f32 %v1816, %v1846
    %v1857 = vadd.f32 %v1817, %v1848
    %v1858 = vadd.f32 %v1818, %v1850
    %s1859 = sld [smem:[#allocation2 + $0x2e]]
    %v1860 = vstv %s1859
    %v1861 = vmul.f32 %v1860, %v128
    %v1862 = vmul.f32 %v1860, %v118
    %v1863 = vmul.f32 %v1860, %v130
    %v1864 = vmul.f32 %v1860, %v129
    %v1865 = vmul.f32 %v1860, %v121
    %v1866 = vmul.f32 %v1860, %v131
    %v1873 = vrot.slane %v1861, 6
    %v1874 = vrot.slane %v1862, 6
    %v1875 = vsel %vm1720, %v1873, %v1874
    %v1876 = vrot.slane %v1863, 6
    %v1877 = vsel %vm1720, %v1874, %v1876
    %v1878 = vrot.slane %v1864, 6
    %v1879 = vrot.slane %v1865, 6
    %v1880 = vsel %vm1720, %v1878, %v1879
    %v1881 = vrot.slane %v1866, 6
    %v1882 = vsel %vm1720, %v1879, %v1881
    %1883 = vrot.lane.b32.xlu0 %v1875, 124
    %v1884 = vpop.permute.xlu0 %1883
    %1885 = vrot.lane.b32.xlu0 %v1877, 124
    %v1886 = vpop.permute.xlu0 %1885
    %1887 = vrot.lane.b32.xlu0 %v1880, 124
    %v1888 = vpop.permute.xlu0 %1887
    %1889 = vrot.lane.b32.xlu0 %v1882, 124
    %v1890 = vpop.permute.xlu0 %1889
    %v1895 = vadd.f32 %v1855, %v1884
    %v1896 = vadd.f32 %v1856, %v1886
    %v1897 = vadd.f32 %v1857, %v1888
    %v1898 = vadd.f32 %v1858, %v1890
    %s1899 = sld [smem:[#allocation2 + $0x2f]]
    %v1900 = vstv %s1899
    %v1901 = vmul.f32 %v1900, %v128
    %v1902 = vmul.f32 %v1900, %v118
    %v1903 = vmul.f32 %v1900, %v130
    %v1904 = vmul.f32 %v1900, %v129
    %v1905 = vmul.f32 %v1900, %v121
    %v1906 = vmul.f32 %v1900, %v131
    %v1913 = vrot.slane %v1901, 6
    %v1914 = vrot.slane %v1902, 6
    %v1915 = vsel %vm1720, %v1913, %v1914
    %v1916 = vrot.slane %v1903, 6
    %v1917 = vsel %vm1720, %v1914, %v1916
    %v1918 = vrot.slane %v1904, 6
    %v1919 = vrot.slane %v1905, 6
    %v1920 = vsel %vm1720, %v1918, %v1919
    %v1921 = vrot.slane %v1906, 6
    %v1922 = vsel %vm1720, %v1919, %v1921
    %1923 = vrot.lane.b32.xlu0 %v1915, 123
    %v1924 = vpop.permute.xlu0 %1923
    %1925 = vrot.lane.b32.xlu0 %v1917, 123
    %v1926 = vpop.permute.xlu0 %1925
    %1927 = vrot.lane.b32.xlu0 %v1920, 123
    %v1928 = vpop.permute.xlu0 %1927
    %1929 = vrot.lane.b32.xlu0 %v1922, 123
    %v1930 = vpop.permute.xlu0 %1929
    %v1935 = vadd.f32 %v1895, %v1924
    %v1936 = vadd.f32 %v1896, %v1926
    %v1937 = vadd.f32 %v1897, %v1928
    %v1938 = vadd.f32 %v1898, %v1930
    %s1939 = sld [smem:[#allocation2 + $0x30]]
    %v1940 = vstv %s1939
    %v1941 = vmul.f32 %v1940, %v128
    %v1942 = vmul.f32 %v1940, %v118
    %v1943 = vmul.f32 %v1940, %v130
    %v1944 = vmul.f32 %v1940, %v129
    %v1945 = vmul.f32 %v1940, %v121
    %v1946 = vmul.f32 %v1940, %v131
    %v1953 = vrot.slane %v1941, 6
    %v1954 = vrot.slane %v1942, 6
    %v1955 = vsel %vm1720, %v1953, %v1954
    %v1956 = vrot.slane %v1943, 6
    %v1957 = vsel %vm1720, %v1954, %v1956
    %v1958 = vrot.slane %v1944, 6
    %v1959 = vrot.slane %v1945, 6
    %v1960 = vsel %vm1720, %v1958, %v1959
    %v1961 = vrot.slane %v1946, 6
    %v1962 = vsel %vm1720, %v1959, %v1961
    %1963 = vrot.lane.b32.xlu0 %v1955, 122
    %v1964 = vpop.permute.xlu0 %1963
    %1965 = vrot.lane.b32.xlu0 %v1957, 122
    %v1966 = vpop.permute.xlu0 %1965
    %1967 = vrot.lane.b32.xlu0 %v1960, 122
    %v1968 = vpop.permute.xlu0 %1967
    %1969 = vrot.lane.b32.xlu0 %v1962, 122
    %v1970 = vpop.permute.xlu0 %1969
    %v1975 = vadd.f32 %v1935, %v1964
    %v1976 = vadd.f32 %v1936, %v1966
    %v1977 = vadd.f32 %v1937, %v1968
    %v1978 = vadd.f32 %v1938, %v1970
    %s1979 = sld [smem:[#allocation2 + $0x31]]
    %v1980 = vstv %s1979
    %v1981 = vmul.f32 %v1980, %v172
    %v1982 = vmul.f32 %v1980, %v162
    %v1983 = vmul.f32 %v1980, %v173
    %v1984 = vmul.f32 %v1980, %v165
    %v1985 = vadd.f32 %v1975, %v1981
    %v1986 = vadd.f32 %v1976, %v1982
    %v1987 = vadd.f32 %v1977, %v1983
    %v1988 = vadd.f32 %v1978, %v1984
    %s1989 = sld [smem:[#allocation2 + $0x32]]
    %v1990 = vstv %s1989
    %v1991 = vmul.f32 %v1990, %v172
    %v1992 = vmul.f32 %v1990, %v162
    %v1993 = vmul.f32 %v1990, %v173
    %v1994 = vmul.f32 %v1990, %v165
    %1999 = vrot.lane.b32.xlu0 %v1991, 127
    %v2000 = vpop.permute.xlu0 %1999
    %2001 = vrot.lane.b32.xlu0 %v1992, 127
    %v2002 = vpop.permute.xlu0 %2001
    %2003 = vrot.lane.b32.xlu0 %v1993, 127
    %v2004 = vpop.permute.xlu0 %2003
    %2005 = vrot.lane.b32.xlu0 %v1994, 127
    %v2006 = vpop.permute.xlu0 %2005
    %v2011 = vadd.f32 %v1985, %v2000
    %v2012 = vadd.f32 %v1986, %v2002
    %v2013 = vadd.f32 %v1987, %v2004
    %v2014 = vadd.f32 %v1988, %v2006
    %s2015 = sld [smem:[#allocation2 + $0x33]]
    %v2016 = vstv %s2015
    %v2017 = vmul.f32 %v2016, %v172
    %v2018 = vmul.f32 %v2016, %v162
    %v2019 = vmul.f32 %v2016, %v173
    %v2020 = vmul.f32 %v2016, %v165
    %2025 = vrot.lane.b32.xlu0 %v2017, 126
    %v2026 = vpop.permute.xlu0 %2025
    %2027 = vrot.lane.b32.xlu0 %v2018, 126
    %v2028 = vpop.permute.xlu0 %2027
    %2029 = vrot.lane.b32.xlu0 %v2019, 126
    %v2030 = vpop.permute.xlu0 %2029
    %2031 = vrot.lane.b32.xlu0 %v2020, 126
    %v2032 = vpop.permute.xlu0 %2031
    %v2037 = vadd.f32 %v2011, %v2026
    %v2038 = vadd.f32 %v2012, %v2028
    %v2039 = vadd.f32 %v2013, %v2030
    %v2040 = vadd.f32 %v2014, %v2032
    %s2041 = sld [smem:[#allocation2 + $0x34]]
    %v2042 = vstv %s2041
    %v2043 = vmul.f32 %v2042, %v172
    %v2044 = vmul.f32 %v2042, %v162
    %v2045 = vmul.f32 %v2042, %v173
    %v2046 = vmul.f32 %v2042, %v165
    %2051 = vrot.lane.b32.xlu0 %v2043, 125
    %v2052 = vpop.permute.xlu0 %2051
    %2053 = vrot.lane.b32.xlu0 %v2044, 125
    %v2054 = vpop.permute.xlu0 %2053
    %2055 = vrot.lane.b32.xlu0 %v2045, 125
    %v2056 = vpop.permute.xlu0 %2055
    %2057 = vrot.lane.b32.xlu0 %v2046, 125
    %v2058 = vpop.permute.xlu0 %2057
    %v2063 = vadd.f32 %v2037, %v2052
    %v2064 = vadd.f32 %v2038, %v2054
    %v2065 = vadd.f32 %v2039, %v2056
    %v2066 = vadd.f32 %v2040, %v2058
    %s2067 = sld [smem:[#allocation2 + $0x35]]
    %v2068 = vstv %s2067
    %v2069 = vmul.f32 %v2068, %v172
    %v2070 = vmul.f32 %v2068, %v162
    %v2071 = vmul.f32 %v2068, %v173
    %v2072 = vmul.f32 %v2068, %v165
    %2077 = vrot.lane.b32.xlu0 %v2069, 124
    %v2078 = vpop.permute.xlu0 %2077
    %2079 = vrot.lane.b32.xlu0 %v2070, 124
    %v2080 = vpop.permute.xlu0 %2079
    %2081 = vrot.lane.b32.xlu0 %v2071, 124
    %v2082 = vpop.permute.xlu0 %2081
    %2083 = vrot.lane.b32.xlu0 %v2072, 124
    %v2084 = vpop.permute.xlu0 %2083
    %v2089 = vadd.f32 %v2063, %v2078
    %v2090 = vadd.f32 %v2064, %v2080
    %v2091 = vadd.f32 %v2065, %v2082
    %v2092 = vadd.f32 %v2066, %v2084
    %s2093 = sld [smem:[#allocation2 + $0x36]]
    %v2094 = vstv %s2093
    %v2095 = vmul.f32 %v2094, %v172
    %v2096 = vmul.f32 %v2094, %v162
    %v2097 = vmul.f32 %v2094, %v173
    %v2098 = vmul.f32 %v2094, %v165
    %2103 = vrot.lane.b32.xlu0 %v2095, 123
    %v2104 = vpop.permute.xlu0 %2103
    %2105 = vrot.lane.b32.xlu0 %v2096, 123
    %v2106 = vpop.permute.xlu0 %2105
    %2107 = vrot.lane.b32.xlu0 %v2097, 123
    %v2108 = vpop.permute.xlu0 %2107
    %2109 = vrot.lane.b32.xlu0 %v2098, 123
    %v2110 = vpop.permute.xlu0 %2109
    %v2115 = vadd.f32 %v2089, %v2104
    %v2116 = vadd.f32 %v2090, %v2106
    %v2117 = vadd.f32 %v2091, %v2108
    %v2118 = vadd.f32 %v2092, %v2110
    %s2119 = sld [smem:[#allocation2 + $0x37]]
    %v2120 = vstv %s2119
    %v2121 = vmul.f32 %v2120, %v172
    %v2122 = vmul.f32 %v2120, %v162
    %v2123 = vmul.f32 %v2120, %v173
    %v2124 = vmul.f32 %v2120, %v165
    %2129 = vrot.lane.b32.xlu0 %v2121, 122
    %v2130 = vpop.permute.xlu0 %2129
    %2131 = vrot.lane.b32.xlu0 %v2122, 122
    %v2132 = vpop.permute.xlu0 %2131
    %2133 = vrot.lane.b32.xlu0 %v2123, 122
    %v2134 = vpop.permute.xlu0 %2133
    %2135 = vrot.lane.b32.xlu0 %v2124, 122
    %v2136 = vpop.permute.xlu0 %2135
    %v2141 = vadd.f32 %v2115, %v2130
    %v2142 = vadd.f32 %v2116, %v2132
    %v2143 = vadd.f32 %v2117, %v2134
    %v2144 = vadd.f32 %v2118, %v2136
    %s2145 = sld [smem:[#allocation2 + $0x38]]
    %v2146 = vstv %s2145
    %v2147 = vmul.f32 %v2146, %v172
    %v2148 = vmul.f32 %v2146, %v162
    %v2149 = vmul.f32 %v2146, %v174
    %v2150 = vmul.f32 %v2146, %v173
    %v2151 = vmul.f32 %v2146, %v165
    %v2152 = vmul.f32 %v2146, %v175
    %v2159 = vrot.slane %v2147, 1
    %v2160 = vrot.slane %v2148, 1
    %v2161 = vsel %vm356, %v2159, %v2160
    %v2162 = vrot.slane %v2149, 1
    %v2163 = vsel %vm356, %v2160, %v2162
    %v2164 = vrot.slane %v2150, 1
    %v2165 = vrot.slane %v2151, 1
    %v2166 = vsel %vm356, %v2164, %v2165
    %v2167 = vrot.slane %v2152, 1
    %v2168 = vsel %vm356, %v2165, %v2167
    %v2173 = vadd.f32 %v2141, %v2161
    %v2174 = vadd.f32 %v2142, %v2163
    %v2175 = vadd.f32 %v2143, %v2166
    %v2176 = vadd.f32 %v2144, %v2168
    %s2177 = sld [smem:[#allocation2 + $0x39]]
    %v2178 = vstv %s2177
    %v2179 = vmul.f32 %v2178, %v172
    %v2180 = vmul.f32 %v2178, %v162
    %v2181 = vmul.f32 %v2178, %v174
    %v2182 = vmul.f32 %v2178, %v173
    %v2183 = vmul.f32 %v2178, %v165
    %v2184 = vmul.f32 %v2178, %v175
    %v2191 = vrot.slane %v2179, 1
    %v2192 = vrot.slane %v2180, 1
    %v2193 = vsel %vm356, %v2191, %v2192
    %v2194 = vrot.slane %v2181, 1
    %v2195 = vsel %vm356, %v2192, %v2194
    %v2196 = vrot.slane %v2182, 1
    %v2197 = vrot.slane %v2183, 1
    %v2198 = vsel %vm356, %v2196, %v2197
    %v2199 = vrot.slane %v2184, 1
    %v2200 = vsel %vm356, %v2197, %v2199
    %2201 = vrot.lane.b32.xlu0 %v2193, 127
    %v2202 = vpop.permute.xlu0 %2201
    %2203 = vrot.lane.b32.xlu0 %v2195, 127
    %v2204 = vpop.permute.xlu0 %2203
    %2205 = vrot.lane.b32.xlu0 %v2198, 127
    %v2206 = vpop.permute.xlu0 %2205
    %2207 = vrot.lane.b32.xlu0 %v2200, 127
    %v2208 = vpop.permute.xlu0 %2207
    %v2213 = vadd.f32 %v2173, %v2202
    %v2214 = vadd.f32 %v2174, %v2204
    %v2215 = vadd.f32 %v2175, %v2206
    %v2216 = vadd.f32 %v2176, %v2208
    %s2217 = sld [smem:[#allocation2 + $0x3a]]
    %v2218 = vstv %s2217
    %v2219 = vmul.f32 %v2218, %v172
    %v2220 = vmul.f32 %v2218, %v162
    %v2221 = vmul.f32 %v2218, %v174
    %v2222 = vmul.f32 %v2218, %v173
    %v2223 = vmul.f32 %v2218, %v165
    %v2224 = vmul.f32 %v2218, %v175
    %v2231 = vrot.slane %v2219, 1
    %v2232 = vrot.slane %v2220, 1
    %v2233 = vsel %vm356, %v2231, %v2232
    %v2234 = vrot.slane %v2221, 1
    %v2235 = vsel %vm356, %v2232, %v2234
    %v2236 = vrot.slane %v2222, 1
    %v2237 = vrot.slane %v2223, 1
    %v2238 = vsel %vm356, %v2236, %v2237
    %v2239 = vrot.slane %v2224, 1
    %v2240 = vsel %vm356, %v2237, %v2239
    %2241 = vrot.lane.b32.xlu0 %v2233, 126
    %v2242 = vpop.permute.xlu0 %2241
    %2243 = vrot.lane.b32.xlu0 %v2235, 126
    %v2244 = vpop.permute.xlu0 %2243
    %2245 = vrot.lane.b32.xlu0 %v2238, 126
    %v2246 = vpop.permute.xlu0 %2245
    %2247 = vrot.lane.b32.xlu0 %v2240, 126
    %v2248 = vpop.permute.xlu0 %2247
    %v2253 = vadd.f32 %v2213, %v2242
    %v2254 = vadd.f32 %v2214, %v2244
    %v2255 = vadd.f32 %v2215, %v2246
    %v2256 = vadd.f32 %v2216, %v2248
    %s2257 = sld [smem:[#allocation2 + $0x3b]]
    %v2258 = vstv %s2257
    %v2259 = vmul.f32 %v2258, %v172
    %v2260 = vmul.f32 %v2258, %v162
    %v2261 = vmul.f32 %v2258, %v174
    %v2262 = vmul.f32 %v2258, %v173
    %v2263 = vmul.f32 %v2258, %v165
    %v2264 = vmul.f32 %v2258, %v175
    %v2271 = vrot.slane %v2259, 1
    %v2272 = vrot.slane %v2260, 1
    %v2273 = vsel %vm356, %v2271, %v2272
    %v2274 = vrot.slane %v2261, 1
    %v2275 = vsel %vm356, %v2272, %v2274
    %v2276 = vrot.slane %v2262, 1
    %v2277 = vrot.slane %v2263, 1
    %v2278 = vsel %vm356, %v2276, %v2277
    %v2279 = vrot.slane %v2264, 1
    %v2280 = vsel %vm356, %v2277, %v2279
    %2281 = vrot.lane.b32.xlu0 %v2273, 125
    %v2282 = vpop.permute.xlu0 %2281
    %2283 = vrot.lane.b32.xlu0 %v2275, 125
    %v2284 = vpop.permute.xlu0 %2283
    %2285 = vrot.lane.b32.xlu0 %v2278, 125
    %v2286 = vpop.permute.xlu0 %2285
    %2287 = vrot.lane.b32.xlu0 %v2280, 125
    %v2288 = vpop.permute.xlu0 %2287
    %v2293 = vadd.f32 %v2253, %v2282
    %v2294 = vadd.f32 %v2254, %v2284
    %v2295 = vadd.f32 %v2255, %v2286
    %v2296 = vadd.f32 %v2256, %v2288
    %s2297 = sld [smem:[#allocation2 + $0x3c]]
    %v2298 = vstv %s2297
    %v2299 = vmul.f32 %v2298, %v172
    %v2300 = vmul.f32 %v2298, %v162
    %v2301 = vmul.f32 %v2298, %v174
    %v2302 = vmul.f32 %v2298, %v173
    %v2303 = vmul.f32 %v2298, %v165
    %v2304 = vmul.f32 %v2298, %v175
    %v2311 = vrot.slane %v2299, 1
    %v2312 = vrot.slane %v2300, 1
    %v2313 = vsel %vm356, %v2311, %v2312
    %v2314 = vrot.slane %v2301, 1
    %v2315 = vsel %vm356, %v2312, %v2314
    %v2316 = vrot.slane %v2302, 1
    %v2317 = vrot.slane %v2303, 1
    %v2318 = vsel %vm356, %v2316, %v2317
    %v2319 = vrot.slane %v2304, 1
    %v2320 = vsel %vm356, %v2317, %v2319
    %2321 = vrot.lane.b32.xlu0 %v2313, 124
    %v2322 = vpop.permute.xlu0 %2321
    %2323 = vrot.lane.b32.xlu0 %v2315, 124
    %v2324 = vpop.permute.xlu0 %2323
    %2325 = vrot.lane.b32.xlu0 %v2318, 124
    %v2326 = vpop.permute.xlu0 %2325
    %2327 = vrot.lane.b32.xlu0 %v2320, 124
    %v2328 = vpop.permute.xlu0 %2327
    %v2333 = vadd.f32 %v2293, %v2322
    %v2334 = vadd.f32 %v2294, %v2324
    %v2335 = vadd.f32 %v2295, %v2326
    %v2336 = vadd.f32 %v2296, %v2328
    %s2337 = sld [smem:[#allocation2 + $0x3d]]
    %v2338 = vstv %s2337
    %v2339 = vmul.f32 %v2338, %v172
    %v2340 = vmul.f32 %v2338, %v162
    %v2341 = vmul.f32 %v2338, %v174
    %v2342 = vmul.f32 %v2338, %v173
    %v2343 = vmul.f32 %v2338, %v165
    %v2344 = vmul.f32 %v2338, %v175
    %v2351 = vrot.slane %v2339, 1
    %v2352 = vrot.slane %v2340, 1
    %v2353 = vsel %vm356, %v2351, %v2352
    %v2354 = vrot.slane %v2341, 1
    %v2355 = vsel %vm356, %v2352, %v2354
    %v2356 = vrot.slane %v2342, 1
    %v2357 = vrot.slane %v2343, 1
    %v2358 = vsel %vm356, %v2356, %v2357
    %v2359 = vrot.slane %v2344, 1
    %v2360 = vsel %vm356, %v2357, %v2359
    %2361 = vrot.lane.b32.xlu0 %v2353, 123
    %v2362 = vpop.permute.xlu0 %2361
    %2363 = vrot.lane.b32.xlu0 %v2355, 123
    %v2364 = vpop.permute.xlu0 %2363
    %2365 = vrot.lane.b32.xlu0 %v2358, 123
    %v2366 = vpop.permute.xlu0 %2365
    %2367 = vrot.lane.b32.xlu0 %v2360, 123
    %v2368 = vpop.permute.xlu0 %2367
    %v2373 = vadd.f32 %v2333, %v2362
    %v2374 = vadd.f32 %v2334, %v2364
    %v2375 = vadd.f32 %v2335, %v2366
    %v2376 = vadd.f32 %v2336, %v2368
    %s2377 = sld [smem:[#allocation2 + $0x3e]]
    %v2378 = vstv %s2377
    %v2379 = vmul.f32 %v2378, %v172
    %v2380 = vmul.f32 %v2378, %v162
    %v2381 = vmul.f32 %v2378, %v174
    %v2382 = vmul.f32 %v2378, %v173
    %v2383 = vmul.f32 %v2378, %v165
    %v2384 = vmul.f32 %v2378, %v175
    %v2391 = vrot.slane %v2379, 1
    %v2392 = vrot.slane %v2380, 1
    %v2393 = vsel %vm356, %v2391, %v2392
    %v2394 = vrot.slane %v2381, 1
    %v2395 = vsel %vm356, %v2392, %v2394
    %v2396 = vrot.slane %v2382, 1
    %v2397 = vrot.slane %v2383, 1
    %v2398 = vsel %vm356, %v2396, %v2397
    %v2399 = vrot.slane %v2384, 1
    %v2400 = vsel %vm356, %v2397, %v2399
    %2401 = vrot.lane.b32.xlu0 %v2393, 122
    %v2402 = vpop.permute.xlu0 %2401
    %2403 = vrot.lane.b32.xlu0 %v2395, 122
    %v2404 = vpop.permute.xlu0 %2403
    %2405 = vrot.lane.b32.xlu0 %v2398, 122
    %v2406 = vpop.permute.xlu0 %2405
    %2407 = vrot.lane.b32.xlu0 %v2400, 122
    %v2408 = vpop.permute.xlu0 %2407
    %v2413 = vadd.f32 %v2373, %v2402
    %v2414 = vadd.f32 %v2374, %v2404
    %v2415 = vadd.f32 %v2375, %v2406
    %v2416 = vadd.f32 %v2376, %v2408
    %s2417 = sld [smem:[#allocation2 + $0x3f]]
    %v2418 = vstv %s2417
    %v2419 = vmul.f32 %v2418, %v172
    %v2420 = vmul.f32 %v2418, %v162
    %v2421 = vmul.f32 %v2418, %v174
    %v2422 = vmul.f32 %v2418, %v173
    %v2423 = vmul.f32 %v2418, %v165
    %v2424 = vmul.f32 %v2418, %v175
    %v2431 = vrot.slane %v2419, 2
    %v2432 = vrot.slane %v2420, 2
    %v2433 = vsel %vm629, %v2431, %v2432
    %v2434 = vrot.slane %v2421, 2
    %v2435 = vsel %vm629, %v2432, %v2434
    %v2436 = vrot.slane %v2422, 2
    %v2437 = vrot.slane %v2423, 2
    %v2438 = vsel %vm629, %v2436, %v2437
    %v2439 = vrot.slane %v2424, 2
    %v2440 = vsel %vm629, %v2437, %v2439
    %v2445 = vadd.f32 %v2413, %v2433
    %v2446 = vadd.f32 %v2414, %v2435
    %v2447 = vadd.f32 %v2415, %v2438
    %v2448 = vadd.f32 %v2416, %v2440
    %s2449 = sld [smem:[#allocation2 + $0x40]]
    %v2450 = vstv %s2449
    %v2451 = vmul.f32 %v2450, %v172
    %v2452 = vmul.f32 %v2450, %v162
    %v2453 = vmul.f32 %v2450, %v174
    %v2454 = vmul.f32 %v2450, %v173
    %v2455 = vmul.f32 %v2450, %v165
    %v2456 = vmul.f32 %v2450, %v175
    %v2463 = vrot.slane %v2451, 2
    %v2464 = vrot.slane %v2452, 2
    %v2465 = vsel %vm629, %v2463, %v2464
    %v2466 = vrot.slane %v2453, 2
    %v2467 = vsel %vm629, %v2464, %v2466
    %v2468 = vrot.slane %v2454, 2
    %v2469 = vrot.slane %v2455, 2
    %v2470 = vsel %vm629, %v2468, %v2469
    %v2471 = vrot.slane %v2456, 2
    %v2472 = vsel %vm629, %v2469, %v2471
    %2473 = vrot.lane.b32.xlu0 %v2465, 127
    %v2474 = vpop.permute.xlu0 %2473
    %2475 = vrot.lane.b32.xlu0 %v2467, 127
    %v2476 = vpop.permute.xlu0 %2475
    %2477 = vrot.lane.b32.xlu0 %v2470, 127
    %v2478 = vpop.permute.xlu0 %2477
    %2479 = vrot.lane.b32.xlu0 %v2472, 127
    %v2480 = vpop.permute.xlu0 %2479
    %v2485 = vadd.f32 %v2445, %v2474
    %v2486 = vadd.f32 %v2446, %v2476
    %v2487 = vadd.f32 %v2447, %v2478
    %v2488 = vadd.f32 %v2448, %v2480
    %s2489 = sld [smem:[#allocation2 + $0x41]]
    %v2490 = vstv %s2489
    %v2491 = vmul.f32 %v2490, %v172
    %v2492 = vmul.f32 %v2490, %v162
    %v2493 = vmul.f32 %v2490, %v174
    %v2494 = vmul.f32 %v2490, %v173
    %v2495 = vmul.f32 %v2490, %v165
    %v2496 = vmul.f32 %v2490, %v175
    %v2503 = vrot.slane %v2491, 2
    %v2504 = vrot.slane %v2492, 2
    %v2505 = vsel %vm629, %v2503, %v2504
    %v2506 = vrot.slane %v2493, 2
    %v2507 = vsel %vm629, %v2504, %v2506
    %v2508 = vrot.slane %v2494, 2
    %v2509 = vrot.slane %v2495, 2
    %v2510 = vsel %vm629, %v2508, %v2509
    %v2511 = vrot.slane %v2496, 2
    %v2512 = vsel %vm629, %v2509, %v2511
    %2513 = vrot.lane.b32.xlu0 %v2505, 126
    %v2514 = vpop.permute.xlu0 %2513
    %2515 = vrot.lane.b32.xlu0 %v2507, 126
    %v2516 = vpop.permute.xlu0 %2515
    %2517 = vrot.lane.b32.xlu0 %v2510, 126
    %v2518 = vpop.permute.xlu0 %2517
    %2519 = vrot.lane.b32.xlu0 %v2512, 126
    %v2520 = vpop.permute.xlu0 %2519
    %v2525 = vadd.f32 %v2485, %v2514
    %v2526 = vadd.f32 %v2486, %v2516
    %v2527 = vadd.f32 %v2487, %v2518
    %v2528 = vadd.f32 %v2488, %v2520
    %s2529 = sld [smem:[#allocation2 + $0x42]]
    %v2530 = vstv %s2529
    %v2531 = vmul.f32 %v2530, %v172
    %v2532 = vmul.f32 %v2530, %v162
    %v2533 = vmul.f32 %v2530, %v174
    %v2534 = vmul.f32 %v2530, %v173
    %v2535 = vmul.f32 %v2530, %v165
    %v2536 = vmul.f32 %v2530, %v175
    %v2543 = vrot.slane %v2531, 2
    %v2544 = vrot.slane %v2532, 2
    %v2545 = vsel %vm629, %v2543, %v2544
    %v2546 = vrot.slane %v2533, 2
    %v2547 = vsel %vm629, %v2544, %v2546
    %v2548 = vrot.slane %v2534, 2
    %v2549 = vrot.slane %v2535, 2
    %v2550 = vsel %vm629, %v2548, %v2549
    %v2551 = vrot.slane %v2536, 2
    %v2552 = vsel %vm629, %v2549, %v2551
    %2553 = vrot.lane.b32.xlu0 %v2545, 125
    %v2554 = vpop.permute.xlu0 %2553
    %2555 = vrot.lane.b32.xlu0 %v2547, 125
    %v2556 = vpop.permute.xlu0 %2555
    %2557 = vrot.lane.b32.xlu0 %v2550, 125
    %v2558 = vpop.permute.xlu0 %2557
    %2559 = vrot.lane.b32.xlu0 %v2552, 125
    %v2560 = vpop.permute.xlu0 %2559
    %v2565 = vadd.f32 %v2525, %v2554
    %v2566 = vadd.f32 %v2526, %v2556
    %v2567 = vadd.f32 %v2527, %v2558
    %v2568 = vadd.f32 %v2528, %v2560
    %s2569 = sld [smem:[#allocation2 + $0x43]]
    %v2570 = vstv %s2569
    %v2571 = vmul.f32 %v2570, %v172
    %v2572 = vmul.f32 %v2570, %v162
    %v2573 = vmul.f32 %v2570, %v174
    %v2574 = vmul.f32 %v2570, %v173
    %v2575 = vmul.f32 %v2570, %v165
    %v2576 = vmul.f32 %v2570, %v175
    %v2583 = vrot.slane %v2571, 2
    %v2584 = vrot.slane %v2572, 2
    %v2585 = vsel %vm629, %v2583, %v2584
    %v2586 = vrot.slane %v2573, 2
    %v2587 = vsel %vm629, %v2584, %v2586
    %v2588 = vrot.slane %v2574, 2
    %v2589 = vrot.slane %v2575, 2
    %v2590 = vsel %vm629, %v2588, %v2589
    %v2591 = vrot.slane %v2576, 2
    %v2592 = vsel %vm629, %v2589, %v2591
    %2593 = vrot.lane.b32.xlu0 %v2585, 124
    %v2594 = vpop.permute.xlu0 %2593
    %2595 = vrot.lane.b32.xlu0 %v2587, 124
    %v2596 = vpop.permute.xlu0 %2595
    %2597 = vrot.lane.b32.xlu0 %v2590, 124
    %v2598 = vpop.permute.xlu0 %2597
    %2599 = vrot.lane.b32.xlu0 %v2592, 124
    %v2600 = vpop.permute.xlu0 %2599
    %v2605 = vadd.f32 %v2565, %v2594
    %v2606 = vadd.f32 %v2566, %v2596
    %v2607 = vadd.f32 %v2567, %v2598
    %v2608 = vadd.f32 %v2568, %v2600
    %s2609 = sld [smem:[#allocation2 + $0x44]]
    %v2610 = vstv %s2609
    %v2611 = vmul.f32 %v2610, %v172
    %v2612 = vmul.f32 %v2610, %v162
    %v2613 = vmul.f32 %v2610, %v174
    %v2614 = vmul.f32 %v2610, %v173
    %v2615 = vmul.f32 %v2610, %v165
    %v2616 = vmul.f32 %v2610, %v175
    %v2623 = vrot.slane %v2611, 2
    %v2624 = vrot.slane %v2612, 2
    %v2625 = vsel %vm629, %v2623, %v2624
    %v2626 = vrot.slane %v2613, 2
    %v2627 = vsel %vm629, %v2624, %v2626
    %v2628 = vrot.slane %v2614, 2
    %v2629 = vrot.slane %v2615, 2
    %v2630 = vsel %vm629, %v2628, %v2629
    %v2631 = vrot.slane %v2616, 2
    %v2632 = vsel %vm629, %v2629, %v2631
    %2633 = vrot.lane.b32.xlu0 %v2625, 123
    %v2634 = vpop.permute.xlu0 %2633
    %2635 = vrot.lane.b32.xlu0 %v2627, 123
    %v2636 = vpop.permute.xlu0 %2635
    %2637 = vrot.lane.b32.xlu0 %v2630, 123
    %v2638 = vpop.permute.xlu0 %2637
    %2639 = vrot.lane.b32.xlu0 %v2632, 123
    %v2640 = vpop.permute.xlu0 %2639
    %v2645 = vadd.f32 %v2605, %v2634
    %v2646 = vadd.f32 %v2606, %v2636
    %v2647 = vadd.f32 %v2607, %v2638
    %v2648 = vadd.f32 %v2608, %v2640
    %s2649 = sld [smem:[#allocation2 + $0x45]]
    %v2650 = vstv %s2649
    %v2651 = vmul.f32 %v2650, %v172
    %v2652 = vmul.f32 %v2650, %v162
    %v2653 = vmul.f32 %v2650, %v174
    %v2654 = vmul.f32 %v2650, %v173
    %v2655 = vmul.f32 %v2650, %v165
    %v2656 = vmul.f32 %v2650, %v175
    %v2663 = vrot.slane %v2651, 2
    %v2664 = vrot.slane %v2652, 2
    %v2665 = vsel %vm629, %v2663, %v2664
    %v2666 = vrot.slane %v2653, 2
    %v2667 = vsel %vm629, %v2664, %v2666
    %v2668 = vrot.slane %v2654, 2
    %v2669 = vrot.slane %v2655, 2
    %v2670 = vsel %vm629, %v2668, %v2669
    %v2671 = vrot.slane %v2656, 2
    %v2672 = vsel %vm629, %v2669, %v2671
    %2673 = vrot.lane.b32.xlu0 %v2665, 122
    %v2674 = vpop.permute.xlu0 %2673
    %2675 = vrot.lane.b32.xlu0 %v2667, 122
    %v2676 = vpop.permute.xlu0 %2675
    %2677 = vrot.lane.b32.xlu0 %v2670, 122
    %v2678 = vpop.permute.xlu0 %2677
    %2679 = vrot.lane.b32.xlu0 %v2672, 122
    %v2680 = vpop.permute.xlu0 %2679
    %v2685 = vadd.f32 %v2645, %v2674
    %v2686 = vadd.f32 %v2646, %v2676
    %v2687 = vadd.f32 %v2647, %v2678
    %v2688 = vadd.f32 %v2648, %v2680
    %s2689 = sld [smem:[#allocation2 + $0x46]]
    %v2690 = vstv %s2689
    %v2691 = vmul.f32 %v2690, %v172
    %v2692 = vmul.f32 %v2690, %v162
    %v2693 = vmul.f32 %v2690, %v174
    %v2694 = vmul.f32 %v2690, %v173
    %v2695 = vmul.f32 %v2690, %v165
    %v2696 = vmul.f32 %v2690, %v175
    %v2703 = vrot.slane %v2691, 3
    %v2704 = vrot.slane %v2692, 3
    %v2705 = vsel %vm902, %v2703, %v2704
    %v2706 = vrot.slane %v2693, 3
    %v2707 = vsel %vm902, %v2704, %v2706
    %v2708 = vrot.slane %v2694, 3
    %v2709 = vrot.slane %v2695, 3
    %v2710 = vsel %vm902, %v2708, %v2709
    %v2711 = vrot.slane %v2696, 3
    %v2712 = vsel %vm902, %v2709, %v2711
    %v2717 = vadd.f32 %v2685, %v2705
    %v2718 = vadd.f32 %v2686, %v2707
    %v2719 = vadd.f32 %v2687, %v2710
    %v2720 = vadd.f32 %v2688, %v2712
    %s2721 = sld [smem:[#allocation2 + $0x47]]
    %v2722 = vstv %s2721
    %v2723 = vmul.f32 %v2722, %v172
    %v2724 = vmul.f32 %v2722, %v162
    %v2725 = vmul.f32 %v2722, %v174
    %v2726 = vmul.f32 %v2722, %v173
    %v2727 = vmul.f32 %v2722, %v165
    %v2728 = vmul.f32 %v2722, %v175
    %v2735 = vrot.slane %v2723, 3
    %v2736 = vrot.slane %v2724, 3
    %v2737 = vsel %vm902, %v2735, %v2736
    %v2738 = vrot.slane %v2725, 3
    %v2739 = vsel %vm902, %v2736, %v2738
    %v2740 = vrot.slane %v2726, 3
    %v2741 = vrot.slane %v2727, 3
    %v2742 = vsel %vm902, %v2740, %v2741
    %v2743 = vrot.slane %v2728, 3
    %v2744 = vsel %vm902, %v2741, %v2743
    %2745 = vrot.lane.b32.xlu0 %v2737, 127
    %v2746 = vpop.permute.xlu0 %2745
    %2747 = vrot.lane.b32.xlu0 %v2739, 127
    %v2748 = vpop.permute.xlu0 %2747
    %2749 = vrot.lane.b32.xlu0 %v2742, 127
    %v2750 = vpop.permute.xlu0 %2749
    %2751 = vrot.lane.b32.xlu0 %v2744, 127
    %v2752 = vpop.permute.xlu0 %2751
    %v2757 = vadd.f32 %v2717, %v2746
    %v2758 = vadd.f32 %v2718, %v2748
    %v2759 = vadd.f32 %v2719, %v2750
    %v2760 = vadd.f32 %v2720, %v2752
    %s2761 = sld [smem:[#allocation2 + $0x48]]
    %v2762 = vstv %s2761
    %v2763 = vmul.f32 %v2762, %v172
    %v2764 = vmul.f32 %v2762, %v162
    %v2765 = vmul.f32 %v2762, %v174
    %v2766 = vmul.f32 %v2762, %v173
    %v2767 = vmul.f32 %v2762, %v165
    %v2768 = vmul.f32 %v2762, %v175
    %v2775 = vrot.slane %v2763, 3
    %v2776 = vrot.slane %v2764, 3
    %v2777 = vsel %vm902, %v2775, %v2776
    %v2778 = vrot.slane %v2765, 3
    %v2779 = vsel %vm902, %v2776, %v2778
    %v2780 = vrot.slane %v2766, 3
    %v2781 = vrot.slane %v2767, 3
    %v2782 = vsel %vm902, %v2780, %v2781
    %v2783 = vrot.slane %v2768, 3
    %v2784 = vsel %vm902, %v2781, %v2783
    %2785 = vrot.lane.b32.xlu0 %v2777, 126
    %v2786 = vpop.permute.xlu0 %2785
    %2787 = vrot.lane.b32.xlu0 %v2779, 126
    %v2788 = vpop.permute.xlu0 %2787
    %2789 = vrot.lane.b32.xlu0 %v2782, 126
    %v2790 = vpop.permute.xlu0 %2789
    %2791 = vrot.lane.b32.xlu0 %v2784, 126
    %v2792 = vpop.permute.xlu0 %2791
    %v2797 = vadd.f32 %v2757, %v2786
    %v2798 = vadd.f32 %v2758, %v2788
    %v2799 = vadd.f32 %v2759, %v2790
    %v2800 = vadd.f32 %v2760, %v2792
    %s2801 = sld [smem:[#allocation2 + $0x49]]
    %v2802 = vstv %s2801
    %v2803 = vmul.f32 %v2802, %v172
    %v2804 = vmul.f32 %v2802, %v162
    %v2805 = vmul.f32 %v2802, %v174
    %v2806 = vmul.f32 %v2802, %v173
    %v2807 = vmul.f32 %v2802, %v165
    %v2808 = vmul.f32 %v2802, %v175
    %v2815 = vrot.slane %v2803, 3
    %v2816 = vrot.slane %v2804, 3
    %v2817 = vsel %vm902, %v2815, %v2816
    %v2818 = vrot.slane %v2805, 3
    %v2819 = vsel %vm902, %v2816, %v2818
    %v2820 = vrot.slane %v2806, 3
    %v2821 = vrot.slane %v2807, 3
    %v2822 = vsel %vm902, %v2820, %v2821
    %v2823 = vrot.slane %v2808, 3
    %v2824 = vsel %vm902, %v2821, %v2823
    %2825 = vrot.lane.b32.xlu0 %v2817, 125
    %v2826 = vpop.permute.xlu0 %2825
    %2827 = vrot.lane.b32.xlu0 %v2819, 125
    %v2828 = vpop.permute.xlu0 %2827
    %2829 = vrot.lane.b32.xlu0 %v2822, 125
    %v2830 = vpop.permute.xlu0 %2829
    %2831 = vrot.lane.b32.xlu0 %v2824, 125
    %v2832 = vpop.permute.xlu0 %2831
    %v2837 = vadd.f32 %v2797, %v2826
    %v2838 = vadd.f32 %v2798, %v2828
    %v2839 = vadd.f32 %v2799, %v2830
    %v2840 = vadd.f32 %v2800, %v2832
    %s2841 = sld [smem:[#allocation2 + $0x4a]]
    %v2842 = vstv %s2841
    %v2843 = vmul.f32 %v2842, %v172
    %v2844 = vmul.f32 %v2842, %v162
    %v2845 = vmul.f32 %v2842, %v174
    %v2846 = vmul.f32 %v2842, %v173
    %v2847 = vmul.f32 %v2842, %v165
    %v2848 = vmul.f32 %v2842, %v175
    %v2855 = vrot.slane %v2843, 3
    %v2856 = vrot.slane %v2844, 3
    %v2857 = vsel %vm902, %v2855, %v2856
    %v2858 = vrot.slane %v2845, 3
    %v2859 = vsel %vm902, %v2856, %v2858
    %v2860 = vrot.slane %v2846, 3
    %v2861 = vrot.slane %v2847, 3
    %v2862 = vsel %vm902, %v2860, %v2861
    %v2863 = vrot.slane %v2848, 3
    %v2864 = vsel %vm902, %v2861, %v2863
    %2865 = vrot.lane.b32.xlu0 %v2857, 124
    %v2866 = vpop.permute.xlu0 %2865
    %2867 = vrot.lane.b32.xlu0 %v2859, 124
    %v2868 = vpop.permute.xlu0 %2867
    %2869 = vrot.lane.b32.xlu0 %v2862, 124
    %v2870 = vpop.permute.xlu0 %2869
    %2871 = vrot.lane.b32.xlu0 %v2864, 124
    %v2872 = vpop.permute.xlu0 %2871
    %v2877 = vadd.f32 %v2837, %v2866
    %v2878 = vadd.f32 %v2838, %v2868
    %v2879 = vadd.f32 %v2839, %v2870
    %v2880 = vadd.f32 %v2840, %v2872
    %s2881 = sld [smem:[#allocation2 + $0x4b]]
    %v2882 = vstv %s2881
    %v2883 = vmul.f32 %v2882, %v172
    %v2884 = vmul.f32 %v2882, %v162
    %v2885 = vmul.f32 %v2882, %v174
    %v2886 = vmul.f32 %v2882, %v173
    %v2887 = vmul.f32 %v2882, %v165
    %v2888 = vmul.f32 %v2882, %v175
    %v2895 = vrot.slane %v2883, 3
    %v2896 = vrot.slane %v2884, 3
    %v2897 = vsel %vm902, %v2895, %v2896
    %v2898 = vrot.slane %v2885, 3
    %v2899 = vsel %vm902, %v2896, %v2898
    %v2900 = vrot.slane %v2886, 3
    %v2901 = vrot.slane %v2887, 3
    %v2902 = vsel %vm902, %v2900, %v2901
    %v2903 = vrot.slane %v2888, 3
    %v2904 = vsel %vm902, %v2901, %v2903
    %2905 = vrot.lane.b32.xlu0 %v2897, 123
    %v2906 = vpop.permute.xlu0 %2905
    %2907 = vrot.lane.b32.xlu0 %v2899, 123
    %v2908 = vpop.permute.xlu0 %2907
    %2909 = vrot.lane.b32.xlu0 %v2902, 123
    %v2910 = vpop.permute.xlu0 %2909
    %2911 = vrot.lane.b32.xlu0 %v2904, 123
    %v2912 = vpop.permute.xlu0 %2911
    %v2917 = vadd.f32 %v2877, %v2906
    %v2918 = vadd.f32 %v2878, %v2908
    %v2919 = vadd.f32 %v2879, %v2910
    %v2920 = vadd.f32 %v2880, %v2912
    %s2921 = sld [smem:[#allocation2 + $0x4c]]
    %v2922 = vstv %s2921
    %v2923 = vmul.f32 %v2922, %v172
    %v2924 = vmul.f32 %v2922, %v162
    %v2925 = vmul.f32 %v2922, %v174
    %v2926 = vmul.f32 %v2922, %v173
    %v2927 = vmul.f32 %v2922, %v165
    %v2928 = vmul.f32 %v2922, %v175
    %v2935 = vrot.slane %v2923, 3
    %v2936 = vrot.slane %v2924, 3
    %v2937 = vsel %vm902, %v2935, %v2936
    %v2938 = vrot.slane %v2925, 3
    %v2939 = vsel %vm902, %v2936, %v2938
    %v2940 = vrot.slane %v2926, 3
    %v2941 = vrot.slane %v2927, 3
    %v2942 = vsel %vm902, %v2940, %v2941
    %v2943 = vrot.slane %v2928, 3
    %v2944 = vsel %vm902, %v2941, %v2943
    %2945 = vrot.lane.b32.xlu0 %v2937, 122
    %v2946 = vpop.permute.xlu0 %2945
    %2947 = vrot.lane.b32.xlu0 %v2939, 122
    %v2948 = vpop.permute.xlu0 %2947
    %2949 = vrot.lane.b32.xlu0 %v2942, 122
    %v2950 = vpop.permute.xlu0 %2949
    %2951 = vrot.lane.b32.xlu0 %v2944, 122
    %v2952 = vpop.permute.xlu0 %2951
    %v2957 = vadd.f32 %v2917, %v2946
    %v2958 = vadd.f32 %v2918, %v2948
    %v2959 = vadd.f32 %v2919, %v2950
    %v2960 = vadd.f32 %v2920, %v2952
    %s2961 = sld [smem:[#allocation2 + $0x4d]]
    %v2962 = vstv %s2961
    %v2963 = vmul.f32 %v2962, %v172
    %v2964 = vmul.f32 %v2962, %v162
    %v2965 = vmul.f32 %v2962, %v174
    %v2966 = vmul.f32 %v2962, %v173
    %v2967 = vmul.f32 %v2962, %v165
    %v2968 = vmul.f32 %v2962, %v175
    %v2975 = vrot.slane %v2963, 4
    %v2976 = vrot.slane %v2964, 4
    %v2977 = vsel %vm1175, %v2975, %v2976
    %v2978 = vrot.slane %v2965, 4
    %v2979 = vsel %vm1175, %v2976, %v2978
    %v2980 = vrot.slane %v2966, 4
    %v2981 = vrot.slane %v2967, 4
    %v2982 = vsel %vm1175, %v2980, %v2981
    %v2983 = vrot.slane %v2968, 4
    %v2984 = vsel %vm1175, %v2981, %v2983
    %v2989 = vadd.f32 %v2957, %v2977
    %v2990 = vadd.f32 %v2958, %v2979
    %v2991 = vadd.f32 %v2959, %v2982
    %v2992 = vadd.f32 %v2960, %v2984
    %s2993 = sld [smem:[#allocation2 + $0x4e]]
    %v2994 = vstv %s2993
    %v2995 = vmul.f32 %v2994, %v172
    %v2996 = vmul.f32 %v2994, %v162
    %v2997 = vmul.f32 %v2994, %v174
    %v2998 = vmul.f32 %v2994, %v173
    %v2999 = vmul.f32 %v2994, %v165
    %v3000 = vmul.f32 %v2994, %v175
    %v3007 = vrot.slane %v2995, 4
    %v3008 = vrot.slane %v2996, 4
    %v3009 = vsel %vm1175, %v3007, %v3008
    %v3010 = vrot.slane %v2997, 4
    %v3011 = vsel %vm1175, %v3008, %v3010
    %v3012 = vrot.slane %v2998, 4
    %v3013 = vrot.slane %v2999, 4
    %v3014 = vsel %vm1175, %v3012, %v3013
    %v3015 = vrot.slane %v3000, 4
    %v3016 = vsel %vm1175, %v3013, %v3015
    %3017 = vrot.lane.b32.xlu0 %v3009, 127
    %v3018 = vpop.permute.xlu0 %3017
    %3019 = vrot.lane.b32.xlu0 %v3011, 127
    %v3020 = vpop.permute.xlu0 %3019
    %3021 = vrot.lane.b32.xlu0 %v3014, 127
    %v3022 = vpop.permute.xlu0 %3021
    %3023 = vrot.lane.b32.xlu0 %v3016, 127
    %v3024 = vpop.permute.xlu0 %3023
    %v3029 = vadd.f32 %v2989, %v3018
    %v3030 = vadd.f32 %v2990, %v3020
    %v3031 = vadd.f32 %v2991, %v3022
    %v3032 = vadd.f32 %v2992, %v3024
    %s3033 = sld [smem:[#allocation2 + $0x4f]]
    %v3034 = vstv %s3033
    %v3035 = vmul.f32 %v3034, %v172
    %v3036 = vmul.f32 %v3034, %v162
    %v3037 = vmul.f32 %v3034, %v174
    %v3038 = vmul.f32 %v3034, %v173
    %v3039 = vmul.f32 %v3034, %v165
    %v3040 = vmul.f32 %v3034, %v175
    %v3047 = vrot.slane %v3035, 4
    %v3048 = vrot.slane %v3036, 4
    %v3049 = vsel %vm1175, %v3047, %v3048
    %v3050 = vrot.slane %v3037, 4
    %v3051 = vsel %vm1175, %v3048, %v3050
    %v3052 = vrot.slane %v3038, 4
    %v3053 = vrot.slane %v3039, 4
    %v3054 = vsel %vm1175, %v3052, %v3053
    %v3055 = vrot.slane %v3040, 4
    %v3056 = vsel %vm1175, %v3053, %v3055
    %3057 = vrot.lane.b32.xlu0 %v3049, 126
    %v3058 = vpop.permute.xlu0 %3057
    %3059 = vrot.lane.b32.xlu0 %v3051, 126
    %v3060 = vpop.permute.xlu0 %3059
    %3061 = vrot.lane.b32.xlu0 %v3054, 126
    %v3062 = vpop.permute.xlu0 %3061
    %3063 = vrot.lane.b32.xlu0 %v3056, 126
    %v3064 = vpop.permute.xlu0 %3063
    %v3069 = vadd.f32 %v3029, %v3058
    %v3070 = vadd.f32 %v3030, %v3060
    %v3071 = vadd.f32 %v3031, %v3062
    %v3072 = vadd.f32 %v3032, %v3064
    %s3073 = sld [smem:[#allocation2 + $0x50]]
    %v3074 = vstv %s3073
    %v3075 = vmul.f32 %v3074, %v172
    %v3076 = vmul.f32 %v3074, %v162
    %v3077 = vmul.f32 %v3074, %v174
    %v3078 = vmul.f32 %v3074, %v173
    %v3079 = vmul.f32 %v3074, %v165
    %v3080 = vmul.f32 %v3074, %v175
    %v3087 = vrot.slane %v3075, 4
    %v3088 = vrot.slane %v3076, 4
    %v3089 = vsel %vm1175, %v3087, %v3088
    %v3090 = vrot.slane %v3077, 4
    %v3091 = vsel %vm1175, %v3088, %v3090
    %v3092 = vrot.slane %v3078, 4
    %v3093 = vrot.slane %v3079, 4
    %v3094 = vsel %vm1175, %v3092, %v3093
    %v3095 = vrot.slane %v3080, 4
    %v3096 = vsel %vm1175, %v3093, %v3095
    %3097 = vrot.lane.b32.xlu0 %v3089, 125
    %v3098 = vpop.permute.xlu0 %3097
    %3099 = vrot.lane.b32.xlu0 %v3091, 125
    %v3100 = vpop.permute.xlu0 %3099
    %3101 = vrot.lane.b32.xlu0 %v3094, 125
    %v3102 = vpop.permute.xlu0 %3101
    %3103 = vrot.lane.b32.xlu0 %v3096, 125
    %v3104 = vpop.permute.xlu0 %3103
    %v3109 = vadd.f32 %v3069, %v3098
    %v3110 = vadd.f32 %v3070, %v3100
    %v3111 = vadd.f32 %v3071, %v3102
    %v3112 = vadd.f32 %v3072, %v3104
    %s3113 = sld [smem:[#allocation2 + $0x51]]
    %v3114 = vstv %s3113
    %v3115 = vmul.f32 %v3114, %v172
    %v3116 = vmul.f32 %v3114, %v162
    %v3117 = vmul.f32 %v3114, %v174
    %v3118 = vmul.f32 %v3114, %v173
    %v3119 = vmul.f32 %v3114, %v165
    %v3120 = vmul.f32 %v3114, %v175
    %v3127 = vrot.slane %v3115, 4
    %v3128 = vrot.slane %v3116, 4
    %v3129 = vsel %vm1175, %v3127, %v3128
    %v3130 = vrot.slane %v3117, 4
    %v3131 = vsel %vm1175, %v3128, %v3130
    %v3132 = vrot.slane %v3118, 4
    %v3133 = vrot.slane %v3119, 4
    %v3134 = vsel %vm1175, %v3132, %v3133
    %v3135 = vrot.slane %v3120, 4
    %v3136 = vsel %vm1175, %v3133, %v3135
    %3137 = vrot.lane.b32.xlu0 %v3129, 124
    %v3138 = vpop.permute.xlu0 %3137
    %3139 = vrot.lane.b32.xlu0 %v3131, 124
    %v3140 = vpop.permute.xlu0 %3139
    %3141 = vrot.lane.b32.xlu0 %v3134, 124
    %v3142 = vpop.permute.xlu0 %3141
    %3143 = vrot.lane.b32.xlu0 %v3136, 124
    %v3144 = vpop.permute.xlu0 %3143
    %v3149 = vadd.f32 %v3109, %v3138
    %v3150 = vadd.f32 %v3110, %v3140
    %v3151 = vadd.f32 %v3111, %v3142
    %v3152 = vadd.f32 %v3112, %v3144
    %s3153 = sld [smem:[#allocation2 + $0x52]]
    %v3154 = vstv %s3153
    %v3155 = vmul.f32 %v3154, %v172
    %v3156 = vmul.f32 %v3154, %v162
    %v3157 = vmul.f32 %v3154, %v174
    %v3158 = vmul.f32 %v3154, %v173
    %v3159 = vmul.f32 %v3154, %v165
    %v3160 = vmul.f32 %v3154, %v175
    %v3167 = vrot.slane %v3155, 4
    %v3168 = vrot.slane %v3156, 4
    %v3169 = vsel %vm1175, %v3167, %v3168
    %v3170 = vrot.slane %v3157, 4
    %v3171 = vsel %vm1175, %v3168, %v3170
    %v3172 = vrot.slane %v3158, 4
    %v3173 = vrot.slane %v3159, 4
    %v3174 = vsel %vm1175, %v3172, %v3173
    %v3175 = vrot.slane %v3160, 4
    %v3176 = vsel %vm1175, %v3173, %v3175
    %3177 = vrot.lane.b32.xlu0 %v3169, 123
    %v3178 = vpop.permute.xlu0 %3177
    %3179 = vrot.lane.b32.xlu0 %v3171, 123
    %v3180 = vpop.permute.xlu0 %3179
    %3181 = vrot.lane.b32.xlu0 %v3174, 123
    %v3182 = vpop.permute.xlu0 %3181
    %3183 = vrot.lane.b32.xlu0 %v3176, 123
    %v3184 = vpop.permute.xlu0 %3183
    %v3189 = vadd.f32 %v3149, %v3178
    %v3190 = vadd.f32 %v3150, %v3180
    %v3191 = vadd.f32 %v3151, %v3182
    %v3192 = vadd.f32 %v3152, %v3184
    %s3193 = sld [smem:[#allocation2 + $0x53]]
    %v3194 = vstv %s3193
    %v3195 = vmul.f32 %v3194, %v172
    %v3196 = vmul.f32 %v3194, %v162
    %v3197 = vmul.f32 %v3194, %v174
    %v3198 = vmul.f32 %v3194, %v173
    %v3199 = vmul.f32 %v3194, %v165
    %v3200 = vmul.f32 %v3194, %v175
    %v3207 = vrot.slane %v3195, 4
    %v3208 = vrot.slane %v3196, 4
    %v3209 = vsel %vm1175, %v3207, %v3208
    %v3210 = vrot.slane %v3197, 4
    %v3211 = vsel %vm1175, %v3208, %v3210
    %v3212 = vrot.slane %v3198, 4
    %v3213 = vrot.slane %v3199, 4
    %v3214 = vsel %vm1175, %v3212, %v3213
    %v3215 = vrot.slane %v3200, 4
    %v3216 = vsel %vm1175, %v3213, %v3215
    %3217 = vrot.lane.b32.xlu0 %v3209, 122
    %v3218 = vpop.permute.xlu0 %3217
    %3219 = vrot.lane.b32.xlu0 %v3211, 122
    %v3220 = vpop.permute.xlu0 %3219
    %3221 = vrot.lane.b32.xlu0 %v3214, 122
    %v3222 = vpop.permute.xlu0 %3221
    %3223 = vrot.lane.b32.xlu0 %v3216, 122
    %v3224 = vpop.permute.xlu0 %3223
    %v3229 = vadd.f32 %v3189, %v3218
    %v3230 = vadd.f32 %v3190, %v3220
    %v3231 = vadd.f32 %v3191, %v3222
    %v3232 = vadd.f32 %v3192, %v3224
    %s3233 = sld [smem:[#allocation2 + $0x54]]
    %v3234 = vstv %s3233
    %v3235 = vmul.f32 %v3234, %v172
    %v3236 = vmul.f32 %v3234, %v162
    %v3237 = vmul.f32 %v3234, %v174
    %v3238 = vmul.f32 %v3234, %v173
    %v3239 = vmul.f32 %v3234, %v165
    %v3240 = vmul.f32 %v3234, %v175
    %v3247 = vrot.slane %v3235, 5
    %v3248 = vrot.slane %v3236, 5
    %v3249 = vsel %vm115, %v3247, %v3248
    %v3250 = vrot.slane %v3237, 5
    %v3251 = vsel %vm115, %v3248, %v3250
    %v3252 = vrot.slane %v3238, 5
    %v3253 = vrot.slane %v3239, 5
    %v3254 = vsel %vm115, %v3252, %v3253
    %v3255 = vrot.slane %v3240, 5
    %v3256 = vsel %vm115, %v3253, %v3255
    %v3261 = vadd.f32 %v3229, %v3249
    %v3262 = vadd.f32 %v3230, %v3251
    %v3263 = vadd.f32 %v3231, %v3254
    %v3264 = vadd.f32 %v3232, %v3256
    %s3265 = sld [smem:[#allocation2 + $0x55]]
    %v3266 = vstv %s3265
    %v3267 = vmul.f32 %v3266, %v172
    %v3268 = vmul.f32 %v3266, %v162
    %v3269 = vmul.f32 %v3266, %v174
    %v3270 = vmul.f32 %v3266, %v173
    %v3271 = vmul.f32 %v3266, %v165
    %v3272 = vmul.f32 %v3266, %v175
    %v3279 = vrot.slane %v3267, 5
    %v3280 = vrot.slane %v3268, 5
    %v3281 = vsel %vm115, %v3279, %v3280
    %v3282 = vrot.slane %v3269, 5
    %v3283 = vsel %vm115, %v3280, %v3282
    %v3284 = vrot.slane %v3270, 5
    %v3285 = vrot.slane %v3271, 5
    %v3286 = vsel %vm115, %v3284, %v3285
    %v3287 = vrot.slane %v3272, 5
    %v3288 = vsel %vm115, %v3285, %v3287
    %3289 = vrot.lane.b32.xlu0 %v3281, 127
    %v3290 = vpop.permute.xlu0 %3289
    %3291 = vrot.lane.b32.xlu0 %v3283, 127
    %v3292 = vpop.permute.xlu0 %3291
    %3293 = vrot.lane.b32.xlu0 %v3286, 127
    %v3294 = vpop.permute.xlu0 %3293
    %3295 = vrot.lane.b32.xlu0 %v3288, 127
    %v3296 = vpop.permute.xlu0 %3295
    %v3301 = vadd.f32 %v3261, %v3290
    %v3302 = vadd.f32 %v3262, %v3292
    %v3303 = vadd.f32 %v3263, %v3294
    %v3304 = vadd.f32 %v3264, %v3296
    %s3305 = sld [smem:[#allocation2 + $0x56]]
    %v3306 = vstv %s3305
    %v3307 = vmul.f32 %v3306, %v172
    %v3308 = vmul.f32 %v3306, %v162
    %v3309 = vmul.f32 %v3306, %v174
    %v3310 = vmul.f32 %v3306, %v173
    %v3311 = vmul.f32 %v3306, %v165
    %v3312 = vmul.f32 %v3306, %v175
    %v3319 = vrot.slane %v3307, 5
    %v3320 = vrot.slane %v3308, 5
    %v3321 = vsel %vm115, %v3319, %v3320
    %v3322 = vrot.slane %v3309, 5
    %v3323 = vsel %vm115, %v3320, %v3322
    %v3324 = vrot.slane %v3310, 5
    %v3325 = vrot.slane %v3311, 5
    %v3326 = vsel %vm115, %v3324, %v3325
    %v3327 = vrot.slane %v3312, 5
    %v3328 = vsel %vm115, %v3325, %v3327
    %3329 = vrot.lane.b32.xlu0 %v3321, 126
    %v3330 = vpop.permute.xlu0 %3329
    %3331 = vrot.lane.b32.xlu0 %v3323, 126
    %v3332 = vpop.permute.xlu0 %3331
    %3333 = vrot.lane.b32.xlu0 %v3326, 126
    %v3334 = vpop.permute.xlu0 %3333
    %3335 = vrot.lane.b32.xlu0 %v3328, 126
    %v3336 = vpop.permute.xlu0 %3335
    %v3341 = vadd.f32 %v3301, %v3330
    %v3342 = vadd.f32 %v3302, %v3332
    %v3343 = vadd.f32 %v3303, %v3334
    %v3344 = vadd.f32 %v3304, %v3336
    %s3345 = sld [smem:[#allocation2 + $0x57]]
    %v3346 = vstv %s3345
    %v3347 = vmul.f32 %v3346, %v172
    %v3348 = vmul.f32 %v3346, %v162
    %v3349 = vmul.f32 %v3346, %v174
    %v3350 = vmul.f32 %v3346, %v173
    %v3351 = vmul.f32 %v3346, %v165
    %v3352 = vmul.f32 %v3346, %v175
    %v3359 = vrot.slane %v3347, 5
    %v3360 = vrot.slane %v3348, 5
    %v3361 = vsel %vm115, %v3359, %v3360
    %v3362 = vrot.slane %v3349, 5
    %v3363 = vsel %vm115, %v3360, %v3362
    %v3364 = vrot.slane %v3350, 5
    %v3365 = vrot.slane %v3351, 5
    %v3366 = vsel %vm115, %v3364, %v3365
    %v3367 = vrot.slane %v3352, 5
    %v3368 = vsel %vm115, %v3365, %v3367
    %3369 = vrot.lane.b32.xlu0 %v3361, 125
    %v3370 = vpop.permute.xlu0 %3369
    %3371 = vrot.lane.b32.xlu0 %v3363, 125
    %v3372 = vpop.permute.xlu0 %3371
    %3373 = vrot.lane.b32.xlu0 %v3366, 125
    %v3374 = vpop.permute.xlu0 %3373
    %3375 = vrot.lane.b32.xlu0 %v3368, 125
    %v3376 = vpop.permute.xlu0 %3375
    %v3381 = vadd.f32 %v3341, %v3370
    %v3382 = vadd.f32 %v3342, %v3372
    %v3383 = vadd.f32 %v3343, %v3374
    %v3384 = vadd.f32 %v3344, %v3376
    %s3385 = sld [smem:[#allocation2 + $0x58]]
    %v3386 = vstv %s3385
    %v3387 = vmul.f32 %v3386, %v172
    %v3388 = vmul.f32 %v3386, %v162
    %v3389 = vmul.f32 %v3386, %v174
    %v3390 = vmul.f32 %v3386, %v173
    %v3391 = vmul.f32 %v3386, %v165
    %v3392 = vmul.f32 %v3386, %v175
    %v3399 = vrot.slane %v3387, 5
    %v3400 = vrot.slane %v3388, 5
    %v3401 = vsel %vm115, %v3399, %v3400
    %v3402 = vrot.slane %v3389, 5
    %v3403 = vsel %vm115, %v3400, %v3402
    %v3404 = vrot.slane %v3390, 5
    %v3405 = vrot.slane %v3391, 5
    %v3406 = vsel %vm115, %v3404, %v3405
    %v3407 = vrot.slane %v3392, 5
    %v3408 = vsel %vm115, %v3405, %v3407
    %3409 = vrot.lane.b32.xlu0 %v3401, 124
    %v3410 = vpop.permute.xlu0 %3409
    %3411 = vrot.lane.b32.xlu0 %v3403, 124
    %v3412 = vpop.permute.xlu0 %3411
    %3413 = vrot.lane.b32.xlu0 %v3406, 124
    %v3414 = vpop.permute.xlu0 %3413
    %3415 = vrot.lane.b32.xlu0 %v3408, 124
    %v3416 = vpop.permute.xlu0 %3415
    %v3421 = vadd.f32 %v3381, %v3410
    %v3422 = vadd.f32 %v3382, %v3412
    %v3423 = vadd.f32 %v3383, %v3414
    %v3424 = vadd.f32 %v3384, %v3416
    %s3425 = sld [smem:[#allocation2 + $0x59]]
    %v3426 = vstv %s3425
    %v3427 = vmul.f32 %v3426, %v172
    %v3428 = vmul.f32 %v3426, %v162
    %v3429 = vmul.f32 %v3426, %v174
    %v3430 = vmul.f32 %v3426, %v173
    %v3431 = vmul.f32 %v3426, %v165
    %v3432 = vmul.f32 %v3426, %v175
    %v3439 = vrot.slane %v3427, 5
    %v3440 = vrot.slane %v3428, 5
    %v3441 = vsel %vm115, %v3439, %v3440
    %v3442 = vrot.slane %v3429, 5
    %v3443 = vsel %vm115, %v3440, %v3442
    %v3444 = vrot.slane %v3430, 5
    %v3445 = vrot.slane %v3431, 5
    %v3446 = vsel %vm115, %v3444, %v3445
    %v3447 = vrot.slane %v3432, 5
    %v3448 = vsel %vm115, %v3445, %v3447
    %3449 = vrot.lane.b32.xlu0 %v3441, 123
    %v3450 = vpop.permute.xlu0 %3449
    %3451 = vrot.lane.b32.xlu0 %v3443, 123
    %v3452 = vpop.permute.xlu0 %3451
    %3453 = vrot.lane.b32.xlu0 %v3446, 123
    %v3454 = vpop.permute.xlu0 %3453
    %3455 = vrot.lane.b32.xlu0 %v3448, 123
    %v3456 = vpop.permute.xlu0 %3455
    %v3461 = vadd.f32 %v3421, %v3450
    %v3462 = vadd.f32 %v3422, %v3452
    %v3463 = vadd.f32 %v3423, %v3454
    %v3464 = vadd.f32 %v3424, %v3456
    %s3465 = sld [smem:[#allocation2 + $0x5a]]
    %v3466 = vstv %s3465
    %v3467 = vmul.f32 %v3466, %v172
    %v3468 = vmul.f32 %v3466, %v162
    %v3469 = vmul.f32 %v3466, %v174
    %v3470 = vmul.f32 %v3466, %v173
    %v3471 = vmul.f32 %v3466, %v165
    %v3472 = vmul.f32 %v3466, %v175
    %v3479 = vrot.slane %v3467, 5
    %v3480 = vrot.slane %v3468, 5
    %v3481 = vsel %vm115, %v3479, %v3480
    %v3482 = vrot.slane %v3469, 5
    %v3483 = vsel %vm115, %v3480, %v3482
    %v3484 = vrot.slane %v3470, 5
    %v3485 = vrot.slane %v3471, 5
    %v3486 = vsel %vm115, %v3484, %v3485
    %v3487 = vrot.slane %v3472, 5
    %v3488 = vsel %vm115, %v3485, %v3487
    %3489 = vrot.lane.b32.xlu0 %v3481, 122
    %v3490 = vpop.permute.xlu0 %3489
    %3491 = vrot.lane.b32.xlu0 %v3483, 122
    %v3492 = vpop.permute.xlu0 %3491
    %3493 = vrot.lane.b32.xlu0 %v3486, 122
    %v3494 = vpop.permute.xlu0 %3493
    %3495 = vrot.lane.b32.xlu0 %v3488, 122
    %v3496 = vpop.permute.xlu0 %3495
    %v3501 = vadd.f32 %v3461, %v3490
    %v3502 = vadd.f32 %v3462, %v3492
    %v3503 = vadd.f32 %v3463, %v3494
    %v3504 = vadd.f32 %v3464, %v3496
    %s3505 = sld [smem:[#allocation2 + $0x5b]]
    %v3506 = vstv %s3505
    %v3507 = vmul.f32 %v3506, %v172
    %v3508 = vmul.f32 %v3506, %v162
    %v3509 = vmul.f32 %v3506, %v174
    %v3510 = vmul.f32 %v3506, %v173
    %v3511 = vmul.f32 %v3506, %v165
    %v3512 = vmul.f32 %v3506, %v175
    %v3519 = vrot.slane %v3507, 6
    %v3520 = vrot.slane %v3508, 6
    %v3521 = vsel %vm1720, %v3519, %v3520
    %v3522 = vrot.slane %v3509, 6
    %v3523 = vsel %vm1720, %v3520, %v3522
    %v3524 = vrot.slane %v3510, 6
    %v3525 = vrot.slane %v3511, 6
    %v3526 = vsel %vm1720, %v3524, %v3525
    %v3527 = vrot.slane %v3512, 6
    %v3528 = vsel %vm1720, %v3525, %v3527
    %v3533 = vadd.f32 %v3501, %v3521
    %v3534 = vadd.f32 %v3502, %v3523
    %v3535 = vadd.f32 %v3503, %v3526
    %v3536 = vadd.f32 %v3504, %v3528
    %s3537 = sld [smem:[#allocation2 + $0x5c]]
    %v3538 = vstv %s3537
    %v3539 = vmul.f32 %v3538, %v172
    %v3540 = vmul.f32 %v3538, %v162
    %v3541 = vmul.f32 %v3538, %v174
    %v3542 = vmul.f32 %v3538, %v173
    %v3543 = vmul.f32 %v3538, %v165
    %v3544 = vmul.f32 %v3538, %v175
    %v3551 = vrot.slane %v3539, 6
    %v3552 = vrot.slane %v3540, 6
    %v3553 = vsel %vm1720, %v3551, %v3552
    %v3554 = vrot.slane %v3541, 6
    %v3555 = vsel %vm1720, %v3552, %v3554
    %v3556 = vrot.slane %v3542, 6
    %v3557 = vrot.slane %v3543, 6
    %v3558 = vsel %vm1720, %v3556, %v3557
    %v3559 = vrot.slane %v3544, 6
    %v3560 = vsel %vm1720, %v3557, %v3559
    %3561 = vrot.lane.b32.xlu0 %v3553, 127
    %v3562 = vpop.permute.xlu0 %3561
    %3563 = vrot.lane.b32.xlu0 %v3555, 127
    %v3564 = vpop.permute.xlu0 %3563
    %3565 = vrot.lane.b32.xlu0 %v3558, 127
    %v3566 = vpop.permute.xlu0 %3565
    %3567 = vrot.lane.b32.xlu0 %v3560, 127
    %v3568 = vpop.permute.xlu0 %3567
    %v3573 = vadd.f32 %v3533, %v3562
    %v3574 = vadd.f32 %v3534, %v3564
    %v3575 = vadd.f32 %v3535, %v3566
    %v3576 = vadd.f32 %v3536, %v3568
    %s3577 = sld [smem:[#allocation2 + $0x5d]]
    %v3578 = vstv %s3577
    %v3579 = vmul.f32 %v3578, %v172
    %v3580 = vmul.f32 %v3578, %v162
    %v3581 = vmul.f32 %v3578, %v174
    %v3582 = vmul.f32 %v3578, %v173
    %v3583 = vmul.f32 %v3578, %v165
    %v3584 = vmul.f32 %v3578, %v175
    %v3591 = vrot.slane %v3579, 6
    %v3592 = vrot.slane %v3580, 6
    %v3593 = vsel %vm1720, %v3591, %v3592
    %v3594 = vrot.slane %v3581, 6
    %v3595 = vsel %vm1720, %v3592, %v3594
    %v3596 = vrot.slane %v3582, 6
    %v3597 = vrot.slane %v3583, 6
    %v3598 = vsel %vm1720, %v3596, %v3597
    %v3599 = vrot.slane %v3584, 6
    %v3600 = vsel %vm1720, %v3597, %v3599
    %3601 = vrot.lane.b32.xlu0 %v3593, 126
    %v3602 = vpop.permute.xlu0 %3601
    %3603 = vrot.lane.b32.xlu0 %v3595, 126
    %v3604 = vpop.permute.xlu0 %3603
    %3605 = vrot.lane.b32.xlu0 %v3598, 126
    %v3606 = vpop.permute.xlu0 %3605
    %3607 = vrot.lane.b32.xlu0 %v3600, 126
    %v3608 = vpop.permute.xlu0 %3607
    %v3613 = vadd.f32 %v3573, %v3602
    %v3614 = vadd.f32 %v3574, %v3604
    %v3615 = vadd.f32 %v3575, %v3606
    %v3616 = vadd.f32 %v3576, %v3608
    %s3617 = sld [smem:[#allocation2 + $0x5e]]
    %v3618 = vstv %s3617
    %v3619 = vmul.f32 %v3618, %v172
    %v3620 = vmul.f32 %v3618, %v162
    %v3621 = vmul.f32 %v3618, %v174
    %v3622 = vmul.f32 %v3618, %v173
    %v3623 = vmul.f32 %v3618, %v165
    %v3624 = vmul.f32 %v3618, %v175
    %v3631 = vrot.slane %v3619, 6
    %v3632 = vrot.slane %v3620, 6
    %v3633 = vsel %vm1720, %v3631, %v3632
    %v3634 = vrot.slane %v3621, 6
    %v3635 = vsel %vm1720, %v3632, %v3634
    %v3636 = vrot.slane %v3622, 6
    %v3637 = vrot.slane %v3623, 6
    %v3638 = vsel %vm1720, %v3636, %v3637
    %v3639 = vrot.slane %v3624, 6
    %v3640 = vsel %vm1720, %v3637, %v3639
    %3641 = vrot.lane.b32.xlu0 %v3633, 125
    %v3642 = vpop.permute.xlu0 %3641
    %3643 = vrot.lane.b32.xlu0 %v3635, 125
    %v3644 = vpop.permute.xlu0 %3643
    %3645 = vrot.lane.b32.xlu0 %v3638, 125
    %v3646 = vpop.permute.xlu0 %3645
    %3647 = vrot.lane.b32.xlu0 %v3640, 125
    %v3648 = vpop.permute.xlu0 %3647
    %v3653 = vadd.f32 %v3613, %v3642
    %v3654 = vadd.f32 %v3614, %v3644
    %v3655 = vadd.f32 %v3615, %v3646
    %v3656 = vadd.f32 %v3616, %v3648
    %s3657 = sld [smem:[#allocation2 + $0x5f]]
    %v3658 = vstv %s3657
    %v3659 = vmul.f32 %v3658, %v172
    %v3660 = vmul.f32 %v3658, %v162
    %v3661 = vmul.f32 %v3658, %v174
    %v3662 = vmul.f32 %v3658, %v173
    %v3663 = vmul.f32 %v3658, %v165
    %v3664 = vmul.f32 %v3658, %v175
    %v3671 = vrot.slane %v3659, 6
    %v3672 = vrot.slane %v3660, 6
    %v3673 = vsel %vm1720, %v3671, %v3672
    %v3674 = vrot.slane %v3661, 6
    %v3675 = vsel %vm1720, %v3672, %v3674
    %v3676 = vrot.slane %v3662, 6
    %v3677 = vrot.slane %v3663, 6
    %v3678 = vsel %vm1720, %v3676, %v3677
    %v3679 = vrot.slane %v3664, 6
    %v3680 = vsel %vm1720, %v3677, %v3679
    %3681 = vrot.lane.b32.xlu0 %v3673, 124
    %v3682 = vpop.permute.xlu0 %3681
    %3683 = vrot.lane.b32.xlu0 %v3675, 124
    %v3684 = vpop.permute.xlu0 %3683
    %3685 = vrot.lane.b32.xlu0 %v3678, 124
    %v3686 = vpop.permute.xlu0 %3685
    %3687 = vrot.lane.b32.xlu0 %v3680, 124
    %v3688 = vpop.permute.xlu0 %3687
    %v3693 = vadd.f32 %v3653, %v3682
    %v3694 = vadd.f32 %v3654, %v3684
    %v3695 = vadd.f32 %v3655, %v3686
    %v3696 = vadd.f32 %v3656, %v3688
    %s3697 = sld [smem:[#allocation2 + $0x60]]
    %v3698 = vstv %s3697
    %v3699 = vmul.f32 %v3698, %v172
    %v3700 = vmul.f32 %v3698, %v162
    %v3701 = vmul.f32 %v3698, %v174
    %v3702 = vmul.f32 %v3698, %v173
    %v3703 = vmul.f32 %v3698, %v165
    %v3704 = vmul.f32 %v3698, %v175
    %v3711 = vrot.slane %v3699, 6
    %v3712 = vrot.slane %v3700, 6
    %v3713 = vsel %vm1720, %v3711, %v3712
    %v3714 = vrot.slane %v3701, 6
    %v3715 = vsel %vm1720, %v3712, %v3714
    %v3716 = vrot.slane %v3702, 6
    %v3717 = vrot.slane %v3703, 6
    %v3718 = vsel %vm1720, %v3716, %v3717
    %v3719 = vrot.slane %v3704, 6
    %v3720 = vsel %vm1720, %v3717, %v3719
    %3721 = vrot.lane.b32.xlu0 %v3713, 123
    %v3722 = vpop.permute.xlu0 %3721
    %3723 = vrot.lane.b32.xlu0 %v3715, 123
    %v3724 = vpop.permute.xlu0 %3723
    %3725 = vrot.lane.b32.xlu0 %v3718, 123
    %v3726 = vpop.permute.xlu0 %3725
    %3727 = vrot.lane.b32.xlu0 %v3720, 123
    %v3728 = vpop.permute.xlu0 %3727
    %v3733 = vadd.f32 %v3693, %v3722
    %v3734 = vadd.f32 %v3694, %v3724
    %v3735 = vadd.f32 %v3695, %v3726
    %v3736 = vadd.f32 %v3696, %v3728
    %s3737 = sld [smem:[#allocation2 + $0x61]]
    %v3738 = vstv %s3737
    %v3739 = vmul.f32 %v3738, %v172
    %v3740 = vmul.f32 %v3738, %v162
    %v3741 = vmul.f32 %v3738, %v174
    %v3742 = vmul.f32 %v3738, %v173
    %v3743 = vmul.f32 %v3738, %v165
    %v3744 = vmul.f32 %v3738, %v175
    %v3751 = vrot.slane %v3739, 6
    %v3752 = vrot.slane %v3740, 6
    %v3753 = vsel %vm1720, %v3751, %v3752
    %v3754 = vrot.slane %v3741, 6
    %v3755 = vsel %vm1720, %v3752, %v3754
    %v3756 = vrot.slane %v3742, 6
    %v3757 = vrot.slane %v3743, 6
    %v3758 = vsel %vm1720, %v3756, %v3757
    %v3759 = vrot.slane %v3744, 6
    %v3760 = vsel %vm1720, %v3757, %v3759
    %3761 = vrot.lane.b32.xlu0 %v3753, 122
    %v3762 = vpop.permute.xlu0 %3761
    %3763 = vrot.lane.b32.xlu0 %v3755, 122
    %v3764 = vpop.permute.xlu0 %3763
    %3765 = vrot.lane.b32.xlu0 %v3758, 122
    %v3766 = vpop.permute.xlu0 %3765
    %3767 = vrot.lane.b32.xlu0 %v3760, 122
    %v3768 = vpop.permute.xlu0 %3767
    %v3773 = vadd.f32 %v3733, %v3762
    %v3774 = vadd.f32 %v3734, %v3764
    %v3775 = vadd.f32 %v3735, %v3766
    %v3776 = vadd.f32 %v3736, %v3768
    %v3777 = vsub.f32 0.0, %v3773
    %v3778 = vsub.f32 0.0, %v3774
    %v3779 = vsub.f32 0.0, %v3775
    %v3780 = vsub.f32 0.0, %v3776
    %v3781 = vmul.f32 %v3777, 1.442695
    %v3782 = vpow.pop %v3781
    %v3783 = vmul.f32 %v3778, 1.442695
    %v3784 = vpow.pop %v3783
    %v3785 = vmul.f32 %v3779, 1.442695
    %v3786 = vpow.pop %v3785
    %v3787 = vmul.f32 %v3780, 1.442695
    %v3788 = vpow.pop %v3787
    %v3789 = vadd.f32 %v3782, 1.0
    %v3790 = vadd.f32 %v3784, 1.0
    %v3791 = vadd.f32 %v3786, 1.0
    %v3792 = vadd.f32 %v3788, 1.0
    %v3793 = vrcp.pop %v3789
    %v3794 = vmul.f32 %v3789, %v3793
    %v3795 = vsub.f32 1.0, %v3794
    %v3796 = vmul.f32 %v3793, %v3795
    %v3797 = vadd.f32 %v3793, %v3796
    %vm3798 = vweird.f32 %v3789
    %vm3799 = vweird.f32 %v3793
    %vm3800 = vmor %vm3798, %vm3799
    %v3801 = vsel %vm3800, %v3793, %v3797
    %v3802 = vand.u32 2147483647, %v3789
    %vm3803 = vcmp.eq.f32.partialorder %v3802, 8.507059e+37
    %v3804 = vand.u32 %v3789, 2147483648
    %v3805 = vor.u32 1.1754944e-38, %v3804
    %v3806 = vsel %vm3803, %v3805, %v3801
    %v3807 = vmul.f32 1.0, %v3806
    %v3808 = vrcp.pop %v3790
    %v3809 = vmul.f32 %v3790, %v3808
    %v3810 = vsub.f32 1.0, %v3809
    %v3811 = vmul.f32 %v3808, %v3810
    %v3812 = vadd.f32 %v3808, %v3811
    %vm3813 = vweird.f32 %v3790
    %vm3814 = vweird.f32 %v3808
    %vm3815 = vmor %vm3813, %vm3814
    %v3816 = vsel %vm3815, %v3808, %v3812
    %v3817 = vand.u32 2147483647, %v3790
    %vm3818 = vcmp.eq.f32.partialorder %v3817, 8.507059e+37
    %v3819 = vand.u32 %v3790, 2147483648
    %v3820 = vor.u32 1.1754944e-38, %v3819
    %v3821 = vsel %vm3818, %v3820, %v3816
    %v3822 = vmul.f32 1.0, %v3821
    %v3823 = vrcp.pop %v3791
    %v3824 = vmul.f32 %v3791, %v3823
    %v3825 = vsub.f32 1.0, %v3824
    %v3826 = vmul.f32 %v3823, %v3825
    %v3827 = vadd.f32 %v3823, %v3826
    %vm3828 = vweird.f32 %v3791
    %vm3829 = vweird.f32 %v3823
    %vm3830 = vmor %vm3828, %vm3829
    %v3831 = vsel %vm3830, %v3823, %v3827
    %v3832 = vand.u32 2147483647, %v3791
    %vm3833 = vcmp.eq.f32.partialorder %v3832, 8.507059e+37
    %v3834 = vand.u32 %v3791, 2147483648
    %v3835 = vor.u32 1.1754944e-38, %v3834
    %v3836 = vsel %vm3833, %v3835, %v3831
    %v3837 = vmul.f32 1.0, %v3836
    %v3838 = vrcp.pop %v3792
    %v3839 = vmul.f32 %v3792, %v3838
    %v3840 = vsub.f32 1.0, %v3839
    %v3841 = vmul.f32 %v3838, %v3840
    %v3842 = vadd.f32 %v3838, %v3841
    %vm3843 = vweird.f32 %v3792
    %vm3844 = vweird.f32 %v3838
    %vm3845 = vmor %vm3843, %vm3844
    %v3846 = vsel %vm3845, %v3838, %v3842
    %v3847 = vand.u32 2147483647, %v3792
    %vm3848 = vcmp.eq.f32.partialorder %v3847, 8.507059e+37
    %v3849 = vand.u32 %v3792, 2147483648
    %v3850 = vor.u32 1.1754944e-38, %v3849
    %v3851 = vsel %vm3848, %v3850, %v3846
    %v3852 = vmul.f32 1.0, %v3851
    %vm3853 = vcmask 130048
    %3854 = vst.msk [vmem:[#allocation7] sm:$0xff] %vm3853, %v3807
    %3855 = vst.msk [vmem:[#allocation7 + $0x8] sm:$0xff] %vm3853, %v3822
    %3856 = vst.msk [vmem:[#allocation7 + $0x10] sm:$0xff] %vm3853, %v3837
    %3857 = vst.msk [vmem:[#allocation7 + $0x18] sm:$0xff] %vm3853, %v3852
    // Predicated region
    $region18: #{tpu_custom_call.1} parent=1 // pred_check
      _
    $region19: #{tpu_custom_call.1} parent=1 // pred_check_branch
      %3859 = sbr.rel (0) target = $region21
    $region20: #{tpu_custom_call.1} parent=1 // pred_region
      %3861 = vsyncadd [#allocation4], 0
      %s3862 = sshll.u32 [#allocation7], 4
      %s3863 = int_to_ptr.vmem [resolvable:$true] %s3862
      %s3864 = sshll.u32 %s2, 4
      %s3865 = int_to_ptr.hbm [resolvable:$true] %s3864
      %3870 = dma.vmem_to_hbm [thread:$0]  %s3863, 512, %s3865, [#allocation4], 128, 128, 8
    $region21: #{tpu_custom_call.1} parent=1 // pred_fallthru
      _
    // Predicated region
    $region22: #{tpu_custom_call.1} parent=1 // pred_check
      _
    $region23: #{tpu_custom_call.1} parent=1 // pred_check_branch
      %3872 = sbr.rel (0) target = $region25
    $region24: #{tpu_custom_call.1} parent=1 // pred_region
      %3874 = dma.done [#allocation4], 512
    $region25: #{tpu_custom_call.1} parent=1 // pred_fallthru
      _
    %3875 = vsyncpa [#allocation3], 1
    %3876 = vsyncpa [#allocation4], 1
    %3877 = vsyncpa [#allocation5], 1

</llo_original>
